<compile_context>
chip_gen: v6e
topology: v6e:2x2x1
jax: 0.10.0
libtpu: 0.0.40
codegen_flags: <defaults>
</compile_context>

<pallas_src>
import functools

import jax
import jax.numpy as jnp
from jax import lax
from jax.experimental import pallas as pl
from jax.experimental.pallas import tpu as pltpu


# --------------------------------------------------------------------------
# Pallas kernels
# --------------------------------------------------------------------------
def _pigr_layer_kernel(hidden_ref, wnoise_ref, diag_ref, nrmc_ref, nrmr_ref,
                       mrow_ref, mcol_ref, coff_ref,
                       w1_ref, b1_ref, w2_ref, b2_ref, gamma_ref, beta_ref,
                       out_ref, *, neighbor, n_layer):
    h = hidden_ref[...]                 # (Bt, L, H) f32
    wn = wnoise_ref[...]                # (Bt, L, H) f32
    d = diag_ref[...]                   # (Bt, L, 1) cluster_emb values
    nrm_c = nrmc_ref[...]               # (Bt, L, 1) row norms (column view)
    nrm_r = nrmr_ref[...]               # (Bt, 1, L) row norms (row view)
    m_row = mrow_ref[...]               # (Bt, 1, L) float mask
    m_col = mcol_ref[...]               # (Bt, L, 1)

    Bt, L, H = h.shape

    # bf16 operands for the MXU (f32 accumulation everywhere).
    h_bf = h.astype(jnp.bfloat16)
    wn_bf = wn.astype(jnp.bfloat16)
    b1 = b1_ref[...]
    b2 = b2_ref[...]
    gamma = gamma_ref[...]
    beta = beta_ref[...]
    # Hoisted broadcasts (so they are not re-emitted per layer iteration).
    w1_b = jnp.broadcast_to(w1_ref[...], (Bt, H, H))        # bf16
    w2_b = jnp.broadcast_to(w2_ref[...], (Bt, H, H))        # bf16

    # --- layer-invariant work (hidden never changes between layers) ----------
    sim = jnp.einsum('bld,bmd->blm', h_bf, h_bf,
                     preferred_element_type=jnp.float32)    # (Bt, L, L)
    denom = nrm_c * nrm_r + 1e-6
    sim = sim * pl.reciprocal(denom, approx=True)           # cosine similarity

    row_i = lax.broadcasted_iota(jnp.int32, (L, L), 0)
    col_i = lax.broadcasted_iota(jnp.int32, (L, L), 1)
    eye = (row_i == col_i).astype(jnp.float32)              # (L, L)
    sim = sim + eye[None, :, :] * d                         # diag_embed(cluster)

    wnz = jnp.einsum('bld,bmd->blm', h_bf, wn_bf,
                     preferred_element_type=jnp.float32)    # (Bt, L, L)
    # Softplus(beta=1, threshold=1): linear above threshold.
    sp = jnp.where(wnz > 1.0, wnz, jnp.log1p(jnp.exp(jnp.minimum(wnz, 1.0))))

    pair_invalid = (m_col * m_row) == 0.0                   # (Bt, L, L) bool
    col3 = lax.broadcasted_iota(jnp.int32, (Bt, L, L), 2)
    ffn_gate = (jnp.sum(m_row, axis=2, keepdims=True) > 1.0
                ).astype(jnp.float32)                       # (Bt, 1, 1)
    eye_b_bf = jnp.broadcast_to(eye, (Bt, L, L)).astype(jnp.bfloat16)

    acc = jnp.zeros((Bt, 1, H), jnp.float32)

    for i in range(n_layer):                                # static, small
        coff_i = coff_ref[i].astype(jnp.float32)            # (Bt, L, L)
        masked = jnp.where(pair_invalid, -1e10, sim + coff_i * sp)

        # --- top-k edges per row: iterative max extraction -------------------
        # (ties broken toward the smaller column index, like the previous
        #  rank-based version; O(neighbor * L^2) instead of O(L^3)).
        work = masked
        edges = jnp.zeros((Bt, L, L), jnp.float32)
        for _ in range(neighbor):
            rmax = jnp.max(work, axis=2, keepdims=True)
            is_max = work == rmax
            cand = jnp.where(is_max, col3, L)
            min_idx = jnp.min(cand, axis=2, keepdims=True)
            first = (col3 == min_idx)
            edges = jnp.maximum(edges, first.astype(jnp.float32))
            work = jnp.where(first, -3.0e38, work)
        edges = edges * (masked > -1e10).astype(jnp.float32)

        # cluster_label = edges^T, done exactly via an identity matmul
        # (standard "QK^T" contraction; avoids an in-kernel XLU transpose).
        cluster_label = jnp.einsum('bik,bjk->bij', eye_b_bf,
                                   edges.astype(jnp.bfloat16),
                                   preferred_element_type=jnp.float32)

        # --- softmax over neighbors ------------------------------------------
        rmx = jnp.max(masked, axis=2, keepdims=True)
        ex = jnp.exp(masked - rmx)
        sm = ex * pl.reciprocal(jnp.sum(ex, axis=2, keepdims=True), approx=True)

        ssm = cluster_label * sm                            # (Bt, L, L)
        update = jnp.einsum('blm,bmd->bld', ssm.astype(jnp.bfloat16), h_bf,
                            preferred_element_type=jnp.float32)   # (Bt, L, H)

        cm = jnp.sum(ssm, axis=2, keepdims=True)            # (Bt, L, 1)
        cnorm = jnp.sqrt(jnp.sum(cm * cm, axis=1, keepdims=True))  # (Bt, 1, 1)
        cm = cm * pl.reciprocal(jnp.maximum(cnorm, 1e-12), approx=True)

        if i > 0:
            update = update * ffn_gate

        # --- FFN + LayerNorm ---------------------------------------------------
        feed1 = jnp.maximum(
            jnp.einsum('bld,bdk->blk', update.astype(jnp.bfloat16), w1_b,
                       preferred_element_type=jnp.float32) + b1, 0.0)
        pre = (jnp.einsum('bld,bdk->blk', feed1.astype(jnp.bfloat16), w2_b,
                          preferred_element_type=jnp.float32) + b2 + update)
        mu = jnp.mean(pre, axis=2, keepdims=True)
        var = jnp.mean((pre - mu) ** 2, axis=2, keepdims=True)
        feed2 = (pre - mu) * lax.rsqrt(var + 1e-5) * gamma + beta

        # cluster-weighted pooling, accumulated over layers.
        acc = acc + jnp.sum(feed2 * cm, axis=1, keepdims=True)     # (Bt, 1, H)

    out_ref[...] = acc


def _pigr_head_kernel(sess_ref, items_ref, out_ref):
    # Pure sess @ item_tile^T; the gate was hoisted out of the item-tile loop.
    out_ref[...] = lax.dot_general(
        sess_ref[...], items_ref[...],
        dimension_numbers=(((1,), (1,)), ((), ())),
        preferred_element_type=jnp.float32)                 # (B, tn)


# --------------------------------------------------------------------------
# Wrappers (pallas_call plumbing)
# --------------------------------------------------------------------------
def _pick_bt(B, max_bt=8):
    """Largest batch block <= max_bt dividing B while keeping >=2 grid steps."""
    best = 0
    for bt in range(1, min(B, max_bt) + 1):
        if B % bt == 0 and B // bt >= 2:
            best = bt
    if best == 0:
        best = min(B, max_bt)
        while B % best:
            best -= 1
    return best


def _run_layer(hidden, wnoise, diag_vals, mask, coff,
               w1t, b1, w2t, b2, gamma, beta, *, neighbor):
    B, L, H = hidden.shape
    n_layer = coff.shape[0]
    bt = _pick_bt(B)

    nrm = jnp.sqrt(jnp.sum(hidden * hidden, axis=2))        # (B, L) f32
    mrow = mask[:, None, :]
    mcol = mask[:, :, None]
    nrow = nrm[:, None, :]
    ncol = nrm[:, :, None]
    diag3 = diag_vals[:, :, None]

    kern = functools.partial(_pigr_layer_kernel,
                             neighbor=neighbor, n_layer=n_layer)
    out = pl.pallas_call(
        kern,
        out_shape=jax.ShapeDtypeStruct((B, 1, H), jnp.float32),
        grid=(B // bt,),
        in_specs=[
            pl.BlockSpec((bt, L, H), lambda b: (b, 0, 0)),            # hidden
            pl.BlockSpec((bt, L, H), lambda b: (b, 0, 0)),            # wnoise emb
            pl.BlockSpec((bt, L, 1), lambda b: (b, 0, 0)),            # cluster diag
            pl.BlockSpec((bt, L, 1), lambda b: (b, 0, 0)),            # norm (col)
            pl.BlockSpec((bt, 1, L), lambda b: (b, 0, 0)),            # norm (row)
            pl.BlockSpec((bt, 1, L), lambda b: (b, 0, 0)),            # mask (row)
            pl.BlockSpec((bt, L, 1), lambda b: (b, 0, 0)),            # mask (col)
            pl.BlockSpec((n_layer, bt, L, L), lambda b: (0, b, 0, 0)),  # coff bf16
            pl.BlockSpec((H, H), lambda b: (0, 0)),                   # ffn1 W^T bf16
            pl.BlockSpec((1, H), lambda b: (0, 0)),                   # ffn1 b
            pl.BlockSpec((H, H), lambda b: (0, 0)),                   # ffn2 W^T bf16
            pl.BlockSpec((1, H), lambda b: (0, 0)),                   # ffn2 b
            pl.BlockSpec((1, H), lambda b: (0, 0)),                   # ln gamma
            pl.BlockSpec((1, H), lambda b: (0, 0)),                   # ln beta
        ],
        out_specs=pl.BlockSpec((bt, 1, H), lambda b: (b, 0, 0)),
        compiler_params=pltpu.CompilerParams(
            dimension_semantics=("parallel",),
            vmem_limit_bytes=32 * 1024 * 1024),
    )(hidden, wnoise, diag3, ncol, nrow, mrow, mcol, coff,
      w1t.astype(jnp.bfloat16), b1, w2t.astype(jnp.bfloat16), b2, gamma, beta)
    return out[:, 0, :]                                      # (B, H) sum over layers


def _run_head(sess, emb_table, *, tn=None):
    B, H = sess.shape
    N = emb_table.shape[0]
    if tn is None:
        tn = min(N, 1024)
    if N % tn != 0:
        tn = N                                               # single tile fallback
    sess_bf = sess.astype(jnp.bfloat16)
    items_bf = emb_table.astype(jnp.bfloat16)                # keep (N, H); no transpose
    return pl.pallas_call(
        _pigr_head_kernel,
        out_shape=jax.ShapeDtypeStruct((B, N), jnp.float32),
        grid=(N // tn,),
        in_specs=[
            pl.BlockSpec((B, H), lambda j: (0, 0)),
            pl.BlockSpec((tn, H), lambda j: (j, 0)),
        ],
        out_specs=pl.BlockSpec((B, tn), lambda j: (0, j)),
        compiler_params=pltpu.CompilerParams(
            dimension_semantics=("parallel",),
            vmem_limit_bytes=32 * 1024 * 1024),
    )(sess_bf, items_bf)


def pigr_forward(params, seq, lengths, reverse_lengths, *, layer, neighbor,
                 coff_key):
    emb = params["emb"]
    wnoise_tab = params["wnoise"]
    cluster_tab = params["cluster"]
    w1t, b1 = params["ffn1_wt"], params["ffn1_b"]
    w2t, b2 = params["ffn2_wt"], params["ffn2_b"]
    gamma, beta = params["ln_g"], params["ln_b"]
    gate_w = params["gate_w"]

    B, L = seq.shape

    mask = (lengths > 0).astype(jnp.float32)                 # (B, L)
    seq_len = jnp.sum(mask, axis=1)                          # (B,)
    hidden = emb[seq]                                        # (B, L, H)

    last_idx = jnp.maximum(seq_len.astype(jnp.int32) - 1, 0)   # guard empty rows
    e_s = hidden[jnp.arange(B), last_idx]                    # (B, H)
    zero_layer = jnp.sum(hidden, axis=1) / seq_len[:, None]  # (B, H)

    wnoise_emb = wnoise_tab[reverse_lengths]                 # (B, L, H)
    diag_vals = cluster_tab[reverse_lengths][..., 0]         # (B, L)

    # One normal draw per layer; streamed bf16 to halve HBM traffic.
    coff = jax.random.normal(coff_key, (layer, B, L, L),
                             jnp.float32).astype(jnp.bfloat16)

    layer_sum = _run_layer(hidden, wnoise_emb, diag_vals, mask, coff,
                           w1t, b1, w2t, b2, gamma, beta,
                           neighbor=neighbor)                # sum over graph layers
    e_c = (zero_layer + layer_sum) / jnp.float32(layer + 1)  # mean incl. zero_layer

    # Gate (hoisted out of the item-tile loop; tiny op, plain JAX).
    alpha = jax.nn.sigmoid(jnp.concatenate([e_c, e_s], axis=-1) @ gate_w.T)
    sess = alpha * e_c + (1.0 - alpha) * e_s                 # dropout = identity

    pre_scores = _run_head(sess, emb)                        # (B, n_items)
    con_loss = jnp.float32(0.0)                              # abs=True branch
    return pre_scores, con_loss


# --------------------------------------------------------------------------
# Deterministic parameter construction
# --------------------------------------------------------------------------
def init_params(key, n_items, max_len, hidden):
    ks = jax.random.split(key, 8)

    def emb_init(k, n, d, max_norm):
        w = 0.5 * jax.random.normal(k, (n, d), jnp.float32)
        norms = jnp.linalg.norm(w, axis=1, keepdims=True)
        w = jnp.where(norms > max_norm, w * (max_norm / (norms + 1e-12)), w)
        return w.at[0].set(0.0)        # padding_idx=0

    def linear_init(k, fan_in, fan_out):
        kw, kb = jax.random.split(k)
        bound = 1.0 / jnp.sqrt(float(fan_in))
        w = jax.random.uniform(kw, (fan_out, fan_in), jnp.float32, -bound, bound)
        b = jax.random.uniform(kb, (fan_out,), jnp.float32, -bound, bound)
        return w, b

    emb = emb_init(ks[0], n_items, hidden, 1.5)
    wnoise = emb_init(ks[1], max_len + 1, hidden, 1.5)
    cluster = emb_init(ks[2], max_len + 1, 1, 1.0)
    w1, b1 = linear_init(ks[3], hidden, hidden)
    w2, b2 = linear_init(ks[4], hidden, hidden)
    gate_w, _ = linear_init(ks[5], 2 * hidden, hidden)       # bias=False

    return dict(
        emb=emb,
        wnoise=wnoise,
        cluster=cluster,
        ffn1_wt=w1.T, ffn1_b=b1.reshape(1, hidden),
        ffn2_wt=w2.T, ffn2_b=b2.reshape(1, hidden),
        ln_g=jnp.ones((1, hidden), jnp.float32),
        ln_b=jnp.zeros((1, hidden), jnp.float32),
        gate_w=gate_w,
    )


# --------------------------------------------------------------------------
if __name__ == "__main__":
    key = jax.random.PRNGKey(0)
    B, L, H = 8, 8, 32
    n_items = 256
    max_len = L
    layer, neighbor = 2, 3

    kp, ks, kc = jax.random.split(key, 3)
    params = init_params(kp, n_items, max_len, H)

    lens = jnp.array([8, 7, 6, 5, 4, 3, 2, 1], dtype=jnp.int32)
    pos = jnp.arange(L, dtype=jnp.int32)[None, :]
    valid = pos < lens[:, None]
    seq = jnp.where(valid, jax.random.randint(ks, (B, L), 1, n_items), 0)
    seq = seq.astype(jnp.int32)
    lengths = jnp.where(valid, pos + 1, 0).astype(jnp.int32)
    reverse_lengths = jnp.where(valid, lens[:, None] - pos, 0).astype(jnp.int32)

    scores, con_loss = pigr_forward(params, seq, lengths, reverse_lengths,
                                    layer=layer, neighbor=neighbor,
                                    coff_key=kc)
    jax.block_until_ready(scores)
    jax.block_until_ready(con_loss)
    assert scores.shape == (B, n_items)
    assert bool(jnp.all(jnp.isfinite(scores)))
    print("KERNEL_OK")
</pallas_src>

<mosaic_0001>
module attributes {stable_mosaic.version = 11 : i64} {
  func.func @_pigr_layer_kernel(%arg0: i32, %arg1: memref<4x8x32xf32, #tpu.memory_space<vmem>>, %arg2: memref<4x8x32xf32, #tpu.memory_space<vmem>>, %arg3: memref<4x8x1xf32, #tpu.memory_space<vmem>>, %arg4: memref<4x8x1xf32, #tpu.memory_space<vmem>>, %arg5: memref<4x1x8xf32, #tpu.memory_space<vmem>>, %arg6: memref<4x1x8xf32, #tpu.memory_space<vmem>>, %arg7: memref<4x8x1xf32, #tpu.memory_space<vmem>>, %arg8: memref<2x4x8x8xbf16, #tpu.memory_space<vmem>>, %arg9: memref<32x32xbf16, #tpu.memory_space<vmem>>, %arg10: memref<1x32xf32, #tpu.memory_space<vmem>>, %arg11: memref<32x32xbf16, #tpu.memory_space<vmem>>, %arg12: memref<1x32xf32, #tpu.memory_space<vmem>>, %arg13: memref<1x32xf32, #tpu.memory_space<vmem>>, %arg14: memref<1x32xf32, #tpu.memory_space<vmem>>, %arg15: memref<4x1x32xf32, #tpu.memory_space<vmem>>) attributes {dimension_semantics = [#tpu.dimension_semantics<parallel>], iteration_bounds = array<i64: 2>, scalar_prefetch = 0 : i64, scratch_operands = 0 : i64, tpu.core_type = #tpu.core_type<tc>, window_params = [{transform_indices = @transform_0, window_bounds = array<i64: 4, 8, 32>}, {transform_indices = @transform_1, window_bounds = array<i64: 4, 8, 32>}, {transform_indices = @transform_2, window_bounds = array<i64: 4, 8, 1>}, {transform_indices = @transform_3, window_bounds = array<i64: 4, 8, 1>}, {transform_indices = @transform_4, window_bounds = array<i64: 4, 1, 8>}, {transform_indices = @transform_5, window_bounds = array<i64: 4, 1, 8>}, {transform_indices = @transform_6, window_bounds = array<i64: 4, 8, 1>}, {transform_indices = @transform_7, window_bounds = array<i64: 2, 4, 8, 8>}, {pipeline_mode = #tpu.pipeline_mode<synchronous>, transform_indices = @transform_8, window_bounds = array<i64: 32, 32>}, {pipeline_mode = #tpu.pipeline_mode<synchronous>, transform_indices = @transform_9, window_bounds = array<i64: 1, 32>}, {pipeline_mode = #tpu.pipeline_mode<synchronous>, transform_indices = @transform_10, window_bounds = array<i64: 32, 32>}, {pipeline_mode = #tpu.pipeline_mode<synchronous>, transform_indices = @transform_11, window_bounds = array<i64: 1, 32>}, {pipeline_mode = #tpu.pipeline_mode<synchronous>, transform_indices = @transform_12, window_bounds = array<i64: 1, 32>}, {pipeline_mode = #tpu.pipeline_mode<synchronous>, transform_indices = @transform_13, window_bounds = array<i64: 1, 32>}, {transform_indices = @transform_14, window_bounds = array<i64: 4, 1, 32>}]} {
    %c0 = arith.constant 0 : index
    %c0_0 = arith.constant 0 : index
    %c0_1 = arith.constant 0 : index
    %0 = vector.load %arg1[%c0, %c0_0, %c0_1] : memref<4x8x32xf32, #tpu.memory_space<vmem>>, vector<4x8x32xf32>
    %c0_2 = arith.constant 0 : index
    %c0_3 = arith.constant 0 : index
    %c0_4 = arith.constant 0 : index
    %1 = vector.load %arg2[%c0_2, %c0_3, %c0_4] : memref<4x8x32xf32, #tpu.memory_space<vmem>>, vector<4x8x32xf32>
    %c0_5 = arith.constant 0 : index
    %c0_6 = arith.constant 0 : index
    %c0_7 = arith.constant 0 : index
    %2 = vector.load %arg3[%c0_5, %c0_6, %c0_7] : memref<4x8x1xf32, #tpu.memory_space<vmem>>, vector<4x8x1xf32>
    %c0_8 = arith.constant 0 : index
    %c0_9 = arith.constant 0 : index
    %c0_10 = arith.constant 0 : index
    %3 = vector.load %arg4[%c0_8, %c0_9, %c0_10] : memref<4x8x1xf32, #tpu.memory_space<vmem>>, vector<4x8x1xf32>
    %c0_11 = arith.constant 0 : index
    %c0_12 = arith.constant 0 : index
    %c0_13 = arith.constant 0 : index
    %4 = vector.load %arg5[%c0_11, %c0_12, %c0_13] : memref<4x1x8xf32, #tpu.memory_space<vmem>>, vector<4x1x8xf32>
    %c0_14 = arith.constant 0 : index
    %c0_15 = arith.constant 0 : index
    %c0_16 = arith.constant 0 : index
    %5 = vector.load %arg6[%c0_14, %c0_15, %c0_16] : memref<4x1x8xf32, #tpu.memory_space<vmem>>, vector<4x1x8xf32>
    %c0_17 = arith.constant 0 : index
    %c0_18 = arith.constant 0 : index
    %c0_19 = arith.constant 0 : index
    %6 = vector.load %arg7[%c0_17, %c0_18, %c0_19] : memref<4x8x1xf32, #tpu.memory_space<vmem>>, vector<4x8x1xf32>
    %7 = arith.truncf %0 : vector<4x8x32xf32> to vector<4x8x32xbf16>
    %8 = arith.truncf %1 : vector<4x8x32xf32> to vector<4x8x32xbf16>
    %c0_20 = arith.constant 0 : index
    %c0_21 = arith.constant 0 : index
    %9 = vector.load %arg10[%c0_20, %c0_21] : memref<1x32xf32, #tpu.memory_space<vmem>>, vector<1x32xf32>
    %c0_22 = arith.constant 0 : index
    %c0_23 = arith.constant 0 : index
    %10 = vector.load %arg12[%c0_22, %c0_23] : memref<1x32xf32, #tpu.memory_space<vmem>>, vector<1x32xf32>
    %c0_24 = arith.constant 0 : index
    %c0_25 = arith.constant 0 : index
    %11 = vector.load %arg13[%c0_24, %c0_25] : memref<1x32xf32, #tpu.memory_space<vmem>>, vector<1x32xf32>
    %c0_26 = arith.constant 0 : index
    %c0_27 = arith.constant 0 : index
    %12 = vector.load %arg14[%c0_26, %c0_27] : memref<1x32xf32, #tpu.memory_space<vmem>>, vector<1x32xf32>
    %c0_28 = arith.constant 0 : index
    %c0_29 = arith.constant 0 : index
    %13 = vector.load %arg9[%c0_28, %c0_29] : memref<32x32xbf16, #tpu.memory_space<vmem>>, vector<32x32xbf16>
    %14 = vector.shape_cast %13 : vector<32x32xbf16> to vector<1x32x32xbf16>
    %15 = vector.broadcast %14 : vector<1x32x32xbf16> to vector<4x32x32xbf16>
    %c0_30 = arith.constant 0 : index
    %c0_31 = arith.constant 0 : index
    %16 = vector.load %arg11[%c0_30, %c0_31] : memref<32x32xbf16, #tpu.memory_space<vmem>>, vector<32x32xbf16>
    %17 = vector.shape_cast %16 : vector<32x32xbf16> to vector<1x32x32xbf16>
    %18 = vector.broadcast %17 : vector<1x32x32xbf16> to vector<4x32x32xbf16>
    "tpu.trace_start"() <{level = 10 : i32, message = "bld,bmd->blm"}> : () -> ()
    %cst = arith.constant dense<0.000000e+00> : vector<4x8x8xf32>
    %19 = tpu.matmul %7, %7, %cst {dimension_numbers = #tpu.dot_dimension_numbers<[2], [2], [1], [1], [0, 0, 0, 1, 1, 1], [0], [0]>} : vector<4x8x32xbf16>, vector<4x8x32xbf16>, vector<4x8x8xf32> -> vector<4x8x8xf32>
    "tpu.trace_stop"() : () -> ()
    %20 = vector.broadcast %3 : vector<4x8x1xf32> to vector<4x8x8xf32>
    %21 = vector.broadcast %4 : vector<4x1x8xf32> to vector<4x8x8xf32>
    %22 = arith.mulf %20, %21 : vector<4x8x8xf32>
    %cst_32 = arith.constant 9.99999997E-7 : f32
    %23 = vector.broadcast %cst_32 : f32 to vector<4x8x8xf32>
    %24 = arith.addf %22, %23 : vector<4x8x8xf32>
    %25 = tpu.reciprocal %24 {approx = true} : vector<4x8x8xf32> -> vector<4x8x8xf32>
    %26 = arith.mulf %19, %25 : vector<4x8x8xf32>
    %27 = tpu.iota {dimensions = array<i32: 0>} : vector<8x8xi32>
    %28 = tpu.iota {dimensions = array<i32: 1>} : vector<8x8xi32>
    %29 = arith.cmpi eq, %27, %28 : vector<8x8xi32>
    %30 = arith.extui %29 : vector<8x8xi1> to vector<8x8xi32>
    %31 = arith.sitofp %30 : vector<8x8xi32> to vector<8x8xf32>
    %32 = vector.shape_cast %31 : vector<8x8xf32> to vector<1x8x8xf32>
    %33 = vector.broadcast %32 : vector<1x8x8xf32> to vector<4x8x8xf32>
    %34 = vector.broadcast %2 : vector<4x8x1xf32> to vector<4x8x8xf32>
    %35 = arith.mulf %33, %34 : vector<4x8x8xf32>
    %36 = arith.addf %26, %35 : vector<4x8x8xf32>
    "tpu.trace_start"() <{level = 10 : i32, message = "bld,bmd->blm"}> : () -> ()
    %cst_33 = arith.constant dense<0.000000e+00> : vector<4x8x8xf32>
    %37 = tpu.matmul %7, %8, %cst_33 {dimension_numbers = #tpu.dot_dimension_numbers<[2], [2], [1], [1], [0, 0, 0, 1, 1, 1], [0], [0]>} : vector<4x8x32xbf16>, vector<4x8x32xbf16>, vector<4x8x8xf32> -> vector<4x8x8xf32>
    %cst_34 = arith.constant 1.000000e+00 : f32
    "tpu.trace_stop"() : () -> ()
    %38 = vector.broadcast %cst_34 : f32 to vector<4x8x8xf32>
    %39 = arith.cmpf ogt, %37, %38 : vector<4x8x8xf32>
    %cst_35 = arith.constant 1.000000e+00 : f32
    %40 = vector.broadcast %cst_35 : f32 to vector<4x8x8xf32>
    %41 = arith.minimumf %37, %40 : vector<4x8x8xf32>
    %42 = math.exp %41 : vector<4x8x8xf32>
    %43 = math.log1p %42 : vector<4x8x8xf32>
    %44 = arith.select %39, %37, %43 : vector<4x8x8xi1>, vector<4x8x8xf32>
    %45 = vector.broadcast %6 : vector<4x8x1xf32> to vector<4x8x8xf32>
    %46 = vector.broadcast %5 : vector<4x1x8xf32> to vector<4x8x8xf32>
    %47 = arith.mulf %45, %46 : vector<4x8x8xf32>
    %cst_36 = arith.constant 0.000000e+00 : f32
    %48 = vector.broadcast %cst_36 : f32 to vector<4x8x8xf32>
    %49 = arith.cmpf oeq, %47, %48 : vector<4x8x8xf32>
    %50 = tpu.iota {dimensions = array<i32: 2>} : vector<4x8x8xi32>
    %cst_37 = arith.constant dense<0.000000e+00> : vector<4x1xf32>
    %51 = vector.multi_reduction <add>, %5, %cst_37 [2] : vector<4x1x8xf32> to vector<4x1xf32>
    %52 = vector.shape_cast %51 : vector<4x1xf32> to vector<4x1x1xf32>
    %cst_38 = arith.constant 1.000000e+00 : f32
    %53 = vector.broadcast %cst_38 : f32 to vector<4x1x1xf32>
    %54 = arith.cmpf ogt, %52, %53 : vector<4x1x1xf32>
    %55 = arith.extui %54 : vector<4x1x1xi1> to vector<4x1x1xi32>
    %56 = arith.sitofp %55 : vector<4x1x1xi32> to vector<4x1x1xf32>
    %57 = vector.shape_cast %31 : vector<8x8xf32> to vector<1x8x8xf32>
    %58 = vector.broadcast %57 : vector<1x8x8xf32> to vector<4x8x8xf32>
    %59 = arith.truncf %58 : vector<4x8x8xf32> to vector<4x8x8xbf16>
    %cst_39 = arith.constant 0.000000e+00 : f32
    %60 = vector.broadcast %cst_39 : f32 to vector<4x1x32xf32>
    %c0_40 = arith.constant 0 : index
    %c0_41 = arith.constant 0 : index
    %c0_42 = arith.constant 0 : index
    %c0_43 = arith.constant 0 : index
    %61 = vector.load %arg8[%c0_40, %c0_41, %c0_42, %c0_43] : memref<2x4x8x8xbf16, #tpu.memory_space<vmem>>, vector<1x4x8x8xbf16>
    %62 = vector.shape_cast %61 : vector<1x4x8x8xbf16> to vector<4x8x8xbf16>
    %63 = arith.extf %62 : vector<4x8x8xbf16> to vector<4x8x8xf32>
    %64 = arith.mulf %63, %44 : vector<4x8x8xf32>
    %65 = arith.addf %36, %64 : vector<4x8x8xf32>
    %cst_44 = arith.constant -1.000000e+10 : f32
    %66 = vector.broadcast %cst_44 : f32 to vector<4x8x8xf32>
    %67 = arith.select %49, %66, %65 : vector<4x8x8xi1>, vector<4x8x8xf32>
    %cst_45 = arith.constant 0.000000e+00 : f32
    %68 = vector.broadcast %cst_45 : f32 to vector<4x8x8xf32>
    %cst_46 = arith.constant dense<0xFF800000> : vector<4x8xf32>
    %69 = vector.multi_reduction <maximumf>, %67, %cst_46 [2] : vector<4x8x8xf32> to vector<4x8xf32>
    %70 = vector.shape_cast %69 : vector<4x8xf32> to vector<4x8x1xf32>
    %71 = vector.broadcast %70 : vector<4x8x1xf32> to vector<4x8x8xf32>
    %72 = arith.cmpf oeq, %67, %71 : vector<4x8x8xf32>
    %c8_i32 = arith.constant 8 : i32
    %73 = vector.broadcast %c8_i32 : i32 to vector<4x8x8xi32>
    %74 = arith.select %72, %50, %73 : vector<4x8x8xi1>, vector<4x8x8xi32>
    %cst_47 = arith.constant dense<2147483647> : vector<4x8xi32>
    %75 = vector.multi_reduction <minsi>, %74, %cst_47 [2] : vector<4x8x8xi32> to vector<4x8xi32>
    %76 = vector.shape_cast %75 : vector<4x8xi32> to vector<4x8x1xi32>
    %77 = vector.broadcast %76 : vector<4x8x1xi32> to vector<4x8x8xi32>
    %78 = arith.cmpi eq, %50, %77 : vector<4x8x8xi32>
    %79 = arith.extui %78 : vector<4x8x8xi1> to vector<4x8x8xi32>
    %80 = arith.sitofp %79 : vector<4x8x8xi32> to vector<4x8x8xf32>
    %81 = arith.maximumf %68, %80 : vector<4x8x8xf32>
    %cst_48 = arith.constant -3.000000e+38 : f32
    %82 = vector.broadcast %cst_48 : f32 to vector<4x8x8xf32>
    %83 = arith.select %78, %82, %67 : vector<4x8x8xi1>, vector<4x8x8xf32>
    %cst_49 = arith.constant dense<0xFF800000> : vector<4x8xf32>
    %84 = vector.multi_reduction <maximumf>, %83, %cst_49 [2] : vector<4x8x8xf32> to vector<4x8xf32>
    %85 = vector.shape_cast %84 : vector<4x8xf32> to vector<4x8x1xf32>
    %86 = vector.broadcast %85 : vector<4x8x1xf32> to vector<4x8x8xf32>
    %87 = arith.cmpf oeq, %83, %86 : vector<4x8x8xf32>
    %c8_i32_50 = arith.constant 8 : i32
    %88 = vector.broadcast %c8_i32_50 : i32 to vector<4x8x8xi32>
    %89 = arith.select %87, %50, %88 : vector<4x8x8xi1>, vector<4x8x8xi32>
    %cst_51 = arith.constant dense<2147483647> : vector<4x8xi32>
    %90 = vector.multi_reduction <minsi>, %89, %cst_51 [2] : vector<4x8x8xi32> to vector<4x8xi32>
    %91 = vector.shape_cast %90 : vector<4x8xi32> to vector<4x8x1xi32>
    %92 = vector.broadcast %91 : vector<4x8x1xi32> to vector<4x8x8xi32>
    %93 = arith.cmpi eq, %50, %92 : vector<4x8x8xi32>
    %94 = arith.extui %93 : vector<4x8x8xi1> to vector<4x8x8xi32>
    %95 = arith.sitofp %94 : vector<4x8x8xi32> to vector<4x8x8xf32>
    %96 = arith.maximumf %81, %95 : vector<4x8x8xf32>
    %cst_52 = arith.constant -3.000000e+38 : f32
    %97 = vector.broadcast %cst_52 : f32 to vector<4x8x8xf32>
    %98 = arith.select %93, %97, %83 : vector<4x8x8xi1>, vector<4x8x8xf32>
    %cst_53 = arith.constant dense<0xFF800000> : vector<4x8xf32>
    %99 = vector.multi_reduction <maximumf>, %98, %cst_53 [2] : vector<4x8x8xf32> to vector<4x8xf32>
    %100 = vector.shape_cast %99 : vector<4x8xf32> to vector<4x8x1xf32>
    %101 = vector.broadcast %100 : vector<4x8x1xf32> to vector<4x8x8xf32>
    %102 = arith.cmpf oeq, %98, %101 : vector<4x8x8xf32>
    %c8_i32_54 = arith.constant 8 : i32
    %103 = vector.broadcast %c8_i32_54 : i32 to vector<4x8x8xi32>
    %104 = arith.select %102, %50, %103 : vector<4x8x8xi1>, vector<4x8x8xi32>
    %cst_55 = arith.constant dense<2147483647> : vector<4x8xi32>
    %105 = vector.multi_reduction <minsi>, %104, %cst_55 [2] : vector<4x8x8xi32> to vector<4x8xi32>
    %106 = vector.shape_cast %105 : vector<4x8xi32> to vector<4x8x1xi32>
    %107 = vector.broadcast %106 : vector<4x8x1xi32> to vector<4x8x8xi32>
    %108 = arith.cmpi eq, %50, %107 : vector<4x8x8xi32>
    %109 = arith.extui %108 : vector<4x8x8xi1> to vector<4x8x8xi32>
    %110 = arith.sitofp %109 : vector<4x8x8xi32> to vector<4x8x8xf32>
    %111 = arith.maximumf %96, %110 : vector<4x8x8xf32>
    %cst_56 = arith.constant -1.000000e+10 : f32
    %112 = vector.broadcast %cst_56 : f32 to vector<4x8x8xf32>
    %113 = arith.cmpf ogt, %67, %112 : vector<4x8x8xf32>
    %114 = arith.extui %113 : vector<4x8x8xi1> to vector<4x8x8xi32>
    %115 = arith.sitofp %114 : vector<4x8x8xi32> to vector<4x8x8xf32>
    %116 = arith.mulf %111, %115 : vector<4x8x8xf32>
    %117 = arith.truncf %116 : vector<4x8x8xf32> to vector<4x8x8xbf16>
    "tpu.trace_start"() <{level = 10 : i32, message = "bik,bjk->bij"}> : () -> ()
    %cst_57 = arith.constant dense<0.000000e+00> : vector<4x8x8xf32>
    %118 = tpu.matmul %59, %117, %cst_57 {dimension_numbers = #tpu.dot_dimension_numbers<[2], [2], [1], [1], [0, 0, 0, 1, 1, 1], [0], [0]>} : vector<4x8x8xbf16>, vector<4x8x8xbf16>, vector<4x8x8xf32> -> vector<4x8x8xf32>
    "tpu.trace_stop"() : () -> ()
    %cst_58 = arith.constant dense<0xFF800000> : vector<4x8xf32>
    %119 = vector.multi_reduction <maximumf>, %67, %cst_58 [2] : vector<4x8x8xf32> to vector<4x8xf32>
    %120 = vector.shape_cast %119 : vector<4x8xf32> to vector<4x8x1xf32>
    %121 = vector.broadcast %120 : vector<4x8x1xf32> to vector<4x8x8xf32>
    %122 = arith.subf %67, %121 : vector<4x8x8xf32>
    %123 = math.exp %122 : vector<4x8x8xf32>
    %cst_59 = arith.constant dense<0.000000e+00> : vector<4x8xf32>
    %124 = vector.multi_reduction <add>, %123, %cst_59 [2] : vector<4x8x8xf32> to vector<4x8xf32>
    %125 = vector.shape_cast %124 : vector<4x8xf32> to vector<4x8x1xf32>
    %126 = tpu.reciprocal %125 {approx = true} : vector<4x8x1xf32> -> vector<4x8x1xf32>
    %127 = vector.broadcast %126 : vector<4x8x1xf32> to vector<4x8x8xf32>
    %128 = arith.mulf %123, %127 : vector<4x8x8xf32>
    %129 = arith.mulf %118, %128 : vector<4x8x8xf32>
    %130 = arith.truncf %129 : vector<4x8x8xf32> to vector<4x8x8xbf16>
    "tpu.trace_start"() <{level = 10 : i32, message = "blm,bmd->bld"}> : () -> ()
    %cst_60 = arith.constant dense<0.000000e+00> : vector<4x8x32xf32>
    %131 = tpu.matmul %130, %7, %cst_60 {dimension_numbers = #tpu.dot_dimension_numbers<[2], [1], [1], [2], [0, 0, 0, 1, 1, 2], [0], [0]>} : vector<4x8x8xbf16>, vector<4x8x32xbf16>, vector<4x8x32xf32> -> vector<4x8x32xf32>
    "tpu.trace_stop"() : () -> ()
    %cst_61 = arith.constant dense<0.000000e+00> : vector<4x8xf32>
    %132 = vector.multi_reduction <add>, %129, %cst_61 [2] : vector<4x8x8xf32> to vector<4x8xf32>
    %133 = vector.shape_cast %132 : vector<4x8xf32> to vector<4x8x1xf32>
    %134 = arith.mulf %133, %133 : vector<4x8x1xf32>
    %cst_62 = arith.constant dense<0.000000e+00> : vector<4x1xf32>
    %135 = vector.multi_reduction <add>, %134, %cst_62 [1] : vector<4x8x1xf32> to vector<4x1xf32>
    %136 = vector.shape_cast %135 : vector<4x1xf32> to vector<4x1x1xf32>
    %137 = math.sqrt %136 : vector<4x1x1xf32>
    %cst_63 = arith.constant 9.99999996E-13 : f32
    %138 = vector.broadcast %cst_63 : f32 to vector<4x1x1xf32>
    %139 = arith.maximumf %137, %138 : vector<4x1x1xf32>
    %140 = tpu.reciprocal %139 {approx = true} : vector<4x1x1xf32> -> vector<4x1x1xf32>
    %141 = vector.broadcast %140 : vector<4x1x1xf32> to vector<4x8x1xf32>
    %142 = arith.mulf %133, %141 : vector<4x8x1xf32>
    %143 = arith.truncf %131 : vector<4x8x32xf32> to vector<4x8x32xbf16>
    "tpu.trace_start"() <{level = 10 : i32, message = "bld,bdk->blk"}> : () -> ()
    %cst_64 = arith.constant dense<0.000000e+00> : vector<4x8x32xf32>
    %144 = tpu.matmul %143, %15, %cst_64 {dimension_numbers = #tpu.dot_dimension_numbers<[2], [1], [1], [2], [0, 0, 0, 1, 1, 2], [0], [0]>} : vector<4x8x32xbf16>, vector<4x32x32xbf16>, vector<4x8x32xf32> -> vector<4x8x32xf32>
    "tpu.trace_stop"() : () -> ()
    %145 = vector.shape_cast %9 : vector<1x32xf32> to vector<1x1x32xf32>
    %146 = vector.broadcast %145 : vector<1x1x32xf32> to vector<4x8x32xf32>
    %147 = arith.addf %144, %146 : vector<4x8x32xf32>
    %cst_65 = arith.constant 0.000000e+00 : f32
    %148 = vector.broadcast %cst_65 : f32 to vector<4x8x32xf32>
    %149 = arith.maximumf %147, %148 : vector<4x8x32xf32>
    %150 = arith.truncf %149 : vector<4x8x32xf32> to vector<4x8x32xbf16>
    "tpu.trace_start"() <{level = 10 : i32, message = "bld,bdk->blk"}> : () -> ()
    %cst_66 = arith.constant dense<0.000000e+00> : vector<4x8x32xf32>
    %151 = tpu.matmul %150, %18, %cst_66 {dimension_numbers = #tpu.dot_dimension_numbers<[2], [1], [1], [2], [0, 0, 0, 1, 1, 2], [0], [0]>} : vector<4x8x32xbf16>, vector<4x32x32xbf16>, vector<4x8x32xf32> -> vector<4x8x32xf32>
    "tpu.trace_stop"() : () -> ()
    %152 = vector.shape_cast %10 : vector<1x32xf32> to vector<1x1x32xf32>
    %153 = vector.broadcast %152 : vector<1x1x32xf32> to vector<4x8x32xf32>
    %154 = arith.addf %151, %153 : vector<4x8x32xf32>
    %155 = arith.addf %154, %131 : vector<4x8x32xf32>
    %cst_67 = arith.constant dense<0.000000e+00> : vector<4x8xf32>
    %156 = vector.multi_reduction <add>, %155, %cst_67 [2] : vector<4x8x32xf32> to vector<4x8xf32>
    %157 = vector.shape_cast %156 : vector<4x8xf32> to vector<4x8x1xf32>
    %cst_68 = arith.constant 3.200000e+01 : f32
    %158 = vector.broadcast %cst_68 : f32 to vector<4x8x1xf32>
    %159 = arith.divf %157, %158 : vector<4x8x1xf32>
    %160 = vector.broadcast %159 : vector<4x8x1xf32> to vector<4x8x32xf32>
    %161 = arith.subf %155, %160 : vector<4x8x32xf32>
    %162 = arith.mulf %161, %161 : vector<4x8x32xf32>
    %cst_69 = arith.constant dense<0.000000e+00> : vector<4x8xf32>
    %163 = vector.multi_reduction <add>, %162, %cst_69 [2] : vector<4x8x32xf32> to vector<4x8xf32>
    %164 = vector.shape_cast %163 : vector<4x8xf32> to vector<4x8x1xf32>
    %cst_70 = arith.constant 3.200000e+01 : f32
    %165 = vector.broadcast %cst_70 : f32 to vector<4x8x1xf32>
    %166 = arith.divf %164, %165 : vector<4x8x1xf32>
    %167 = vector.broadcast %159 : vector<4x8x1xf32> to vector<4x8x32xf32>
    %168 = arith.subf %155, %167 : vector<4x8x32xf32>
    %cst_71 = arith.constant 9.99999974E-6 : f32
    %169 = vector.broadcast %cst_71 : f32 to vector<4x8x1xf32>
    %170 = arith.addf %166, %169 : vector<4x8x1xf32>
    %171 = math.rsqrt %170 : vector<4x8x1xf32>
    %172 = vector.broadcast %171 : vector<4x8x1xf32> to vector<4x8x32xf32>
    %173 = arith.mulf %168, %172 : vector<4x8x32xf32>
    %174 = vector.shape_cast %11 : vector<1x32xf32> to vector<1x1x32xf32>
    %175 = vector.broadcast %174 : vector<1x1x32xf32> to vector<4x8x32xf32>
    %176 = arith.mulf %173, %175 : vector<4x8x32xf32>
    %177 = vector.shape_cast %12 : vector<1x32xf32> to vector<1x1x32xf32>
    %178 = vector.broadcast %177 : vector<1x1x32xf32> to vector<4x8x32xf32>
    %179 = arith.addf %176, %178 : vector<4x8x32xf32>
    %180 = vector.broadcast %142 : vector<4x8x1xf32> to vector<4x8x32xf32>
    %181 = arith.mulf %179, %180 : vector<4x8x32xf32>
    %cst_72 = arith.constant dense<0.000000e+00> : vector<4x32xf32>
    %182 = vector.multi_reduction <add>, %181, %cst_72 [1] : vector<4x8x32xf32> to vector<4x32xf32>
    %183 = vector.shape_cast %182 : vector<4x32xf32> to vector<4x1x32xf32>
    %184 = arith.addf %60, %183 : vector<4x1x32xf32>
    %c1 = arith.constant 1 : index
    %c0_73 = arith.constant 0 : index
    %c0_74 = arith.constant 0 : index
    %c0_75 = arith.constant 0 : index
    %185 = vector.load %arg8[%c1, %c0_73, %c0_74, %c0_75] : memref<2x4x8x8xbf16, #tpu.memory_space<vmem>>, vector<1x4x8x8xbf16>
    %186 = vector.shape_cast %185 : vector<1x4x8x8xbf16> to vector<4x8x8xbf16>
    %187 = arith.extf %186 : vector<4x8x8xbf16> to vector<4x8x8xf32>
    %188 = arith.mulf %187, %44 : vector<4x8x8xf32>
    %189 = arith.addf %36, %188 : vector<4x8x8xf32>
    %cst_76 = arith.constant -1.000000e+10 : f32
    %190 = vector.broadcast %cst_76 : f32 to vector<4x8x8xf32>
    %191 = arith.select %49, %190, %189 : vector<4x8x8xi1>, vector<4x8x8xf32>
    %cst_77 = arith.constant 0.000000e+00 : f32
    %192 = vector.broadcast %cst_77 : f32 to vector<4x8x8xf32>
    %cst_78 = arith.constant dense<0xFF800000> : vector<4x8xf32>
    %193 = vector.multi_reduction <maximumf>, %191, %cst_78 [2] : vector<4x8x8xf32> to vector<4x8xf32>
    %194 = vector.shape_cast %193 : vector<4x8xf32> to vector<4x8x1xf32>
    %195 = vector.broadcast %194 : vector<4x8x1xf32> to vector<4x8x8xf32>
    %196 = arith.cmpf oeq, %191, %195 : vector<4x8x8xf32>
    %c8_i32_79 = arith.constant 8 : i32
    %197 = vector.broadcast %c8_i32_79 : i32 to vector<4x8x8xi32>
    %198 = arith.select %196, %50, %197 : vector<4x8x8xi1>, vector<4x8x8xi32>
    %cst_80 = arith.constant dense<2147483647> : vector<4x8xi32>
    %199 = vector.multi_reduction <minsi>, %198, %cst_80 [2] : vector<4x8x8xi32> to vector<4x8xi32>
    %200 = vector.shape_cast %199 : vector<4x8xi32> to vector<4x8x1xi32>
    %201 = vector.broadcast %200 : vector<4x8x1xi32> to vector<4x8x8xi32>
    %202 = arith.cmpi eq, %50, %201 : vector<4x8x8xi32>
    %203 = arith.extui %202 : vector<4x8x8xi1> to vector<4x8x8xi32>
    %204 = arith.sitofp %203 : vector<4x8x8xi32> to vector<4x8x8xf32>
    %205 = arith.maximumf %192, %204 : vector<4x8x8xf32>
    %cst_81 = arith.constant -3.000000e+38 : f32
    %206 = vector.broadcast %cst_81 : f32 to vector<4x8x8xf32>
    %207 = arith.select %202, %206, %191 : vector<4x8x8xi1>, vector<4x8x8xf32>
    %cst_82 = arith.constant dense<0xFF800000> : vector<4x8xf32>
    %208 = vector.multi_reduction <maximumf>, %207, %cst_82 [2] : vector<4x8x8xf32> to vector<4x8xf32>
    %209 = vector.shape_cast %208 : vector<4x8xf32> to vector<4x8x1xf32>
    %210 = vector.broadcast %209 : vector<4x8x1xf32> to vector<4x8x8xf32>
    %211 = arith.cmpf oeq, %207, %210 : vector<4x8x8xf32>
    %c8_i32_83 = arith.constant 8 : i32
    %212 = vector.broadcast %c8_i32_83 : i32 to vector<4x8x8xi32>
    %213 = arith.select %211, %50, %212 : vector<4x8x8xi1>, vector<4x8x8xi32>
    %cst_84 = arith.constant dense<2147483647> : vector<4x8xi32>
    %214 = vector.multi_reduction <minsi>, %213, %cst_84 [2] : vector<4x8x8xi32> to vector<4x8xi32>
    %215 = vector.shape_cast %214 : vector<4x8xi32> to vector<4x8x1xi32>
    %216 = vector.broadcast %215 : vector<4x8x1xi32> to vector<4x8x8xi32>
    %217 = arith.cmpi eq, %50, %216 : vector<4x8x8xi32>
    %218 = arith.extui %217 : vector<4x8x8xi1> to vector<4x8x8xi32>
    %219 = arith.sitofp %218 : vector<4x8x8xi32> to vector<4x8x8xf32>
    %220 = arith.maximumf %205, %219 : vector<4x8x8xf32>
    %cst_85 = arith.constant -3.000000e+38 : f32
    %221 = vector.broadcast %cst_85 : f32 to vector<4x8x8xf32>
    %222 = arith.select %217, %221, %207 : vector<4x8x8xi1>, vector<4x8x8xf32>
    %cst_86 = arith.constant dense<0xFF800000> : vector<4x8xf32>
    %223 = vector.multi_reduction <maximumf>, %222, %cst_86 [2] : vector<4x8x8xf32> to vector<4x8xf32>
    %224 = vector.shape_cast %223 : vector<4x8xf32> to vector<4x8x1xf32>
    %225 = vector.broadcast %224 : vector<4x8x1xf32> to vector<4x8x8xf32>
    %226 = arith.cmpf oeq, %222, %225 : vector<4x8x8xf32>
    %c8_i32_87 = arith.constant 8 : i32
    %227 = vector.broadcast %c8_i32_87 : i32 to vector<4x8x8xi32>
    %228 = arith.select %226, %50, %227 : vector<4x8x8xi1>, vector<4x8x8xi32>
    %cst_88 = arith.constant dense<2147483647> : vector<4x8xi32>
    %229 = vector.multi_reduction <minsi>, %228, %cst_88 [2] : vector<4x8x8xi32> to vector<4x8xi32>
    %230 = vector.shape_cast %229 : vector<4x8xi32> to vector<4x8x1xi32>
    %231 = vector.broadcast %230 : vector<4x8x1xi32> to vector<4x8x8xi32>
    %232 = arith.cmpi eq, %50, %231 : vector<4x8x8xi32>
    %233 = arith.extui %232 : vector<4x8x8xi1> to vector<4x8x8xi32>
    %234 = arith.sitofp %233 : vector<4x8x8xi32> to vector<4x8x8xf32>
    %235 = arith.maximumf %220, %234 : vector<4x8x8xf32>
    %cst_89 = arith.constant -1.000000e+10 : f32
    %236 = vector.broadcast %cst_89 : f32 to vector<4x8x8xf32>
    %237 = arith.cmpf ogt, %191, %236 : vector<4x8x8xf32>
    %238 = arith.extui %237 : vector<4x8x8xi1> to vector<4x8x8xi32>
    %239 = arith.sitofp %238 : vector<4x8x8xi32> to vector<4x8x8xf32>
    %240 = arith.mulf %235, %239 : vector<4x8x8xf32>
    %241 = arith.truncf %240 : vector<4x8x8xf32> to vector<4x8x8xbf16>
    "tpu.trace_start"() <{level = 10 : i32, message = "bik,bjk->bij"}> : () -> ()
    %cst_90 = arith.constant dense<0.000000e+00> : vector<4x8x8xf32>
    %242 = tpu.matmul %59, %241, %cst_90 {dimension_numbers = #tpu.dot_dimension_numbers<[2], [2], [1], [1], [0, 0, 0, 1, 1, 1], [0], [0]>} : vector<4x8x8xbf16>, vector<4x8x8xbf16>, vector<4x8x8xf32> -> vector<4x8x8xf32>
    "tpu.trace_stop"() : () -> ()
    %cst_91 = arith.constant dense<0xFF800000> : vector<4x8xf32>
    %243 = vector.multi_reduction <maximumf>, %191, %cst_91 [2] : vector<4x8x8xf32> to vector<4x8xf32>
    %244 = vector.shape_cast %243 : vector<4x8xf32> to vector<4x8x1xf32>
    %245 = vector.broadcast %244 : vector<4x8x1xf32> to vector<4x8x8xf32>
    %246 = arith.subf %191, %245 : vector<4x8x8xf32>
    %247 = math.exp %246 : vector<4x8x8xf32>
    %cst_92 = arith.constant dense<0.000000e+00> : vector<4x8xf32>
    %248 = vector.multi_reduction <add>, %247, %cst_92 [2] : vector<4x8x8xf32> to vector<4x8xf32>
    %249 = vector.shape_cast %248 : vector<4x8xf32> to vector<4x8x1xf32>
    %250 = tpu.reciprocal %249 {approx = true} : vector<4x8x1xf32> -> vector<4x8x1xf32>
    %251 = vector.broadcast %250 : vector<4x8x1xf32> to vector<4x8x8xf32>
    %252 = arith.mulf %247, %251 : vector<4x8x8xf32>
    %253 = arith.mulf %242, %252 : vector<4x8x8xf32>
    %254 = arith.truncf %253 : vector<4x8x8xf32> to vector<4x8x8xbf16>
    "tpu.trace_start"() <{level = 10 : i32, message = "blm,bmd->bld"}> : () -> ()
    %cst_93 = arith.constant dense<0.000000e+00> : vector<4x8x32xf32>
    %255 = tpu.matmul %254, %7, %cst_93 {dimension_numbers = #tpu.dot_dimension_numbers<[2], [1], [1], [2], [0, 0, 0, 1, 1, 2], [0], [0]>} : vector<4x8x8xbf16>, vector<4x8x32xbf16>, vector<4x8x32xf32> -> vector<4x8x32xf32>
    "tpu.trace_stop"() : () -> ()
    %cst_94 = arith.constant dense<0.000000e+00> : vector<4x8xf32>
    %256 = vector.multi_reduction <add>, %253, %cst_94 [2] : vector<4x8x8xf32> to vector<4x8xf32>
    %257 = vector.shape_cast %256 : vector<4x8xf32> to vector<4x8x1xf32>
    %258 = arith.mulf %257, %257 : vector<4x8x1xf32>
    %cst_95 = arith.constant dense<0.000000e+00> : vector<4x1xf32>
    %259 = vector.multi_reduction <add>, %258, %cst_95 [1] : vector<4x8x1xf32> to vector<4x1xf32>
    %260 = vector.shape_cast %259 : vector<4x1xf32> to vector<4x1x1xf32>
    %261 = math.sqrt %260 : vector<4x1x1xf32>
    %cst_96 = arith.constant 9.99999996E-13 : f32
    %262 = vector.broadcast %cst_96 : f32 to vector<4x1x1xf32>
    %263 = arith.maximumf %261, %262 : vector<4x1x1xf32>
    %264 = tpu.reciprocal %263 {approx = true} : vector<4x1x1xf32> -> vector<4x1x1xf32>
    %265 = vector.broadcast %264 : vector<4x1x1xf32> to vector<4x8x1xf32>
    %266 = arith.mulf %257, %265 : vector<4x8x1xf32>
    %267 = vector.broadcast %56 : vector<4x1x1xf32> to vector<4x8x32xf32>
    %268 = arith.mulf %255, %267 : vector<4x8x32xf32>
    %269 = arith.truncf %268 : vector<4x8x32xf32> to vector<4x8x32xbf16>
    "tpu.trace_start"() <{level = 10 : i32, message = "bld,bdk->blk"}> : () -> ()
    %cst_97 = arith.constant dense<0.000000e+00> : vector<4x8x32xf32>
    %270 = tpu.matmul %269, %15, %cst_97 {dimension_numbers = #tpu.dot_dimension_numbers<[2], [1], [1], [2], [0, 0, 0, 1, 1, 2], [0], [0]>} : vector<4x8x32xbf16>, vector<4x32x32xbf16>, vector<4x8x32xf32> -> vector<4x8x32xf32>
    "tpu.trace_stop"() : () -> ()
    %271 = vector.shape_cast %9 : vector<1x32xf32> to vector<1x1x32xf32>
    %272 = vector.broadcast %271 : vector<1x1x32xf32> to vector<4x8x32xf32>
    %273 = arith.addf %270, %272 : vector<4x8x32xf32>
    %cst_98 = arith.constant 0.000000e+00 : f32
    %274 = vector.broadcast %cst_98 : f32 to vector<4x8x32xf32>
    %275 = arith.maximumf %273, %274 : vector<4x8x32xf32>
    %276 = arith.truncf %275 : vector<4x8x32xf32> to vector<4x8x32xbf16>
    "tpu.trace_start"() <{level = 10 : i32, message = "bld,bdk->blk"}> : () -> ()
    %cst_99 = arith.constant dense<0.000000e+00> : vector<4x8x32xf32>
    %277 = tpu.matmul %276, %18, %cst_99 {dimension_numbers = #tpu.dot_dimension_numbers<[2], [1], [1], [2], [0, 0, 0, 1, 1, 2], [0], [0]>} : vector<4x8x32xbf16>, vector<4x32x32xbf16>, vector<4x8x32xf32> -> vector<4x8x32xf32>
    "tpu.trace_stop"() : () -> ()
    %278 = vector.shape_cast %10 : vector<1x32xf32> to vector<1x1x32xf32>
    %279 = vector.broadcast %278 : vector<1x1x32xf32> to vector<4x8x32xf32>
    %280 = arith.addf %277, %279 : vector<4x8x32xf32>
    %281 = arith.addf %280, %268 : vector<4x8x32xf32>
    %cst_100 = arith.constant dense<0.000000e+00> : vector<4x8xf32>
    %282 = vector.multi_reduction <add>, %281, %cst_100 [2] : vector<4x8x32xf32> to vector<4x8xf32>
    %283 = vector.shape_cast %282 : vector<4x8xf32> to vector<4x8x1xf32>
    %cst_101 = arith.constant 3.200000e+01 : f32
    %284 = vector.broadcast %cst_101 : f32 to vector<4x8x1xf32>
    %285 = arith.divf %283, %284 : vector<4x8x1xf32>
    %286 = vector.broadcast %285 : vector<4x8x1xf32> to vector<4x8x32xf32>
    %287 = arith.subf %281, %286 : vector<4x8x32xf32>
    %288 = arith.mulf %287, %287 : vector<4x8x32xf32>
    %cst_102 = arith.constant dense<0.000000e+00> : vector<4x8xf32>
    %289 = vector.multi_reduction <add>, %288, %cst_102 [2] : vector<4x8x32xf32> to vector<4x8xf32>
    %290 = vector.shape_cast %289 : vector<4x8xf32> to vector<4x8x1xf32>
    %cst_103 = arith.constant 3.200000e+01 : f32
    %291 = vector.broadcast %cst_103 : f32 to vector<4x8x1xf32>
    %292 = arith.divf %290, %291 : vector<4x8x1xf32>
    %293 = vector.broadcast %285 : vector<4x8x1xf32> to vector<4x8x32xf32>
    %294 = arith.subf %281, %293 : vector<4x8x32xf32>
    %cst_104 = arith.constant 9.99999974E-6 : f32
    %295 = vector.broadcast %cst_104 : f32 to vector<4x8x1xf32>
    %296 = arith.addf %292, %295 : vector<4x8x1xf32>
    %297 = math.rsqrt %296 : vector<4x8x1xf32>
    %298 = vector.broadcast %297 : vector<4x8x1xf32> to vector<4x8x32xf32>
    %299 = arith.mulf %294, %298 : vector<4x8x32xf32>
    %300 = vector.shape_cast %11 : vector<1x32xf32> to vector<1x1x32xf32>
    %301 = vector.broadcast %300 : vector<1x1x32xf32> to vector<4x8x32xf32>
    %302 = arith.mulf %299, %301 : vector<4x8x32xf32>
    %303 = vector.shape_cast %12 : vector<1x32xf32> to vector<1x1x32xf32>
    %304 = vector.broadcast %303 : vector<1x1x32xf32> to vector<4x8x32xf32>
    %305 = arith.addf %302, %304 : vector<4x8x32xf32>
    %306 = vector.broadcast %266 : vector<4x8x1xf32> to vector<4x8x32xf32>
    %307 = arith.mulf %305, %306 : vector<4x8x32xf32>
    %cst_105 = arith.constant dense<0.000000e+00> : vector<4x32xf32>
    %308 = vector.multi_reduction <add>, %307, %cst_105 [1] : vector<4x8x32xf32> to vector<4x32xf32>
    %309 = vector.shape_cast %308 : vector<4x32xf32> to vector<4x1x32xf32>
    %310 = arith.addf %184, %309 : vector<4x1x32xf32>
    %c0_106 = arith.constant 0 : index
    %c0_107 = arith.constant 0 : index
    %c0_108 = arith.constant 0 : index
    %311 = vector.load %arg15[%c0_106, %c0_107, %c0_108] : memref<4x1x32xf32, #tpu.memory_space<vmem>>, vector<4x1x32xf32>
    tpu.vector_store %arg15[%c0_106, %c0_107, %c0_108], %310 {strides = array<i32>} : memref<4x1x32xf32, #tpu.memory_space<vmem>>, vector<4x1x32xf32>,
    return
  }
  func.func @transform_0(%arg0: i32) -> (i32, i32, i32) {
    %c0_i32 = arith.constant 0 : i32
    %c0_i32_0 = arith.constant 0 : i32
    %c0_i32_1 = arith.constant 0 : i32
    return %arg0, %c0_i32, %c0_i32_0 : i32, i32, i32
  }
  func.func @transform_1(%arg0: i32) -> (i32, i32, i32) {
    %c0_i32 = arith.constant 0 : i32
    %c0_i32_0 = arith.constant 0 : i32
    %c0_i32_1 = arith.constant 0 : i32
    return %arg0, %c0_i32, %c0_i32_0 : i32, i32, i32
  }
  func.func @transform_2(%arg0: i32) -> (i32, i32, i32) {
    %c0_i32 = arith.constant 0 : i32
    %c0_i32_0 = arith.constant 0 : i32
    %c0_i32_1 = arith.constant 0 : i32
    return %arg0, %c0_i32, %c0_i32_0 : i32, i32, i32
  }
  func.func @transform_3(%arg0: i32) -> (i32, i32, i32) {
    %c0_i32 = arith.constant 0 : i32
    %c0_i32_0 = arith.constant 0 : i32
    %c0_i32_1 = arith.constant 0 : i32
    return %arg0, %c0_i32, %c0_i32_0 : i32, i32, i32
  }
  func.func @transform_4(%arg0: i32) -> (i32, i32, i32) {
    %c0_i32 = arith.constant 0 : i32
    %c0_i32_0 = arith.constant 0 : i32
    %c0_i32_1 = arith.constant 0 : i32
    return %arg0, %c0_i32, %c0_i32_0 : i32, i32, i32
  }
  func.func @transform_5(%arg0: i32) -> (i32, i32, i32) {
    %c0_i32 = arith.constant 0 : i32
    %c0_i32_0 = arith.constant 0 : i32
    %c0_i32_1 = arith.constant 0 : i32
    return %arg0, %c0_i32, %c0_i32_0 : i32, i32, i32
  }
  func.func @transform_6(%arg0: i32) -> (i32, i32, i32) {
    %c0_i32 = arith.constant 0 : i32
    %c0_i32_0 = arith.constant 0 : i32
    %c0_i32_1 = arith.constant 0 : i32
    return %arg0, %c0_i32, %c0_i32_0 : i32, i32, i32
  }
  func.func @transform_7(%arg0: i32) -> (i32, i32, i32, i32) {
    %c0_i32 = arith.constant 0 : i32
    %c0_i32_0 = arith.constant 0 : i32
    %c0_i32_1 = arith.constant 0 : i32
    %c0_i32_2 = arith.constant 0 : i32
    return %c0_i32, %arg0, %c0_i32_0, %c0_i32_1 : i32, i32, i32, i32
  }
  func.func @transform_8(%arg0: i32) -> (i32, i32) {
    %c0_i32 = arith.constant 0 : i32
    %c0_i32_0 = arith.constant 0 : i32
    %c0_i32_1 = arith.constant 0 : i32
    return %c0_i32, %c0_i32_0 : i32, i32
  }
  func.func @transform_9(%arg0: i32) -> (i32, i32) {
    %c0_i32 = arith.constant 0 : i32
    %c0_i32_0 = arith.constant 0 : i32
    %c0_i32_1 = arith.constant 0 : i32
    return %c0_i32, %c0_i32_0 : i32, i32
  }
  func.func @transform_10(%arg0: i32) -> (i32, i32) {
    %c0_i32 = arith.constant 0 : i32
    %c0_i32_0 = arith.constant 0 : i32
    %c0_i32_1 = arith.constant 0 : i32
    return %c0_i32, %c0_i32_0 : i32, i32
  }
  func.func @transform_11(%arg0: i32) -> (i32, i32) {
    %c0_i32 = arith.constant 0 : i32
    %c0_i32_0 = arith.constant 0 : i32
    %c0_i32_1 = arith.constant 0 : i32
    return %c0_i32, %c0_i32_0 : i32, i32
  }
  func.func @transform_12(%arg0: i32) -> (i32, i32) {
    %c0_i32 = arith.constant 0 : i32
    %c0_i32_0 = arith.constant 0 : i32
    %c0_i32_1 = arith.constant 0 : i32
    return %c0_i32, %c0_i32_0 : i32, i32
  }
  func.func @transform_13(%arg0: i32) -> (i32, i32) {
    %c0_i32 = arith.constant 0 : i32
    %c0_i32_0 = arith.constant 0 : i32
    %c0_i32_1 = arith.constant 0 : i32
    return %c0_i32, %c0_i32_0 : i32, i32
  }
  func.func @transform_14(%arg0: i32) -> (i32, i32, i32) {
    %c0_i32 = arith.constant 0 : i32
    %c0_i32_0 = arith.constant 0 : i32
    %c0_i32_1 = arith.constant 0 : i32
    return %arg0, %c0_i32, %c0_i32_0 : i32, i32, i32
  }
}

</mosaic_0001>

<llo_original>
// kernel: tpu_custom_call.1
$region0: #{tpu_custom_call.1}
  #allocation0 [shape = 'u32[]', space=smem, size = 0x4, offset = 0x4, fixed_abs, tag = 'smem constant byte address 0x4 - core index']
  #allocation1 [shape = 'u32[144,128]{1,0:T(1,128)}', space=vmem, size = 0x12000, scoped, tag = 'internal scratch']
  %s0 = inlined_call_operand.vmem [shape: f32[8,8,32], index: 0, kind: input, shape index: {}]
  %s1 = inlined_call_operand.vmem [shape: f32[8,8,32], index: 1, kind: input, shape index: {}]
  %s2 = inlined_call_operand.vmem [shape: f32[8,8,1], index: 2, kind: input, shape index: {}]
  %s3 = inlined_call_operand.vmem [shape: f32[8,8,1], index: 3, kind: input, shape index: {}]
  %s4 = inlined_call_operand.hbm [shape: f32[8,1,8], index: 4, kind: input, shape index: {}]
  %s5 = inlined_call_operand.hbm [shape: f32[8,1,8], index: 5, kind: input, shape index: {}]
  %s6 = inlined_call_operand.vmem [shape: f32[8,8,1], index: 6, kind: input, shape index: {}]
  %s7 = inlined_call_operand.vmem [shape: bf16[2,8,8,8], index: 7, kind: input, shape index: {}]
  %s8 = inlined_call_operand.vmem [shape: bf16[32,32], index: 8, kind: input, shape index: {}]
  %s9 = inlined_call_operand.vmem [shape: f32[1,32], index: 9, kind: input, shape index: {}]
  %s10 = inlined_call_operand.vmem [shape: bf16[32,32], index: 10, kind: input, shape index: {}]
  %s11 = inlined_call_operand.vmem [shape: f32[1,32], index: 11, kind: input, shape index: {}]
  %s12 = inlined_call_operand.vmem [shape: f32[1,32], index: 12, kind: input, shape index: {}]
  %s13 = inlined_call_operand.vmem [shape: f32[1,32], index: 13, kind: input, shape index: {}]
  %s14 = inlined_call_operand.hbm [shape: f32[8,1,32], index: 14, kind: output, shape index: {}]
  %s15 = sld [smem:[#allocation0]]
  $region138: #{tpu_custom_call.1} parent=0
    _
  %s17 = ssub.s32 1, %s15
  %s18 = scalar_select 0, %s17, %s15
  $region1: #{tpu_custom_call.1} parent=0
    #allocation2 [shape = 'u8[4096]{0}', space=vmem, size = 0x1000, scoped, tag = 'input window, operand 4']
    #allocation3 [shape = 's32[2]{0}', space=sflag, size = 0x8, scoped, tag = 'scoped memory for tpu_custom_call.1']
    #allocation4 [shape = 's32[2]{0}', space=sflag, size = 0x8, scoped, tag = 'scoped memory for tpu_custom_call.1']
    #allocation5 [shape = 'u8[4096]{0}', space=vmem, size = 0x1000, scoped, tag = 'input window, operand 5']
    #allocation6 [shape = 's32[2]{0}', space=sflag, size = 0x8, scoped, tag = 'scoped memory for tpu_custom_call.1']
    #allocation7 [shape = 'u8[32768]{0}', space=vmem, size = 0x8000, scoped, tag = 'input window, operand 7']
    #allocation8 [shape = 'u8[4096]{0}', space=vmem, size = 0x1000, scoped, tag = 'output window, operand 0']
    %19 = vsyncpa [#allocation3], 0
    %s20 = scalar_lea.sflag [#allocation3], 1
    %21 = vsyncpa %s20, 0
    %22 = vsyncpa [#allocation6], 0
    %s23 = scalar_lea.sflag [#allocation6], 1
    %24 = vsyncpa %s23, 0
    %25 = vsyncpa [#allocation4], 0
    %s26 = scalar_lea.sflag [#allocation4], 1
    %27 = vsyncpa %s26, 0
    loop: start=0, step=1, limit=4
    $region2: #{tpu_custom_call.1} parent=1 // loop_pre_header
      _
    $region3: #{tpu_custom_call.1} parent=1 // loop_header
      %s29 = sphi 0, %s33
      %p30 = scmp.ge.s32.totalorder %s29, 4
      %s39 = sphi 0, %s41
      %s42 = sphi 0, %s39
      %s43 = sphi 0, %s42
      %s59 = sphi 0, %s43
      %s65 = sphi 0, %s67
      %s68 = sphi 0, %s65
      %s69 = sphi 0, %s68
      %s85 = sphi 0, %s69
      %s91 = sphi 0, %s93
      %s94 = sphi 0, %s91
      %s95 = sphi 0, %s94
      %s111 = sphi 0, %s95
      %s117 = sphi 0, %s119
      %s120 = sphi 0, %s117
      %s121 = sphi 0, %s120
      %s137 = sphi 0, %s121
      %s143 = sphi 0, %s145
      %s146 = sphi 0, %s143
      %s147 = sphi 0, %s146
      %s163 = sphi 0, %s147
      %s169 = sphi 0, %s171
      %s172 = sphi 0, %s169
      %s173 = sphi 0, %s172
      %s189 = sphi 0, %s173
      %s195 = sphi 0, %s197
      %s198 = sphi 0, %s195
      %s199 = sphi 0, %s198
      %s215 = sphi 0, %s199
      %s221 = sphi 0, %s223
      %s224 = sphi 0, %s221
      %s225 = sphi 0, %s224
      %s241 = sphi 0, %s225
      %s245 = sphi 0, %s245
      %s247 = sphi 0, %s245
      %s248 = sphi 0, %s247
      %s262 = sphi 0, %s248
      %s266 = sphi 0, %s266
      %s268 = sphi 0, %s266
      %s269 = sphi 0, %s268
      %s283 = sphi 0, %s269
      %s287 = sphi 0, %s287
      %s289 = sphi 0, %s287
      %s290 = sphi 0, %s289
      %s304 = sphi 0, %s290
      %s308 = sphi 0, %s308
      %s310 = sphi 0, %s308
      %s311 = sphi 0, %s310
      %s325 = sphi 0, %s311
      %s329 = sphi 0, %s329
      %s331 = sphi 0, %s329
      %s332 = sphi 0, %s331
      %s346 = sphi 0, %s332
      %s350 = sphi 0, %s350
      %s352 = sphi 0, %s350
      %s353 = sphi 0, %s352
      %s367 = sphi 0, %s353
      %s373 = sphi 0, %s375
      %s376 = sphi 0, %s373
      %s377 = sphi 0, %s376
      %s393 = sphi 0, %s377
    $region4: #{tpu_custom_call.1} parent=1 // loop_header_branch
      %32 = sbr.rel (%p30) target = $region8
    $region5: #{tpu_custom_call.1} parent=1 // loop_body
      %s34 = ssub.s32 %s29, 1
      %s35 = ssub.s32 %s29, 2
      %s36 = sadd.s32 %s29, 1
      %s37 = ssub.s32 %s29, %s36
      %p38 = scmp.eq.s32.totalorder %s37, 0
      %s40 = sadd.s32 %s39, 1
      %s41 = scalar_select %p38, %s39, %s40
      %p44 = pneg %p38
      %p45 = scmp.eq.s32.totalorder %s29, 1
      %p46 = por %p44, %p45
      %p47 = scmp.ne.s32.totalorder %s39, %s42
      %p48 = scmp.eq.s32.totalorder %s29, 0
      %p49 = por %p47, %p48
      %p50 = scmp.ne.s32.totalorder %s39, %s42
      %p51 = scmp.eq.s32.totalorder %s34, 1
      %p52 = por %p50, %p51
      %p53 = scmp.ne.s32.totalorder %s42, %s43
      %p54 = scmp.eq.s32.totalorder %s34, 0
      %p55 = por %p53, %p54
      %p56 = scmp.ne.s32.totalorder %s42, %s43
      %p57 = scmp.eq.s32.totalorder %s35, 1
      %p58 = por %p56, %p57
      %p60 = scmp.ne.s32.totalorder %s43, %s59
      %p61 = scmp.eq.s32.totalorder %s35, 0
      %p62 = por %p60, %p61
      %s63 = ssub.s32 %s29, %s36
      %p64 = scmp.eq.s32.totalorder %s63, 0
      %s66 = sadd.s32 %s65, 1
      %s67 = scalar_select %p64, %s65, %s66
      %p70 = pneg %p64
      %p71 = scmp.eq.s32.totalorder %s29, 1
      %p72 = por %p70, %p71
      %p73 = scmp.ne.s32.totalorder %s65, %s68
      %p74 = scmp.eq.s32.totalorder %s29, 0
      %p75 = por %p73, %p74
      %p76 = scmp.ne.s32.totalorder %s65, %s68
      %p77 = scmp.eq.s32.totalorder %s34, 1
      %p78 = por %p76, %p77
      %p79 = scmp.ne.s32.totalorder %s68, %s69
      %p80 = scmp.eq.s32.totalorder %s34, 0
      %p81 = por %p79, %p80
      %p82 = scmp.ne.s32.totalorder %s68, %s69
      %p83 = scmp.eq.s32.totalorder %s35, 1
      %p84 = por %p82, %p83
      %p86 = scmp.ne.s32.totalorder %s69, %s85
      %p87 = scmp.eq.s32.totalorder %s35, 0
      %p88 = por %p86, %p87
      %s89 = ssub.s32 %s29, %s36
      %p90 = scmp.eq.s32.totalorder %s89, 0
      %s92 = sadd.s32 %s91, 1
      %s93 = scalar_select %p90, %s91, %s92
      %p96 = pneg %p90
      %p97 = scmp.eq.s32.totalorder %s29, 1
      %p98 = por %p96, %p97
      %p99 = scmp.ne.s32.totalorder %s91, %s94
      %p100 = scmp.eq.s32.totalorder %s29, 0
      %p101 = por %p99, %p100
      %p102 = scmp.ne.s32.totalorder %s91, %s94
      %p103 = scmp.eq.s32.totalorder %s34, 1
      %p104 = por %p102, %p103
      %p105 = scmp.ne.s32.totalorder %s94, %s95
      %p106 = scmp.eq.s32.totalorder %s34, 0
      %p107 = por %p105, %p106
      %p108 = scmp.ne.s32.totalorder %s94, %s95
      %p109 = scmp.eq.s32.totalorder %s35, 1
      %p110 = por %p108, %p109
      %p112 = scmp.ne.s32.totalorder %s95, %s111
      %p113 = scmp.eq.s32.totalorder %s35, 0
      %p114 = por %p112, %p113
      %s115 = ssub.s32 %s29, %s36
      %p116 = scmp.eq.s32.totalorder %s115, 0
      %s118 = sadd.s32 %s117, 1
      %s119 = scalar_select %p116, %s117, %s118
      %p122 = pneg %p116
      %p123 = scmp.eq.s32.totalorder %s29, 1
      %p124 = por %p122, %p123
      %p125 = scmp.ne.s32.totalorder %s117, %s120
      %p126 = scmp.eq.s32.totalorder %s29, 0
      %p127 = por %p125, %p126
      %p128 = scmp.ne.s32.totalorder %s117, %s120
      %p129 = scmp.eq.s32.totalorder %s34, 1
      %p130 = por %p128, %p129
      %p131 = scmp.ne.s32.totalorder %s120, %s121
      %p132 = scmp.eq.s32.totalorder %s34, 0
      %p133 = por %p131, %p132
      %p134 = scmp.ne.s32.totalorder %s120, %s121
      %p135 = scmp.eq.s32.totalorder %s35, 1
      %p136 = por %p134, %p135
      %p138 = scmp.ne.s32.totalorder %s121, %s137
      %p139 = scmp.eq.s32.totalorder %s35, 0
      %p140 = por %p138, %p139
      %s141 = ssub.s32 %s29, %s36
      %p142 = scmp.eq.s32.totalorder %s141, 0
      %s144 = sadd.s32 %s143, 1
      %s145 = scalar_select %p142, %s143, %s144
      %p148 = pneg %p142
      %p149 = scmp.eq.s32.totalorder %s29, 1
      %p150 = por %p148, %p149
      %p151 = scmp.ne.s32.totalorder %s143, %s146
      %p152 = scmp.eq.s32.totalorder %s29, 0
      %p153 = por %p151, %p152
      %p154 = scmp.ne.s32.totalorder %s143, %s146
      %p155 = scmp.eq.s32.totalorder %s34, 1
      %p156 = por %p154, %p155
      %p157 = scmp.ne.s32.totalorder %s146, %s147
      %p158 = scmp.eq.s32.totalorder %s34, 0
      %p159 = por %p157, %p158
      %p160 = scmp.ne.s32.totalorder %s146, %s147
      %p161 = scmp.eq.s32.totalorder %s35, 1
      %p162 = por %p160, %p161
      %p164 = scmp.ne.s32.totalorder %s147, %s163
      %p165 = scmp.eq.s32.totalorder %s35, 0
      %p166 = por %p164, %p165
      %s167 = ssub.s32 %s29, %s36
      %p168 = scmp.eq.s32.totalorder %s167, 0
      %s170 = sadd.s32 %s169, 1
      %s171 = scalar_select %p168, %s169, %s170
      %p174 = pneg %p168
      %p175 = scmp.eq.s32.totalorder %s29, 1
      %p176 = por %p174, %p175
      %p177 = scmp.ne.s32.totalorder %s169, %s172
      %p178 = scmp.eq.s32.totalorder %s29, 0
      %p179 = por %p177, %p178
      %p180 = scmp.ne.s32.totalorder %s169, %s172
      %p181 = scmp.eq.s32.totalorder %s34, 1
      %p182 = por %p180, %p181
      %p183 = scmp.ne.s32.totalorder %s172, %s173
      %p184 = scmp.eq.s32.totalorder %s34, 0
      %p185 = por %p183, %p184
      %p186 = scmp.ne.s32.totalorder %s172, %s173
      %p187 = scmp.eq.s32.totalorder %s35, 1
      %p188 = por %p186, %p187
      %p190 = scmp.ne.s32.totalorder %s173, %s189
      %p191 = scmp.eq.s32.totalorder %s35, 0
      %p192 = por %p190, %p191
      %s193 = ssub.s32 %s29, %s36
      %p194 = scmp.eq.s32.totalorder %s193, 0
      %s196 = sadd.s32 %s195, 1
      %s197 = scalar_select %p194, %s195, %s196
      %p200 = pneg %p194
      %p201 = scmp.eq.s32.totalorder %s29, 1
      %p202 = por %p200, %p201
      %p203 = scmp.ne.s32.totalorder %s195, %s198
      %p204 = scmp.eq.s32.totalorder %s29, 0
      %p205 = por %p203, %p204
      %p206 = scmp.ne.s32.totalorder %s195, %s198
      %p207 = scmp.eq.s32.totalorder %s34, 1
      %p208 = por %p206, %p207
      %p209 = scmp.ne.s32.totalorder %s198, %s199
      %p210 = scmp.eq.s32.totalorder %s34, 0
      %p211 = por %p209, %p210
      %p212 = scmp.ne.s32.totalorder %s198, %s199
      %p213 = scmp.eq.s32.totalorder %s35, 1
      %p214 = por %p212, %p213
      %p216 = scmp.ne.s32.totalorder %s199, %s215
      %p217 = scmp.eq.s32.totalorder %s35, 0
      %p218 = por %p216, %p217
      %s219 = ssub.s32 %s29, %s36
      %p220 = scmp.eq.s32.totalorder %s219, 0
      %s222 = sadd.s32 %s221, 1
      %s223 = scalar_select %p220, %s221, %s222
      %p226 = pneg %p220
      %p227 = scmp.eq.s32.totalorder %s29, 1
      %p228 = por %p226, %p227
      %p229 = scmp.ne.s32.totalorder %s221, %s224
      %p230 = scmp.eq.s32.totalorder %s29, 0
      %p231 = por %p229, %p230
      %p232 = scmp.ne.s32.totalorder %s221, %s224
      %p233 = scmp.eq.s32.totalorder %s34, 1
      %p234 = por %p232, %p233
      %p235 = scmp.ne.s32.totalorder %s224, %s225
      %p236 = scmp.eq.s32.totalorder %s34, 0
      %p237 = por %p235, %p236
      %p238 = scmp.ne.s32.totalorder %s224, %s225
      %p239 = scmp.eq.s32.totalorder %s35, 1
      %p240 = por %p238, %p239
      %p242 = scmp.ne.s32.totalorder %s225, %s241
      %p243 = scmp.eq.s32.totalorder %s35, 0
      %p244 = por %p242, %p243
      %s246 = sadd.s32 %s245, 1
      %p249 = scmp.eq.s32.totalorder %s29, 1
      %p250 = scmp.ne.s32.totalorder %s245, %s247
      %p251 = scmp.eq.s32.totalorder %s29, 0
      %p252 = por %p250, %p251
      %p253 = scmp.ne.s32.totalorder %s245, %s247
      %p254 = scmp.eq.s32.totalorder %s34, 1
      %p255 = por %p253, %p254
      %p256 = scmp.ne.s32.totalorder %s247, %s248
      %p257 = scmp.eq.s32.totalorder %s34, 0
      %p258 = por %p256, %p257
      %p259 = scmp.ne.s32.totalorder %s247, %s248
      %p260 = scmp.eq.s32.totalorder %s35, 1
      %p261 = por %p259, %p260
      %p263 = scmp.ne.s32.totalorder %s248, %s262
      %p264 = scmp.eq.s32.totalorder %s35, 0
      %p265 = por %p263, %p264
      %s267 = sadd.s32 %s266, 1
      %p270 = scmp.eq.s32.totalorder %s29, 1
      %p271 = scmp.ne.s32.totalorder %s266, %s268
      %p272 = scmp.eq.s32.totalorder %s29, 0
      %p273 = por %p271, %p272
      %p274 = scmp.ne.s32.totalorder %s266, %s268
      %p275 = scmp.eq.s32.totalorder %s34, 1
      %p276 = por %p274, %p275
      %p277 = scmp.ne.s32.totalorder %s268, %s269
      %p278 = scmp.eq.s32.totalorder %s34, 0
      %p279 = por %p277, %p278
      %p280 = scmp.ne.s32.totalorder %s268, %s269
      %p281 = scmp.eq.s32.totalorder %s35, 1
      %p282 = por %p280, %p281
      %p284 = scmp.ne.s32.totalorder %s269, %s283
      %p285 = scmp.eq.s32.totalorder %s35, 0
      %p286 = por %p284, %p285
      %s288 = sadd.s32 %s287, 1
      %p291 = scmp.eq.s32.totalorder %s29, 1
      %p292 = scmp.ne.s32.totalorder %s287, %s289
      %p293 = scmp.eq.s32.totalorder %s29, 0
      %p294 = por %p292, %p293
      %p295 = scmp.ne.s32.totalorder %s287, %s289
      %p296 = scmp.eq.s32.totalorder %s34, 1
      %p297 = por %p295, %p296
      %p298 = scmp.ne.s32.totalorder %s289, %s290
      %p299 = scmp.eq.s32.totalorder %s34, 0
      %p300 = por %p298, %p299
      %p301 = scmp.ne.s32.totalorder %s289, %s290
      %p302 = scmp.eq.s32.totalorder %s35, 1
      %p303 = por %p301, %p302
      %p305 = scmp.ne.s32.totalorder %s290, %s304
      %p306 = scmp.eq.s32.totalorder %s35, 0
      %p307 = por %p305, %p306
      %s309 = sadd.s32 %s308, 1
      %p312 = scmp.eq.s32.totalorder %s29, 1
      %p313 = scmp.ne.s32.totalorder %s308, %s310
      %p314 = scmp.eq.s32.totalorder %s29, 0
      %p315 = por %p313, %p314
      %p316 = scmp.ne.s32.totalorder %s308, %s310
      %p317 = scmp.eq.s32.totalorder %s34, 1
      %p318 = por %p316, %p317
      %p319 = scmp.ne.s32.totalorder %s310, %s311
      %p320 = scmp.eq.s32.totalorder %s34, 0
      %p321 = por %p319, %p320
      %p322 = scmp.ne.s32.totalorder %s310, %s311
      %p323 = scmp.eq.s32.totalorder %s35, 1
      %p324 = por %p322, %p323
      %p326 = scmp.ne.s32.totalorder %s311, %s325
      %p327 = scmp.eq.s32.totalorder %s35, 0
      %p328 = por %p326, %p327
      %s330 = sadd.s32 %s329, 1
      %p333 = scmp.eq.s32.totalorder %s29, 1
      %p334 = scmp.ne.s32.totalorder %s329, %s331
      %p335 = scmp.eq.s32.totalorder %s29, 0
      %p336 = por %p334, %p335
      %p337 = scmp.ne.s32.totalorder %s329, %s331
      %p338 = scmp.eq.s32.totalorder %s34, 1
      %p339 = por %p337, %p338
      %p340 = scmp.ne.s32.totalorder %s331, %s332
      %p341 = scmp.eq.s32.totalorder %s34, 0
      %p342 = por %p340, %p341
      %p343 = scmp.ne.s32.totalorder %s331, %s332
      %p344 = scmp.eq.s32.totalorder %s35, 1
      %p345 = por %p343, %p344
      %p347 = scmp.ne.s32.totalorder %s332, %s346
      %p348 = scmp.eq.s32.totalorder %s35, 0
      %p349 = por %p347, %p348
      %s351 = sadd.s32 %s350, 1
      %p354 = scmp.eq.s32.totalorder %s29, 1
      %p355 = scmp.ne.s32.totalorder %s350, %s352
      %p356 = scmp.eq.s32.totalorder %s29, 0
      %p357 = por %p355, %p356
      %p358 = scmp.ne.s32.totalorder %s350, %s352
      %p359 = scmp.eq.s32.totalorder %s34, 1
      %p360 = por %p358, %p359
      %p361 = scmp.ne.s32.totalorder %s352, %s353
      %p362 = scmp.eq.s32.totalorder %s34, 0
      %p363 = por %p361, %p362
      %p364 = scmp.ne.s32.totalorder %s352, %s353
      %p365 = scmp.eq.s32.totalorder %s35, 1
      %p366 = por %p364, %p365
      %p368 = scmp.ne.s32.totalorder %s353, %s367
      %p369 = scmp.eq.s32.totalorder %s35, 0
      %p370 = por %p368, %p369
      %s371 = ssub.s32 %s29, %s36
      %p372 = scmp.eq.s32.totalorder %s371, 0
      %s374 = sadd.s32 %s373, 1
      %s375 = scalar_select %p372, %s373, %s374
      %p378 = pneg %p372
      %p379 = scmp.eq.s32.totalorder %s29, 1
      %p380 = por %p378, %p379
      %p381 = scmp.ne.s32.totalorder %s373, %s376
      %p382 = scmp.eq.s32.totalorder %s29, 0
      %p383 = por %p381, %p382
      %p384 = scmp.ne.s32.totalorder %s373, %s376
      %p385 = scmp.eq.s32.totalorder %s34, 1
      %p386 = por %p384, %p385
      %p387 = scmp.ne.s32.totalorder %s376, %s377
      %p388 = scmp.eq.s32.totalorder %s34, 0
      %p389 = por %p387, %p388
      %p390 = scmp.ne.s32.totalorder %s376, %s377
      %p391 = scmp.eq.s32.totalorder %s35, 1
      %p392 = por %p390, %p391
      %p394 = scmp.ne.s32.totalorder %s377, %s393
      %p395 = scmp.eq.s32.totalorder %s35, 0
      %p396 = por %p394, %p395
      %p397 = scmp.le.s32.totalorder 1, %s29
      %p398 = scmp.lt.s32.totalorder %s29, 3
      %p399 = pnand %p397, %p398
      %p400 = pneg %p399
      // Predicated region
      $region9: #{tpu_custom_call.1} parent=5 // pred_check
        _
      $region10: #{tpu_custom_call.1} parent=5 // pred_check_branch
        %402 = sbr.rel (%p399) target = $region12
      $region11: #{tpu_custom_call.1} parent=5 // pred_region
        %s403 = ssub.s32 %s29, 1
        // Predicated region
        $region13: #{tpu_custom_call.1} parent=11 // pred_check
          %p404 = pneg %p258
        $region14: #{tpu_custom_call.1} parent=11 // pred_check_branch
          %406 = sbr.rel (%p404) target = $region16
        $region15: #{tpu_custom_call.1} parent=11 // pred_region
          _
        $region16: #{tpu_custom_call.1} parent=11 // pred_fallthru
          _
        // Predicated region
        $region17: #{tpu_custom_call.1} parent=11 // pred_check
          %p407 = pneg %p279
        $region18: #{tpu_custom_call.1} parent=11 // pred_check_branch
          %409 = sbr.rel (%p407) target = $region20
        $region19: #{tpu_custom_call.1} parent=11 // pred_region
          _
        $region20: #{tpu_custom_call.1} parent=11 // pred_fallthru
          _
        // Predicated region
        $region21: #{tpu_custom_call.1} parent=11 // pred_check
          %p410 = pneg %p300
        $region22: #{tpu_custom_call.1} parent=11 // pred_check_branch
          %412 = sbr.rel (%p410) target = $region24
        $region23: #{tpu_custom_call.1} parent=11 // pred_region
          _
        $region24: #{tpu_custom_call.1} parent=11 // pred_fallthru
          _
        // Predicated region
        $region25: #{tpu_custom_call.1} parent=11 // pred_check
          %p413 = pneg %p321
        $region26: #{tpu_custom_call.1} parent=11 // pred_check_branch
          %415 = sbr.rel (%p413) target = $region28
        $region27: #{tpu_custom_call.1} parent=11 // pred_region
          _
        $region28: #{tpu_custom_call.1} parent=11 // pred_fallthru
          _
        // Predicated region
        $region29: #{tpu_custom_call.1} parent=11 // pred_check
          %p416 = pneg %p342
        $region30: #{tpu_custom_call.1} parent=11 // pred_check_branch
          %418 = sbr.rel (%p416) target = $region32
        $region31: #{tpu_custom_call.1} parent=11 // pred_region
          _
        $region32: #{tpu_custom_call.1} parent=11 // pred_fallthru
          _
        // Predicated region
        $region33: #{tpu_custom_call.1} parent=11 // pred_check
          %p419 = pneg %p363
        $region34: #{tpu_custom_call.1} parent=11 // pred_check_branch
          %421 = sbr.rel (%p419) target = $region36
        $region35: #{tpu_custom_call.1} parent=11 // pred_region
          _
        $region36: #{tpu_custom_call.1} parent=11 // pred_fallthru
          _
      $region12: #{tpu_custom_call.1} parent=5 // pred_fallthru
        _
      %p422 = scmp.lt.s32.totalorder %s29, 2
      // Predicated region
      $region37: #{tpu_custom_call.1} parent=5 // pred_check
        %p423 = pneg %p422
      $region38: #{tpu_custom_call.1} parent=5 // pred_check_branch
        %425 = sbr.rel (%p423) target = $region40
      $region39: #{tpu_custom_call.1} parent=5 // pred_region
        // Predicated region
        $region41: #{tpu_custom_call.1} parent=39 // pred_check
          %p426 = pneg %p49
        $region42: #{tpu_custom_call.1} parent=39 // pred_check_branch
          %428 = sbr.rel (%p426) target = $region44
        $region43: #{tpu_custom_call.1} parent=39 // pred_region
          %s429 = smul.u32 4, %s29
          %p430 = scmp.lt.s32.totalorder %s429, 7
          %s431 = scalar_select %p430, %s429, 7
          %s432 = smul.addr %s431, 8
          %s433 = scalar_lea.vmem %s0, %s432
          %s434 = smul.u32 4, %s29
        $region44: #{tpu_custom_call.1} parent=39 // pred_fallthru
          _
        // Predicated region
        $region45: #{tpu_custom_call.1} parent=39 // pred_check
          %p435 = pneg %p75
        $region46: #{tpu_custom_call.1} parent=39 // pred_check_branch
          %437 = sbr.rel (%p435) target = $region48
        $region47: #{tpu_custom_call.1} parent=39 // pred_region
          %s438 = smul.u32 4, %s29
          %p439 = scmp.lt.s32.totalorder %s438, 7
          %s440 = scalar_select %p439, %s438, 7
          %s441 = smul.addr %s440, 8
          %s442 = scalar_lea.vmem %s1, %s441
          %s443 = smul.u32 4, %s29
        $region48: #{tpu_custom_call.1} parent=39 // pred_fallthru
          _
        // Predicated region
        $region49: #{tpu_custom_call.1} parent=39 // pred_check
          %p444 = pneg %p101
        $region50: #{tpu_custom_call.1} parent=39 // pred_check_branch
          %446 = sbr.rel (%p444) target = $region52
        $region51: #{tpu_custom_call.1} parent=39 // pred_region
          %s447 = smul.u32 4, %s29
          %p448 = scmp.lt.s32.totalorder %s447, 7
          %s449 = scalar_select %p448, %s447, 7
          %s450 = smul.addr %s449, 8
          %s451 = scalar_lea.vmem %s2, %s450
          %s452 = smul.u32 4, %s29
        $region52: #{tpu_custom_call.1} parent=39 // pred_fallthru
          _
        // Predicated region
        $region53: #{tpu_custom_call.1} parent=39 // pred_check
          %p453 = pneg %p127
        $region54: #{tpu_custom_call.1} parent=39 // pred_check_branch
          %455 = sbr.rel (%p453) target = $region56
        $region55: #{tpu_custom_call.1} parent=39 // pred_region
          %s456 = smul.u32 4, %s29
          %p457 = scmp.lt.s32.totalorder %s456, 7
          %s458 = scalar_select %p457, %s456, 7
          %s459 = smul.addr %s458, 8
          %s460 = scalar_lea.vmem %s3, %s459
          %s461 = smul.u32 4, %s29
        $region56: #{tpu_custom_call.1} parent=39 // pred_fallthru
          _
        // Predicated region
        $region57: #{tpu_custom_call.1} parent=39 // pred_check
          %p462 = pneg %p153
        $region58: #{tpu_custom_call.1} parent=39 // pred_check_branch
          %464 = sbr.rel (%p462) target = $region60
        $region59: #{tpu_custom_call.1} parent=39 // pred_region
          %s465 = sand.u32 %s143, 1
          %s466 = scalar_lea.sflag [#allocation3], %s465
          %s467 = sand.u32 %s143, 1
          %s468 = smul.addr %s467, 4
          %s469 = scalar_lea.vmem [#allocation2], %s468
          %s470 = smul.u32 4, %s29
          %s472 = ssub.s32 64, 64
          %473 = vsyncadd %s466, %s472
          %s474 = smul.addr %s470, 16
          %s475 = scalar_lea.hbm %s4, %s474
          %s476 = sshll.u32 %s469, 4
          %s477 = int_to_ptr.vmem [resolvable:$true] %s476
          %482 = dma.hbm_to_vmem [thread:$0]  %s475, 64, %s477, %s466, 16, 16, 1
        $region60: #{tpu_custom_call.1} parent=39 // pred_fallthru
          _
        // Predicated region
        $region61: #{tpu_custom_call.1} parent=39 // pred_check
          %p483 = pneg %p179
        $region62: #{tpu_custom_call.1} parent=39 // pred_check_branch
          %485 = sbr.rel (%p483) target = $region64
        $region63: #{tpu_custom_call.1} parent=39 // pred_region
          %s486 = sand.u32 %s169, 1
          %s487 = scalar_lea.sflag [#allocation6], %s486
          %s488 = sand.u32 %s169, 1
          %s489 = smul.addr %s488, 4
          %s490 = scalar_lea.vmem [#allocation5], %s489
          %s491 = smul.u32 4, %s29
          %s493 = ssub.s32 64, 64
          %494 = vsyncadd %s487, %s493
          %s495 = smul.addr %s491, 16
          %s496 = scalar_lea.hbm %s5, %s495
          %s497 = sshll.u32 %s490, 4
          %s498 = int_to_ptr.vmem [resolvable:$true] %s497
          %503 = dma.hbm_to_vmem [thread:$0]  %s496, 64, %s498, %s487, 16, 16, 1
        $region64: #{tpu_custom_call.1} parent=39 // pred_fallthru
          _
        // Predicated region
        $region65: #{tpu_custom_call.1} parent=39 // pred_check
          %p504 = pneg %p205
        $region66: #{tpu_custom_call.1} parent=39 // pred_check_branch
          %506 = sbr.rel (%p504) target = $region68
        $region67: #{tpu_custom_call.1} parent=39 // pred_region
          %s507 = smul.u32 4, %s29
          %p508 = scmp.lt.s32.totalorder %s507, 7
          %s509 = scalar_select %p508, %s507, 7
          %s510 = smul.addr %s509, 8
          %s511 = scalar_lea.vmem %s6, %s510
          %s512 = smul.u32 4, %s29
        $region68: #{tpu_custom_call.1} parent=39 // pred_fallthru
          _
        // Predicated region
        $region69: #{tpu_custom_call.1} parent=39 // pred_check
          %p513 = pneg %p231
        $region70: #{tpu_custom_call.1} parent=39 // pred_check_branch
          %515 = sbr.rel (%p513) target = $region72
        $region71: #{tpu_custom_call.1} parent=39 // pred_region
          %s516 = sand.u32 %s221, 1
          %s517 = sand.u32 %s221, 1
          %s518 = smul.addr %s517, 32
          %s519 = scalar_lea.vmem [#allocation7], %s518
          %s520 = smul.u32 4, %s29
          %s521 = smul.addr %s520, 4
          %s522 = scalar_lea.vmem %s7, %s521
          // Predicated region
          $region73: #{tpu_custom_call.1} parent=71 // pred_check
            _
          $region74: #{tpu_custom_call.1} parent=71 // pred_check_branch
            %524 = sbr.rel (0) target = $region76
          $region75: #{tpu_custom_call.1} parent=71 // pred_region
            // Predicated region
            $region77: #{tpu_custom_call.1} parent=75 // pred_check
              _
            $region78: #{tpu_custom_call.1} parent=75 // pred_check_branch
              %526 = sbr.rel target = $region80
            $region79: #{tpu_custom_call.1} parent=75 // pred_region
              // Predicated region
              $region92: #{tpu_custom_call.1} parent=79 // pred_check
                _
              $region93: #{tpu_custom_call.1} parent=79 // pred_check_branch
                %556 = sbr.rel (0) target = $region95
              $region94: #{tpu_custom_call.1} parent=79 // pred_region
                loop: start=0, step=1, limit=1
                $region96: #{tpu_custom_call.1} parent=94 // loop_pre_header
                  _
                $region97: #{tpu_custom_call.1} parent=94 // loop_header
                  %s558 = sphi 0, %s562
                  %p559 = scmp.ge.s32.totalorder %s558, 1
                  %s563 = sphi %s522, %s522
                  %s564 = sphi %s519, %s519
                $region98: #{tpu_custom_call.1} parent=94 // loop_header_branch
                  %561 = sbr.rel (%p559) target = $region102
                $region99: #{tpu_custom_call.1} parent=94 // loop_body
                  _
                $region100: #{tpu_custom_call.1} parent=94 // loop_footer
                  %s562 = sadd.s32 1, %s558
                $region101: #{tpu_custom_call.1} parent=94 // loop_footer_branch
                  %557 = sbr.rel target = $region97
                $region102: #{tpu_custom_call.1} parent=94 // loop_exit
                  _
                %s566 = ssub.s32 16, 1
                loop: start=0, step=1, limit=1
                $region103: #{tpu_custom_call.1} parent=94 // loop_pre_header
                  _
                $region104: #{tpu_custom_call.1} parent=94 // loop_header
                  %s568 = sphi 0, %s572
                  %p569 = scmp.ge.s32.totalorder %s568, 1
                  %s573 = sphi %s522, %s522
                  %s574 = sphi %s519, %s519
                $region105: #{tpu_custom_call.1} parent=94 // loop_header_branch
                  %571 = sbr.rel (%p569) target = $region109
                $region106: #{tpu_custom_call.1} parent=94 // loop_body
                  %v575 = vld [vmem:[%s573] sm:%s566]
                  %576 = vst [vmem:[%s574] sm:%s566] %v575
                  %v577 = vld [vmem:[%s573 + $0x4] sm:%s566]
                  %578 = vst [vmem:[%s574 + $0x4] sm:%s566] %v577
                  %v579 = vld [vmem:[%s573 + $0x8] sm:%s566]
                  %580 = vst [vmem:[%s574 + $0x8] sm:%s566] %v579
                  %v581 = vld [vmem:[%s573 + $0xc] sm:%s566]
                  %582 = vst [vmem:[%s574 + $0xc] sm:%s566] %v581
                  %v583 = vld [vmem:[%s573 + $0x20] sm:%s566]
                  %584 = vst [vmem:[%s574 + $0x10] sm:%s566] %v583
                  %v585 = vld [vmem:[%s573 + $0x24] sm:%s566]
                  %586 = vst [vmem:[%s574 + $0x14] sm:%s566] %v585
                  %v587 = vld [vmem:[%s573 + $0x28] sm:%s566]
                  %588 = vst [vmem:[%s574 + $0x18] sm:%s566] %v587
                  %v589 = vld [vmem:[%s573 + $0x2c] sm:%s566]
                  %590 = vst [vmem:[%s574 + $0x1c] sm:%s566] %v589
                $region107: #{tpu_custom_call.1} parent=94 // loop_footer
                  %s572 = sadd.s32 1, %s568
                $region108: #{tpu_custom_call.1} parent=94 // loop_footer_branch
                  %567 = sbr.rel target = $region104
                $region109: #{tpu_custom_call.1} parent=94 // loop_exit
                  _
              $region95: #{tpu_custom_call.1} parent=79 // pred_fallthru
                _
            $region80: #{tpu_custom_call.1} parent=75 // pred_fallthru
              _
            // Predicated region
            $region81: #{tpu_custom_call.1} parent=75 // pred_check
              _
            $region82: #{tpu_custom_call.1} parent=75 // pred_check_branch
              %528 = sbr.rel (0) target = $region84
            $region83: #{tpu_custom_call.1} parent=75 // pred_region
              %s530 = ssub.s32 16, 1
              loop: start=0, step=1, limit=1
              $region85: #{tpu_custom_call.1} parent=83 // loop_pre_header
                _
              $region86: #{tpu_custom_call.1} parent=83 // loop_header
                %s532 = sphi 0, %s536
                %p533 = scmp.ge.s32.totalorder %s532, 1
                %s537 = sphi %s522, %s522
                %s538 = sphi %s519, %s519
              $region87: #{tpu_custom_call.1} parent=83 // loop_header_branch
                %535 = sbr.rel (%p533) target = $region91
              $region88: #{tpu_custom_call.1} parent=83 // loop_body
                %v539 = vld [vmem:[%s537] sm:%s530]
                %540 = vst [vmem:[%s538] sm:%s530] %v539
                %v541 = vld [vmem:[%s537 + $0x4] sm:%s530]
                %542 = vst [vmem:[%s538 + $0x4] sm:%s530] %v541
                %v543 = vld [vmem:[%s537 + $0x8] sm:%s530]
                %544 = vst [vmem:[%s538 + $0x8] sm:%s530] %v543
                %v545 = vld [vmem:[%s537 + $0xc] sm:%s530]
                %546 = vst [vmem:[%s538 + $0xc] sm:%s530] %v545
                %v547 = vld [vmem:[%s537 + $0x20] sm:%s530]
                %548 = vst [vmem:[%s538 + $0x10] sm:%s530] %v547
                %v549 = vld [vmem:[%s537 + $0x24] sm:%s530]
                %550 = vst [vmem:[%s538 + $0x14] sm:%s530] %v549
                %v551 = vld [vmem:[%s537 + $0x28] sm:%s530]
                %552 = vst [vmem:[%s538 + $0x18] sm:%s530] %v551
                %v553 = vld [vmem:[%s537 + $0x2c] sm:%s530]
                %554 = vst [vmem:[%s538 + $0x1c] sm:%s530] %v553
              $region89: #{tpu_custom_call.1} parent=83 // loop_footer
                %s536 = sadd.s32 1, %s532
              $region90: #{tpu_custom_call.1} parent=83 // loop_footer_branch
                %531 = sbr.rel target = $region86
              $region91: #{tpu_custom_call.1} parent=83 // loop_exit
                _
            $region84: #{tpu_custom_call.1} parent=75 // pred_fallthru
              _
          $region76: #{tpu_custom_call.1} parent=71 // pred_fallthru
            _
          %591 = vnop
        $region72: #{tpu_custom_call.1} parent=39 // pred_fallthru
          _
      $region40: #{tpu_custom_call.1} parent=5 // pred_fallthru
        _
      %p592 = scmp.le.s32.totalorder 1, %s29
      %p593 = scmp.lt.s32.totalorder %s29, 3
      %p594 = pnand %p592, %p593
      %p595 = pneg %p594
      // Predicated region
      $region110: #{tpu_custom_call.1} parent=5 // pred_check
        _
      $region111: #{tpu_custom_call.1} parent=5 // pred_check_branch
        %597 = sbr.rel (%p594) target = $region113
      $region112: #{tpu_custom_call.1} parent=5 // pred_region
        %s598 = ssub.s32 %s29, 1
        %s599 = sand.u32 %s146, 1
        %s600 = scalar_lea.sflag [#allocation3], %s599
        %s601 = sand.u32 %s146, 1
        %s602 = smul.addr %s601, 4
        %s603 = scalar_lea.vmem [#allocation2], %s602
        // Predicated region
        $region114: #{tpu_custom_call.1} parent=112 // pred_check
          %p604 = pneg %p159
        $region115: #{tpu_custom_call.1} parent=112 // pred_check_branch
          %606 = sbr.rel (%p604) target = $region117
        $region116: #{tpu_custom_call.1} parent=112 // pred_region
          %607 = dma.done %s600, 64
        $region117: #{tpu_custom_call.1} parent=112 // pred_fallthru
          _
        %s608 = sand.u32 %s172, 1
        %s609 = scalar_lea.sflag [#allocation6], %s608
        %s610 = sand.u32 %s172, 1
        %s611 = smul.addr %s610, 4
        %s612 = scalar_lea.vmem [#allocation5], %s611
        // Predicated region
        $region118: #{tpu_custom_call.1} parent=112 // pred_check
          %p613 = pneg %p185
        $region119: #{tpu_custom_call.1} parent=112 // pred_check_branch
          %615 = sbr.rel (%p613) target = $region121
        $region120: #{tpu_custom_call.1} parent=112 // pred_region
          %616 = dma.done %s609, 64
        $region121: #{tpu_custom_call.1} parent=112 // pred_fallthru
          _
        %s617 = sand.u32 %s224, 1
        %s618 = sand.u32 %s224, 1
        %s619 = smul.addr %s618, 32
        %s620 = scalar_lea.vmem [#allocation7], %s619
        // Predicated region
        $region122: #{tpu_custom_call.1} parent=112 // pred_check
          %p621 = pneg %p237
        $region123: #{tpu_custom_call.1} parent=112 // pred_check_branch
          %623 = sbr.rel (%p621) target = $region125
        $region124: #{tpu_custom_call.1} parent=112 // pred_region
          _
        $region125: #{tpu_custom_call.1} parent=112 // pred_fallthru
          _
        %s624 = smul.u32 4, %s34
        %p625 = scmp.lt.s32.totalorder %s624, 7
        %s626 = scalar_select %p625, %s624, 7
        %s627 = smul.addr %s626, 8
        %s628 = scalar_lea.vmem %s0, %s627
        %p629 = pneg %p55
        %p630 = pneg %p52
        %s631 = smul.u32 4, %s34
        %p632 = scmp.lt.s32.totalorder %s631, 7
        %s633 = scalar_select %p632, %s631, 7
        %s634 = smul.addr %s633, 8
        %s635 = scalar_lea.vmem %s1, %s634
        %p636 = pneg %p81
        %p637 = pneg %p78
        %s638 = smul.u32 4, %s34
        %p639 = scmp.lt.s32.totalorder %s638, 7
        %s640 = scalar_select %p639, %s638, 7
        %s641 = smul.addr %s640, 8
        %s642 = scalar_lea.vmem %s2, %s641
        %p643 = pneg %p107
        %p644 = pneg %p104
        %s645 = smul.u32 4, %s34
        %p646 = scmp.lt.s32.totalorder %s645, 7
        %s647 = scalar_select %p646, %s645, 7
        %s648 = smul.addr %s647, 8
        %s649 = scalar_lea.vmem %s3, %s648
        %p650 = pneg %p133
        %p651 = pneg %p130
        %s652 = sand.u32 %s146, 1
        %s653 = scalar_lea.sflag [#allocation3], %s652
        %s654 = sand.u32 %s146, 1
        %s655 = smul.addr %s654, 4
        %s656 = scalar_lea.vmem [#allocation2], %s655
        %p657 = pneg %p159
        %p658 = pneg %p156
        %s659 = sand.u32 %s172, 1
        %s660 = scalar_lea.sflag [#allocation6], %s659
        %s661 = sand.u32 %s172, 1
        %s662 = smul.addr %s661, 4
        %s663 = scalar_lea.vmem [#allocation5], %s662
        %p664 = pneg %p185
        %p665 = pneg %p182
        %s666 = smul.u32 4, %s34
        %p667 = scmp.lt.s32.totalorder %s666, 7
        %s668 = scalar_select %p667, %s666, 7
        %s669 = smul.addr %s668, 8
        %s670 = scalar_lea.vmem %s6, %s669
        %p671 = pneg %p211
        %p672 = pneg %p208
        %s673 = sand.u32 %s224, 1
        %s674 = sand.u32 %s224, 1
        %s675 = smul.addr %s674, 32
        %s676 = scalar_lea.vmem [#allocation7], %s675
        %p677 = pneg %p237
        %p678 = pneg %p234
        %p679 = pneg %p258
        %p680 = pneg %p255
        %p681 = pneg %p279
        %p682 = pneg %p276
        %p683 = pneg %p300
        %p684 = pneg %p297
        %p685 = pneg %p321
        %p686 = pneg %p318
        %p687 = pneg %p342
        %p688 = pneg %p339
        %p689 = pneg %p363
        %p690 = pneg %p360
        %p691 = pneg %p389
        %p692 = pneg %p386
        %s693 = sand.u32 %s376, 1
        %s694 = scalar_lea.sflag [#allocation4], %s693
        %s695 = sand.u32 %s376, 1
        %s696 = smul.addr %s695, 4
        %s697 = scalar_lea.vmem [#allocation8], %s696
        %s698 = smul.u32 4, %s34
        %p699 = scmp.lt.s32.totalorder %s698, 7
        %s700 = scalar_select %p699, %s698, 7
        %s701 = smul.addr %s700, 8
        %s702 = scalar_lea.vmem %s0, %s701
        %s703 = smul.u32 4, %s34
        %s704 = smul.u32 4, %s34
        %p705 = scmp.lt.s32.totalorder %s704, 7
        %s706 = scalar_select %p705, %s704, 7
        %s707 = smul.addr %s706, 8
        %s708 = scalar_lea.vmem %s1, %s707
        %s709 = smul.u32 4, %s34
        %s710 = smul.u32 4, %s34
        %p711 = scmp.lt.s32.totalorder %s710, 7
        %s712 = scalar_select %p711, %s710, 7
        %s713 = smul.addr %s712, 8
        %s714 = scalar_lea.vmem %s2, %s713
        %s715 = smul.u32 4, %s34
        %s716 = smul.u32 4, %s34
        %p717 = scmp.lt.s32.totalorder %s716, 7
        %s718 = scalar_select %p717, %s716, 7
        %s719 = smul.addr %s718, 8
        %s720 = scalar_lea.vmem %s3, %s719
        %s721 = smul.u32 4, %s34
        %s722 = smul.u32 4, %s34
        %s723 = smul.u32 4, %s34
        %s724 = smul.u32 4, %s34
        %p725 = scmp.lt.s32.totalorder %s724, 7
        %s726 = scalar_select %p725, %s724, 7
        %s727 = smul.addr %s726, 8
        %s728 = scalar_lea.vmem %s6, %s727
        %s729 = smul.u32 4, %s34
        %s730 = smul.u32 4, %s34
        %s731 = smul.u32 4, %s34
        %v733 = vld [vmem:[%s702] sm:$0xff]
        %v734 = vld [vmem:[%s702 + $0x8] sm:$0xff]
        %v735 = vld [vmem:[%s702 + $0x10] sm:$0xff]
        %v736 = vld [vmem:[%s702 + $0x18] sm:$0xff]
        %v737 = vld [vmem:[%s708] sm:$0xff]
        %v738 = vld [vmem:[%s708 + $0x8] sm:$0xff]
        %v739 = vld [vmem:[%s708 + $0x10] sm:$0xff]
        %v740 = vld [vmem:[%s708 + $0x18] sm:$0xff]
        %v741 = vld [vmem:[%s714] sm:$0xff]
        %v742 = vld [vmem:[%s714 + $0x8] sm:$0xff]
        %v743 = vld [vmem:[%s714 + $0x10] sm:$0xff]
        %v744 = vld [vmem:[%s714 + $0x18] sm:$0xff]
        %v745 = vld [vmem:[%s720] sm:$0xff]
        %v746 = vld [vmem:[%s720 + $0x8] sm:$0xff]
        %v747 = vld [vmem:[%s720 + $0x10] sm:$0xff]
        %v748 = vld [vmem:[%s720 + $0x18] sm:$0xff]
        %v749 = vld [vmem:[%s603] sm:$0x1]
        %v750 = vld [vmem:[%s603 + $0x1] sm:$0x1]
        %v751 = vld [vmem:[%s603 + $0x2] sm:$0x1]
        %v752 = vld [vmem:[%s603 + $0x3] sm:$0x1]
        %v753 = vld [vmem:[%s612] sm:$0x1]
        %v754 = vld [vmem:[%s612 + $0x1] sm:$0x1]
        %v755 = vld [vmem:[%s612 + $0x2] sm:$0x1]
        %v756 = vld [vmem:[%s612 + $0x3] sm:$0x1]
        %v757 = vld [vmem:[%s728] sm:$0xff]
        %v758 = vld [vmem:[%s728 + $0x8] sm:$0xff]
        %v759 = vld [vmem:[%s728 + $0x10] sm:$0xff]
        %v760 = vld [vmem:[%s728 + $0x18] sm:$0xff]
        %v761 = vpack.c.bf16 %v733, %v733
        %v762 = vpack.c.bf16 %v734, %v734
        %v763 = vpack.c.bf16 %v735, %v735
        %v764 = vpack.c.bf16 %v736, %v736
        %v765 = vpack.c.bf16 %v737, %v737
        %v766 = vpack.c.bf16 %v738, %v738
        %v767 = vpack.c.bf16 %v739, %v739
        %v768 = vpack.c.bf16 %v740, %v740
        %v769 = vld [vmem:[%s9] sm:$0x1]
        %v770 = vld [vmem:[%s11] sm:$0x1]
        %v771 = vld [vmem:[%s12] sm:$0x1]
        %v772 = vld [vmem:[%s13] sm:$0x1]
        %v773 = vld [vmem:[%s8] sm:$0xf]
        %v774 = vld [vmem:[%s8 + $0x4] sm:$0xf]
        %v775 = vld [vmem:[%s8 + $0x8] sm:$0xf]
        %v776 = vld [vmem:[%s8 + $0xc] sm:$0xf]
        %v777 = vld [vmem:[%s10] sm:$0xf]
        %v778 = vld [vmem:[%s10 + $0x4] sm:$0xf]
        %v779 = vld [vmem:[%s10 + $0x8] sm:$0xf]
        %v780 = vld [vmem:[%s10 + $0xc] sm:$0xf]
        %vm781 = vcmask 261120
        %v783 = vsel %vm781, %v761, 0
        %785 = vmatprep.subr.bf16.mxu0 0
        %786 = vmatpush1.bf16.xpose.msra.mxu0 0
        %787 = vmatprep.subr.bf16.mxu0 0
        %788 = vmatpush1.bf16.xpose.msra.mxu0 0
        %789 = vmatprep.subr.bf16.mxu0 0
        %790 = vmatpush1.bf16.xpose.msra.mxu0 0
        %791 = vmatprep.subr.bf16.mxu0 0
        %792 = vmatpush1.bf16.xpose.msra.mxu0 0
        %793 = vmatprep.subr.bf16.mxu0 0
        %794 = vmatpush1.bf16.xpose.msra.mxu0 0
        %795 = vmatprep.subr.bf16.mxu0 0
        %796 = vmatpush1.bf16.xpose.msra.mxu0 0
        %797 = vmatprep.subr.bf16.mxu0 0
        %798 = vmatpush1.bf16.xpose.msra.mxu0 0
        %799 = vmatprep.subr.bf16.mxu0 0
        %800 = vmatpush1.bf16.xpose.msra.mxu0 %v783
        %801 = vmatprep.subr.bf16.mxu0 0
        %802 = vmatpush2.bf16.xpose.msra.mxu0 0
        %803 = vmatprep.subr.bf16.mxu0 0
        %804 = vmatpush2.bf16.xpose.msra.mxu0 0
        %805 = vmatprep.subr.bf16.mxu0 0
        %806 = vmatpush2.bf16.xpose.msra.mxu0 0
        %807 = vmatprep.subr.bf16.mxu0 0
        %808 = vmatpush2.bf16.xpose.msra.mxu0 0
        %809 = vmatprep.subr.bf16.mxu0 0
        %810 = vmatpush2.bf16.xpose.msra.mxu0 0
        %811 = vmatprep.subr.bf16.mxu0 0
        %812 = vmatpush2.bf16.xpose.msra.mxu0 0
        %813 = vmatprep.subr.bf16.mxu0 0
        %814 = vmatpush2.bf16.xpose.msra.mxu0 0
        %815 = vmatprep.subr.bf16.mxu0 0
        %816 = vmatpush2.bf16.xpose.msra.mxu0 0
        %817 = vmatprep.mubr.bf16.mxu0 0
        %818 = vmatmul.mubr.bf16.gmra.mxu0 %v783
        %v819 = vpop.f32.mrf.mxu0
        %v820 = vadd.f32 0.0, %v819
        %v821 = vpop.f32.mrf.mxu0
        %v822 = vpop.f32.mrf.mxu0
        %v823 = vpop.f32.mrf.mxu0
        %824 = vdwg.mxu0
        %v826 = vsel %vm781, %v762, 0
        %828 = vmatprep.subr.bf16.mxu0 0
        %829 = vmatpush1.bf16.xpose.msra.mxu0 0
        %830 = vmatprep.subr.bf16.mxu0 0
        %831 = vmatpush1.bf16.xpose.msra.mxu0 0
        %832 = vmatprep.subr.bf16.mxu0 0
        %833 = vmatpush1.bf16.xpose.msra.mxu0 0
        %834 = vmatprep.subr.bf16.mxu0 0
        %835 = vmatpush1.bf16.xpose.msra.mxu0 0
        %836 = vmatprep.subr.bf16.mxu0 0
        %837 = vmatpush1.bf16.xpose.msra.mxu0 0
        %838 = vmatprep.subr.bf16.mxu0 0
        %839 = vmatpush1.bf16.xpose.msra.mxu0 0
        %840 = vmatprep.subr.bf16.mxu0 0
        %841 = vmatpush1.bf16.xpose.msra.mxu0 0
        %842 = vmatprep.subr.bf16.mxu0 0
        %843 = vmatpush1.bf16.xpose.msra.mxu0 %v826
        %844 = vmatprep.subr.bf16.mxu0 0
        %845 = vmatpush2.bf16.xpose.msra.mxu0 0
        %846 = vmatprep.subr.bf16.mxu0 0
        %847 = vmatpush2.bf16.xpose.msra.mxu0 0
        %848 = vmatprep.subr.bf16.mxu0 0
        %849 = vmatpush2.bf16.xpose.msra.mxu0 0
        %850 = vmatprep.subr.bf16.mxu0 0
        %851 = vmatpush2.bf16.xpose.msra.mxu0 0
        %852 = vmatprep.subr.bf16.mxu0 0
        %853 = vmatpush2.bf16.xpose.msra.mxu0 0
        %854 = vmatprep.subr.bf16.mxu0 0
        %855 = vmatpush2.bf16.xpose.msra.mxu0 0
        %856 = vmatprep.subr.bf16.mxu0 0
        %857 = vmatpush2.bf16.xpose.msra.mxu0 0
        %858 = vmatprep.subr.bf16.mxu0 0
        %859 = vmatpush2.bf16.xpose.msra.mxu0 0
        %860 = vmatprep.mubr.bf16.mxu0 0
        %861 = vmatmul.mubr.bf16.gmra.mxu0 %v826
        %v862 = vpop.f32.mrf.mxu0
        %v863 = vadd.f32 0.0, %v862
        %v864 = vpop.f32.mrf.mxu0
        %v865 = vpop.f32.mrf.mxu0
        %v866 = vpop.f32.mrf.mxu0
        %867 = vdwg.mxu0
        %v869 = vsel %vm781, %v763, 0
        %871 = vmatprep.subr.bf16.mxu0 0
        %872 = vmatpush1.bf16.xpose.msra.mxu0 0
        %873 = vmatprep.subr.bf16.mxu0 0
        %874 = vmatpush1.bf16.xpose.msra.mxu0 0
        %875 = vmatprep.subr.bf16.mxu0 0
        %876 = vmatpush1.bf16.xpose.msra.mxu0 0
        %877 = vmatprep.subr.bf16.mxu0 0
        %878 = vmatpush1.bf16.xpose.msra.mxu0 0
        %879 = vmatprep.subr.bf16.mxu0 0
        %880 = vmatpush1.bf16.xpose.msra.mxu0 0
        %881 = vmatprep.subr.bf16.mxu0 0
        %882 = vmatpush1.bf16.xpose.msra.mxu0 0
        %883 = vmatprep.subr.bf16.mxu0 0
        %884 = vmatpush1.bf16.xpose.msra.mxu0 0
        %885 = vmatprep.subr.bf16.mxu0 0
        %886 = vmatpush1.bf16.xpose.msra.mxu0 %v869
        %887 = vmatprep.subr.bf16.mxu0 0
        %888 = vmatpush2.bf16.xpose.msra.mxu0 0
        %889 = vmatprep.subr.bf16.mxu0 0
        %890 = vmatpush2.bf16.xpose.msra.mxu0 0
        %891 = vmatprep.subr.bf16.mxu0 0
        %892 = vmatpush2.bf16.xpose.msra.mxu0 0
        %893 = vmatprep.subr.bf16.mxu0 0
        %894 = vmatpush2.bf16.xpose.msra.mxu0 0
        %895 = vmatprep.subr.bf16.mxu0 0
        %896 = vmatpush2.bf16.xpose.msra.mxu0 0
        %897 = vmatprep.subr.bf16.mxu0 0
        %898 = vmatpush2.bf16.xpose.msra.mxu0 0
        %899 = vmatprep.subr.bf16.mxu0 0
        %900 = vmatpush2.bf16.xpose.msra.mxu0 0
        %901 = vmatprep.subr.bf16.mxu0 0
        %902 = vmatpush2.bf16.xpose.msra.mxu0 0
        %903 = vmatprep.mubr.bf16.mxu0 0
        %904 = vmatmul.mubr.bf16.gmra.mxu0 %v869
        %v905 = vpop.f32.mrf.mxu0
        %v906 = vadd.f32 0.0, %v905
        %v907 = vpop.f32.mrf.mxu0
        %v908 = vpop.f32.mrf.mxu0
        %v909 = vpop.f32.mrf.mxu0
        %910 = vdwg.mxu0
        %v912 = vsel %vm781, %v764, 0
        %914 = vmatprep.subr.bf16.mxu0 0
        %915 = vmatpush1.bf16.xpose.msra.mxu0 0
        %916 = vmatprep.subr.bf16.mxu0 0
        %917 = vmatpush1.bf16.xpose.msra.mxu0 0
        %918 = vmatprep.subr.bf16.mxu0 0
        %919 = vmatpush1.bf16.xpose.msra.mxu0 0
        %920 = vmatprep.subr.bf16.mxu0 0
        %921 = vmatpush1.bf16.xpose.msra.mxu0 0
        %922 = vmatprep.subr.bf16.mxu0 0
        %923 = vmatpush1.bf16.xpose.msra.mxu0 0
        %924 = vmatprep.subr.bf16.mxu0 0
        %925 = vmatpush1.bf16.xpose.msra.mxu0 0
        %926 = vmatprep.subr.bf16.mxu0 0
        %927 = vmatpush1.bf16.xpose.msra.mxu0 0
        %928 = vmatprep.subr.bf16.mxu0 0
        %929 = vmatpush1.bf16.xpose.msra.mxu0 %v912
        %930 = vmatprep.subr.bf16.mxu0 0
        %931 = vmatpush2.bf16.xpose.msra.mxu0 0
        %932 = vmatprep.subr.bf16.mxu0 0
        %933 = vmatpush2.bf16.xpose.msra.mxu0 0
        %934 = vmatprep.subr.bf16.mxu0 0
        %935 = vmatpush2.bf16.xpose.msra.mxu0 0
        %936 = vmatprep.subr.bf16.mxu0 0
        %937 = vmatpush2.bf16.xpose.msra.mxu0 0
        %938 = vmatprep.subr.bf16.mxu0 0
        %939 = vmatpush2.bf16.xpose.msra.mxu0 0
        %940 = vmatprep.subr.bf16.mxu0 0
        %941 = vmatpush2.bf16.xpose.msra.mxu0 0
        %942 = vmatprep.subr.bf16.mxu0 0
        %943 = vmatpush2.bf16.xpose.msra.mxu0 0
        %944 = vmatprep.subr.bf16.mxu0 0
        %945 = vmatpush2.bf16.xpose.msra.mxu0 0
        %946 = vmatprep.mubr.bf16.mxu0 0
        %947 = vmatmul.mubr.bf16.gmra.mxu0 %v912
        %v948 = vpop.f32.mrf.mxu0
        %v949 = vadd.f32 0.0, %v948
        %v950 = vpop.f32.mrf.mxu0
        %v951 = vpop.f32.mrf.mxu0
        %v952 = vpop.f32.mrf.mxu0
        %953 = vdwg.mxu0
        %955 = vset.pattern.permute.xlu0 0
        %956 = vperm.xlu0 %955, %v745
        %v957 = vpop.permute.xlu0 %956
        %960 = vset.pattern.permute.xlu0 0
        %961 = vperm.xlu0 %960, %v746
        %v962 = vpop.permute.xlu0 %961
        %965 = vset.pattern.permute.xlu0 0
        %966 = vperm.xlu0 %965, %v747
        %v967 = vpop.permute.xlu0 %966
        %970 = vset.pattern.permute.xlu0 0
        %971 = vperm.xlu0 %970, %v748
        %v972 = vpop.permute.xlu0 %971
        %v978 = vlaneseq
        %v979 = vshrl.u32 %v978, 7
        %v980 = vsub.s32 0, %v979
        %v981 = vrot.slane %v749, %v980
        %v982 = vlaneseq
        %v983 = vshrl.u32 %v982, 7
        %v984 = vsub.s32 0, %v983
        %v985 = vrot.slane %v750, %v984
        %v986 = vlaneseq
        %v987 = vshrl.u32 %v986, 7
        %v988 = vsub.s32 0, %v987
        %v989 = vrot.slane %v751, %v988
        %v990 = vlaneseq
        %v991 = vshrl.u32 %v990, 7
        %v992 = vsub.s32 0, %v991
        %v993 = vrot.slane %v752, %v992
        %v998 = vmul.f32 %v957, %v981
        %v999 = vmul.f32 %v962, %v985
        %v1000 = vmul.f32 %v967, %v989
        %v1001 = vmul.f32 %v972, %v993
        %v1002 = vadd.f32 %v998, 1e-06
        %v1003 = vadd.f32 %v999, 1e-06
        %v1004 = vadd.f32 %v1000, 1e-06
        %v1005 = vadd.f32 %v1001, 1e-06
        %v1006 = vrcp.pop %v1002
        %v1007 = vrcp.pop %v1003
        %v1008 = vrcp.pop %v1004
        %v1009 = vrcp.pop %v1005
        %v1010 = vmul.f32 %v820, %v1006
        %v1011 = vmul.f32 %v863, %v1007
        %v1012 = vmul.f32 %v906, %v1008
        %v1013 = vmul.f32 %v949, %v1009
        %v1014 = vlaneseq
        %v1015 = vshrl.u32 %v1014, 7
        %v1016 = vlaneseq
        %v1017 = vand.u32 %v1016, 127
        %vm1018 = vcmp.eq.s32.totalorder %v1015, %v1017
        %v1019 = vsel %vm1018, 1, 0
        %v1020 = vcvt.s32.f32 %v1019
        %1022 = vset.pattern.permute.xlu0 0
        %1023 = vperm.xlu0 %1022, %v741
        %v1024 = vpop.permute.xlu0 %1023
        %1027 = vset.pattern.permute.xlu0 0
        %1028 = vperm.xlu0 %1027, %v742
        %v1029 = vpop.permute.xlu0 %1028
        %1032 = vset.pattern.permute.xlu0 0
        %1033 = vperm.xlu0 %1032, %v743
        %v1034 = vpop.permute.xlu0 %1033
        %1037 = vset.pattern.permute.xlu0 0
        %1038 = vperm.xlu0 %1037, %v744
        %v1039 = vpop.permute.xlu0 %1038
        %v1041 = vmul.f32 %v1020, %v1024
        %v1042 = vmul.f32 %v1020, %v1029
        %v1043 = vmul.f32 %v1020, %v1034
        %v1044 = vmul.f32 %v1020, %v1039
        %v1045 = vadd.f32 %v1010, %v1041
        %v1046 = vadd.f32 %v1011, %v1042
        %v1047 = vadd.f32 %v1012, %v1043
        %v1048 = vadd.f32 %v1013, %v1044
        %v1050 = vsel %vm781, %v765, 0
        %1052 = vmatprep.subr.bf16.mxu0 0
        %1053 = vmatpush1.bf16.xpose.msra.mxu0 0
        %1054 = vmatprep.subr.bf16.mxu0 0
        %1055 = vmatpush1.bf16.xpose.msra.mxu0 0
        %1056 = vmatprep.subr.bf16.mxu0 0
        %1057 = vmatpush1.bf16.xpose.msra.mxu0 0
        %1058 = vmatprep.subr.bf16.mxu0 0
        %1059 = vmatpush1.bf16.xpose.msra.mxu0 0
        %1060 = vmatprep.subr.bf16.mxu0 0
        %1061 = vmatpush1.bf16.xpose.msra.mxu0 0
        %1062 = vmatprep.subr.bf16.mxu0 0
        %1063 = vmatpush1.bf16.xpose.msra.mxu0 0
        %1064 = vmatprep.subr.bf16.mxu0 0
        %1065 = vmatpush1.bf16.xpose.msra.mxu0 0
        %1066 = vmatprep.subr.bf16.mxu0 0
        %1067 = vmatpush1.bf16.xpose.msra.mxu0 %v1050
        %1068 = vmatprep.subr.bf16.mxu0 0
        %1069 = vmatpush2.bf16.xpose.msra.mxu0 0
        %1070 = vmatprep.subr.bf16.mxu0 0
        %1071 = vmatpush2.bf16.xpose.msra.mxu0 0
        %1072 = vmatprep.subr.bf16.mxu0 0
        %1073 = vmatpush2.bf16.xpose.msra.mxu0 0
        %1074 = vmatprep.subr.bf16.mxu0 0
        %1075 = vmatpush2.bf16.xpose.msra.mxu0 0
        %1076 = vmatprep.subr.bf16.mxu0 0
        %1077 = vmatpush2.bf16.xpose.msra.mxu0 0
        %1078 = vmatprep.subr.bf16.mxu0 0
        %1079 = vmatpush2.bf16.xpose.msra.mxu0 0
        %1080 = vmatprep.subr.bf16.mxu0 0
        %1081 = vmatpush2.bf16.xpose.msra.mxu0 0
        %1082 = vmatprep.subr.bf16.mxu0 0
        %1083 = vmatpush2.bf16.xpose.msra.mxu0 0
        %1084 = vmatprep.mubr.bf16.mxu0 0
        %1085 = vmatmul.mubr.bf16.gmra.mxu0 %v783
        %v1086 = vpop.f32.mrf.mxu0
        %v1087 = vadd.f32 0.0, %v1086
        %v1088 = vpop.f32.mrf.mxu0
        %v1089 = vpop.f32.mrf.mxu0
        %v1090 = vpop.f32.mrf.mxu0
        %1091 = vdwg.mxu0
        %v1093 = vsel %vm781, %v766, 0
        %1095 = vmatprep.subr.bf16.mxu0 0
        %1096 = vmatpush1.bf16.xpose.msra.mxu0 0
        %1097 = vmatprep.subr.bf16.mxu0 0
        %1098 = vmatpush1.bf16.xpose.msra.mxu0 0
        %1099 = vmatprep.subr.bf16.mxu0 0
        %1100 = vmatpush1.bf16.xpose.msra.mxu0 0
        %1101 = vmatprep.subr.bf16.mxu0 0
        %1102 = vmatpush1.bf16.xpose.msra.mxu0 0
        %1103 = vmatprep.subr.bf16.mxu0 0
        %1104 = vmatpush1.bf16.xpose.msra.mxu0 0
        %1105 = vmatprep.subr.bf16.mxu0 0
        %1106 = vmatpush1.bf16.xpose.msra.mxu0 0
        %1107 = vmatprep.subr.bf16.mxu0 0
        %1108 = vmatpush1.bf16.xpose.msra.mxu0 0
        %1109 = vmatprep.subr.bf16.mxu0 0
        %1110 = vmatpush1.bf16.xpose.msra.mxu0 %v1093
        %1111 = vmatprep.subr.bf16.mxu0 0
        %1112 = vmatpush2.bf16.xpose.msra.mxu0 0
        %1113 = vmatprep.subr.bf16.mxu0 0
        %1114 = vmatpush2.bf16.xpose.msra.mxu0 0
        %1115 = vmatprep.subr.bf16.mxu0 0
        %1116 = vmatpush2.bf16.xpose.msra.mxu0 0
        %1117 = vmatprep.subr.bf16.mxu0 0
        %1118 = vmatpush2.bf16.xpose.msra.mxu0 0
        %1119 = vmatprep.subr.bf16.mxu0 0
        %1120 = vmatpush2.bf16.xpose.msra.mxu0 0
        %1121 = vmatprep.subr.bf16.mxu0 0
        %1122 = vmatpush2.bf16.xpose.msra.mxu0 0
        %1123 = vmatprep.subr.bf16.mxu0 0
        %1124 = vmatpush2.bf16.xpose.msra.mxu0 0
        %1125 = vmatprep.subr.bf16.mxu0 0
        %1126 = vmatpush2.bf16.xpose.msra.mxu0 0
        %1127 = vmatprep.mubr.bf16.mxu0 0
        %1128 = vmatmul.mubr.bf16.gmra.mxu0 %v826
        %v1129 = vpop.f32.mrf.mxu0
        %v1130 = vadd.f32 0.0, %v1129
        %v1131 = vpop.f32.mrf.mxu0
        %v1132 = vpop.f32.mrf.mxu0
        %v1133 = vpop.f32.mrf.mxu0
        %1134 = vdwg.mxu0
        %v1136 = vsel %vm781, %v767, 0
        %1138 = vmatprep.subr.bf16.mxu0 0
        %1139 = vmatpush1.bf16.xpose.msra.mxu0 0
        %1140 = vmatprep.subr.bf16.mxu0 0
        %1141 = vmatpush1.bf16.xpose.msra.mxu0 0
        %1142 = vmatprep.subr.bf16.mxu0 0
        %1143 = vmatpush1.bf16.xpose.msra.mxu0 0
        %1144 = vmatprep.subr.bf16.mxu0 0
        %1145 = vmatpush1.bf16.xpose.msra.mxu0 0
        %1146 = vmatprep.subr.bf16.mxu0 0
        %1147 = vmatpush1.bf16.xpose.msra.mxu0 0
        %1148 = vmatprep.subr.bf16.mxu0 0
        %1149 = vmatpush1.bf16.xpose.msra.mxu0 0
        %1150 = vmatprep.subr.bf16.mxu0 0
        %1151 = vmatpush1.bf16.xpose.msra.mxu0 0
        %1152 = vmatprep.subr.bf16.mxu0 0
        %1153 = vmatpush1.bf16.xpose.msra.mxu0 %v1136
        %1154 = vmatprep.subr.bf16.mxu0 0
        %1155 = vmatpush2.bf16.xpose.msra.mxu0 0
        %1156 = vmatprep.subr.bf16.mxu0 0
        %1157 = vmatpush2.bf16.xpose.msra.mxu0 0
        %1158 = vmatprep.subr.bf16.mxu0 0
        %1159 = vmatpush2.bf16.xpose.msra.mxu0 0
        %1160 = vmatprep.subr.bf16.mxu0 0
        %1161 = vmatpush2.bf16.xpose.msra.mxu0 0
        %1162 = vmatprep.subr.bf16.mxu0 0
        %1163 = vmatpush2.bf16.xpose.msra.mxu0 0
        %1164 = vmatprep.subr.bf16.mxu0 0
        %1165 = vmatpush2.bf16.xpose.msra.mxu0 0
        %1166 = vmatprep.subr.bf16.mxu0 0
        %1167 = vmatpush2.bf16.xpose.msra.mxu0 0
        %1168 = vmatprep.subr.bf16.mxu0 0
        %1169 = vmatpush2.bf16.xpose.msra.mxu0 0
        %1170 = vmatprep.mubr.bf16.mxu0 0
        %1171 = vmatmul.mubr.bf16.gmra.mxu0 %v869
        %v1172 = vpop.f32.mrf.mxu0
        %v1173 = vadd.f32 0.0, %v1172
        %v1174 = vpop.f32.mrf.mxu0
        %v1175 = vpop.f32.mrf.mxu0
        %v1176 = vpop.f32.mrf.mxu0
        %1177 = vdwg.mxu0
        %v1179 = vsel %vm781, %v768, 0
        %1181 = vmatprep.subr.bf16.mxu0 0
        %1182 = vmatpush1.bf16.xpose.msra.mxu0 0
        %1183 = vmatprep.subr.bf16.mxu0 0
        %1184 = vmatpush1.bf16.xpose.msra.mxu0 0
        %1185 = vmatprep.subr.bf16.mxu0 0
        %1186 = vmatpush1.bf16.xpose.msra.mxu0 0
        %1187 = vmatprep.subr.bf16.mxu0 0
        %1188 = vmatpush1.bf16.xpose.msra.mxu0 0
        %1189 = vmatprep.subr.bf16.mxu0 0
        %1190 = vmatpush1.bf16.xpose.msra.mxu0 0
        %1191 = vmatprep.subr.bf16.mxu0 0
        %1192 = vmatpush1.bf16.xpose.msra.mxu0 0
        %1193 = vmatprep.subr.bf16.mxu0 0
        %1194 = vmatpush1.bf16.xpose.msra.mxu0 0
        %1195 = vmatprep.subr.bf16.mxu0 0
        %1196 = vmatpush1.bf16.xpose.msra.mxu0 %v1179
        %1197 = vmatprep.subr.bf16.mxu0 0
        %1198 = vmatpush2.bf16.xpose.msra.mxu0 0
        %1199 = vmatprep.subr.bf16.mxu0 0
        %1200 = vmatpush2.bf16.xpose.msra.mxu0 0
        %1201 = vmatprep.subr.bf16.mxu0 0
        %1202 = vmatpush2.bf16.xpose.msra.mxu0 0
        %1203 = vmatprep.subr.bf16.mxu0 0
        %1204 = vmatpush2.bf16.xpose.msra.mxu0 0
        %1205 = vmatprep.subr.bf16.mxu0 0
        %1206 = vmatpush2.bf16.xpose.msra.mxu0 0
        %1207 = vmatprep.subr.bf16.mxu0 0
        %1208 = vmatpush2.bf16.xpose.msra.mxu0 0
        %1209 = vmatprep.subr.bf16.mxu0 0
        %1210 = vmatpush2.bf16.xpose.msra.mxu0 0
        %1211 = vmatprep.subr.bf16.mxu0 0
        %1212 = vmatpush2.bf16.xpose.msra.mxu0 0
        %1213 = vmatprep.mubr.bf16.mxu0 0
        %1214 = vmatmul.mubr.bf16.gmra.mxu0 %v912
        %v1215 = vpop.f32.mrf.mxu0
        %v1216 = vadd.f32 0.0, %v1215
        %v1217 = vpop.f32.mrf.mxu0
        %v1218 = vpop.f32.mrf.mxu0
        %v1219 = vpop.f32.mrf.mxu0
        %1220 = vdwg.mxu0
        %vm1221 = vcmp.gt.f32.partialorder %v1087, 1.0
        %vm1222 = vcmp.gt.f32.partialorder %v1130, 1.0
        %vm1223 = vcmp.gt.f32.partialorder %v1173, 1.0
        %vm1224 = vcmp.gt.f32.partialorder %v1216, 1.0
        %v1225 = vmin.f32 %v1087, 1.0
        %v1226 = vmin.f32 %v1130, 1.0
        %v1227 = vmin.f32 %v1173, 1.0
        %v1228 = vmin.f32 %v1216, 1.0
        %v1229 = vmul.f32 %v1225, 1.442695
        %v1230 = vpow.pop %v1229
        %v1231 = vmul.f32 %v1226, 1.442695
        %v1232 = vpow.pop %v1231
        %v1233 = vmul.f32 %v1227, 1.442695
        %v1234 = vpow.pop %v1233
        %v1235 = vmul.f32 %v1228, 1.442695
        %v1236 = vpow.pop %v1235
        %v1237 = vadd.f32 %v1230, 1.0
        %v1238 = vlog2.pop %v1237
        %v1239 = vmul.f32 %v1238, 0.6931472
        %v1240 = vmul.f32 -0.5, %v1230
        %v1241 = vadd.f32 %v1240, 1.0
        %v1242 = vmul.f32 %v1241, %v1230
        %v1243 = vand.u32 2147483647, %v1230
        %vm1244 = vcmp.lt.f32.partialorder %v1243, 0.0004427343
        %v1245 = vsel %vm1244, %v1242, %v1239
        %v1246 = vadd.f32 %v1232, 1.0
        %v1247 = vlog2.pop %v1246
        %v1248 = vmul.f32 %v1247, 0.6931472
        %v1249 = vmul.f32 -0.5, %v1232
        %v1250 = vadd.f32 %v1249, 1.0
        %v1251 = vmul.f32 %v1250, %v1232
        %v1252 = vand.u32 2147483647, %v1232
        %vm1253 = vcmp.lt.f32.partialorder %v1252, 0.0004427343
        %v1254 = vsel %vm1253, %v1251, %v1248
        %v1255 = vadd.f32 %v1234, 1.0
        %v1256 = vlog2.pop %v1255
        %v1257 = vmul.f32 %v1256, 0.6931472
        %v1258 = vmul.f32 -0.5, %v1234
        %v1259 = vadd.f32 %v1258, 1.0
        %v1260 = vmul.f32 %v1259, %v1234
        %v1261 = vand.u32 2147483647, %v1234
        %vm1262 = vcmp.lt.f32.partialorder %v1261, 0.0004427343
        %v1263 = vsel %vm1262, %v1260, %v1257
        %v1264 = vadd.f32 %v1236, 1.0
        %v1265 = vlog2.pop %v1264
        %v1266 = vmul.f32 %v1265, 0.6931472
        %v1267 = vmul.f32 -0.5, %v1236
        %v1268 = vadd.f32 %v1267, 1.0
        %v1269 = vmul.f32 %v1268, %v1236
        %v1270 = vand.u32 2147483647, %v1236
        %vm1271 = vcmp.lt.f32.partialorder %v1270, 0.0004427343
        %v1272 = vsel %vm1271, %v1269, %v1266
        %v1273 = vsel %vm1221, %v1087, %v1245
        %v1274 = vsel %vm1222, %v1130, %v1254
        %v1275 = vsel %vm1223, %v1173, %v1263
        %v1276 = vsel %vm1224, %v1216, %v1272
        %1278 = vset.pattern.permute.xlu0 0
        %1279 = vperm.xlu0 %1278, %v757
        %v1280 = vpop.permute.xlu0 %1279
        %1283 = vset.pattern.permute.xlu0 0
        %1284 = vperm.xlu0 %1283, %v758
        %v1285 = vpop.permute.xlu0 %1284
        %1288 = vset.pattern.permute.xlu0 0
        %1289 = vperm.xlu0 %1288, %v759
        %v1290 = vpop.permute.xlu0 %1289
        %1293 = vset.pattern.permute.xlu0 0
        %1294 = vperm.xlu0 %1293, %v760
        %v1295 = vpop.permute.xlu0 %1294
        %v1301 = vlaneseq
        %v1302 = vshrl.u32 %v1301, 7
        %v1303 = vsub.s32 0, %v1302
        %v1304 = vrot.slane %v753, %v1303
        %v1305 = vlaneseq
        %v1306 = vshrl.u32 %v1305, 7
        %v1307 = vsub.s32 0, %v1306
        %v1308 = vrot.slane %v754, %v1307
        %v1309 = vlaneseq
        %v1310 = vshrl.u32 %v1309, 7
        %v1311 = vsub.s32 0, %v1310
        %v1312 = vrot.slane %v755, %v1311
        %v1313 = vlaneseq
        %v1314 = vshrl.u32 %v1313, 7
        %v1315 = vsub.s32 0, %v1314
        %v1316 = vrot.slane %v756, %v1315
        %v1321 = vmul.f32 %v1280, %v1304
        %v1322 = vmul.f32 %v1285, %v1308
        %v1323 = vmul.f32 %v1290, %v1312
        %v1324 = vmul.f32 %v1295, %v1316
        %vm1325 = vcmp.eq.f32.partialorder %v1321, 0.0
        %vm1326 = vcmp.eq.f32.partialorder %v1322, 0.0
        %vm1327 = vcmp.eq.f32.partialorder %v1323, 0.0
        %vm1328 = vcmp.eq.f32.partialorder %v1324, 0.0
        %vm1329 = vcmask 57344
        %v1330 = vsel %vm1329, %v753, 0.0
        %1331 = vadd.xlane.f32.xlu0 %v1330
        %v1332 = vpop.xlane.xlu0 %1331
        %v1333 = vsel %vm1329, %v754, 0.0
        %1334 = vadd.xlane.f32.xlu0 %v1333
        %v1335 = vpop.xlane.xlu0 %1334
        %v1336 = vsel %vm1329, %v755, 0.0
        %1337 = vadd.xlane.f32.xlu0 %v1336
        %v1338 = vpop.xlane.xlu0 %1337
        %v1339 = vsel %vm1329, %v756, 0.0
        %1340 = vadd.xlane.f32.xlu0 %v1339
        %v1341 = vpop.xlane.xlu0 %1340
        %vm1342 = vcmp.gt.f32.partialorder %v1332, 1.0
        %vm1343 = vcmp.gt.f32.partialorder %v1335, 1.0
        %vm1344 = vcmp.gt.f32.partialorder %v1338, 1.0
        %vm1345 = vcmp.gt.f32.partialorder %v1341, 1.0
        %v1346 = vsel %vm1342, 1, 0
        %v1347 = vsel %vm1343, 1, 0
        %v1348 = vsel %vm1344, 1, 0
        %v1349 = vsel %vm1345, 1, 0
        %v1350 = vcvt.s32.f32 %v1346
        %v1351 = vcvt.s32.f32 %v1347
        %v1352 = vcvt.s32.f32 %v1348
        %v1353 = vcvt.s32.f32 %v1349
        %v1354 = vpack.c.bf16 %v1020, %v1020
        %v1355 = vld [vmem:[%s620] sm:$0xf]
        %v1356 = vld [vmem:[%s620 + $0x4] sm:$0xf]
        %v1357 = vld [vmem:[%s620 + $0x8] sm:$0xf]
        %v1358 = vld [vmem:[%s620 + $0xc] sm:$0xf]
        %v1359 = vunpack.c.l.bf16 %v1355
        %v1360 = vunpack.c.l.bf16 %v1356
        %v1361 = vunpack.c.l.bf16 %v1357
        %v1362 = vunpack.c.l.bf16 %v1358
        %v1363 = vmul.f32 %v1359, %v1273
        %v1364 = vmul.f32 %v1360, %v1274
        %v1365 = vmul.f32 %v1361, %v1275
        %v1366 = vmul.f32 %v1362, %v1276
        %v1367 = vadd.f32 %v1045, %v1363
        %v1368 = vadd.f32 %v1046, %v1364
        %v1369 = vadd.f32 %v1047, %v1365
        %v1370 = vadd.f32 %v1048, %v1366
        %v1371 = vsel %vm1325, -1e+10, %v1367
        %v1372 = vsel %vm1326, -1e+10, %v1368
        %v1373 = vsel %vm1327, -1e+10, %v1369
        %v1374 = vsel %vm1328, -1e+10, %v1370
        %vm1375 = vcmask 64512
        %v1376 = vsel %vm1375, %v1371, -inf
        %1377 = vmax.xlane.f32.xlu0 %v1376
        %v1378 = vpop.xlane.xlu0 %1377
        %v1379 = vsel %vm1375, %v1372, -inf
        %1380 = vmax.xlane.f32.xlu0 %v1379
        %v1381 = vpop.xlane.xlu0 %1380
        %v1382 = vsel %vm1375, %v1373, -inf
        %1383 = vmax.xlane.f32.xlu0 %v1382
        %v1384 = vpop.xlane.xlu0 %1383
        %v1385 = vsel %vm1375, %v1374, -inf
        %1386 = vmax.xlane.f32.xlu0 %v1385
        %v1387 = vpop.xlane.xlu0 %1386
        %vm1388 = vcmp.eq.f32.partialorder %v1371, %v1378
        %vm1389 = vcmp.eq.f32.partialorder %v1372, %v1381
        %vm1390 = vcmp.eq.f32.partialorder %v1373, %v1384
        %vm1391 = vcmp.eq.f32.partialorder %v1374, %v1387
        %v1392 = vsel %vm1388, %v1017, 8
        %v1393 = vsel %vm1389, %v1017, 8
        %v1394 = vsel %vm1390, %v1017, 8
        %v1395 = vsel %vm1391, %v1017, 8
        %v1396 = vsel %vm1375, %v1392, 2147483647
        %v1397 = vand.u32 %v1396, 65535
        %v1398 = vshra.s32 %v1396, 16
        %v1399 = vcvt.s32.f32 %v1397
        %v1400 = vcvt.s32.f32 %v1398
        %1401 = vmin.xlane.f32.xlu0 %v1400
        %v1402 = vpop.xlane.xlu0 %1401
        %vm1403 = vcmp.eq.f32.partialorder %v1400, %v1402
        %v1404 = vsel %vm1403, %v1399, inf
        %1405 = vmin.xlane.f32.xlu0 %v1404
        %v1406 = vpop.xlane.xlu0 %1405
        %v1407 = vcvt.f32.s32 %v1406
        %v1408 = vcvt.f32.s32 %v1402
        %v1409 = vshll.u32 %v1408, 16
        %v1410 = vadd.s32 %v1409, %v1407
        %v1411 = vsel %vm1375, %v1393, 2147483647
        %v1412 = vand.u32 %v1411, 65535
        %v1413 = vshra.s32 %v1411, 16
        %v1414 = vcvt.s32.f32 %v1412
        %v1415 = vcvt.s32.f32 %v1413
        %1416 = vmin.xlane.f32.xlu0 %v1415
        %v1417 = vpop.xlane.xlu0 %1416
        %vm1418 = vcmp.eq.f32.partialorder %v1415, %v1417
        %v1419 = vsel %vm1418, %v1414, inf
        %1420 = vmin.xlane.f32.xlu0 %v1419
        %v1421 = vpop.xlane.xlu0 %1420
        %v1422 = vcvt.f32.s32 %v1421
        %v1423 = vcvt.f32.s32 %v1417
        %v1424 = vshll.u32 %v1423, 16
        %v1425 = vadd.s32 %v1424, %v1422
        %v1426 = vsel %vm1375, %v1394, 2147483647
        %v1427 = vand.u32 %v1426, 65535
        %v1428 = vshra.s32 %v1426, 16
        %v1429 = vcvt.s32.f32 %v1427
        %v1430 = vcvt.s32.f32 %v1428
        %1431 = vmin.xlane.f32.xlu0 %v1430
        %v1432 = vpop.xlane.xlu0 %1431
        %vm1433 = vcmp.eq.f32.partialorder %v1430, %v1432
        %v1434 = vsel %vm1433, %v1429, inf
        %1435 = vmin.xlane.f32.xlu0 %v1434
        %v1436 = vpop.xlane.xlu0 %1435
        %v1437 = vcvt.f32.s32 %v1436
        %v1438 = vcvt.f32.s32 %v1432
        %v1439 = vshll.u32 %v1438, 16
        %v1440 = vadd.s32 %v1439, %v1437
        %v1441 = vsel %vm1375, %v1395, 2147483647
        %v1442 = vand.u32 %v1441, 65535
        %v1443 = vshra.s32 %v1441, 16
        %v1444 = vcvt.s32.f32 %v1442
        %v1445 = vcvt.s32.f32 %v1443
        %1446 = vmin.xlane.f32.xlu0 %v1445
        %v1447 = vpop.xlane.xlu0 %1446
        %vm1448 = vcmp.eq.f32.partialorder %v1445, %v1447
        %v1449 = vsel %vm1448, %v1444, inf
        %1450 = vmin.xlane.f32.xlu0 %v1449
        %v1451 = vpop.xlane.xlu0 %1450
        %v1452 = vcvt.f32.s32 %v1451
        %v1453 = vcvt.f32.s32 %v1447
        %v1454 = vshll.u32 %v1453, 16
        %v1455 = vadd.s32 %v1454, %v1452
        %vm1456 = vcmp.eq.s32.totalorder %v1017, %v1410
        %vm1457 = vcmp.eq.s32.totalorder %v1017, %v1425
        %vm1458 = vcmp.eq.s32.totalorder %v1017, %v1440
        %vm1459 = vcmp.eq.s32.totalorder %v1017, %v1455
        %v1460 = vsel %vm1456, 1, 0
        %v1461 = vsel %vm1457, 1, 0
        %v1462 = vsel %vm1458, 1, 0
        %v1463 = vsel %vm1459, 1, 0
        %v1464 = vcvt.s32.f32 %v1460
        %v1465 = vcvt.s32.f32 %v1461
        %v1466 = vcvt.s32.f32 %v1462
        %v1467 = vcvt.s32.f32 %v1463
        %v1468 = vmax.f32 %v1464, 0.0
        %v1469 = vmax.f32 %v1465, 0.0
        %v1470 = vmax.f32 %v1466, 0.0
        %v1471 = vmax.f32 %v1467, 0.0
        %v1472 = vsel %vm1456, -3e+38, %v1371
        %v1473 = vsel %vm1457, -3e+38, %v1372
        %v1474 = vsel %vm1458, -3e+38, %v1373
        %v1475 = vsel %vm1459, -3e+38, %v1374
        %v1476 = vsel %vm1375, %v1472, -inf
        %1477 = vmax.xlane.f32.xlu0 %v1476
        %v1478 = vpop.xlane.xlu0 %1477
        %v1479 = vsel %vm1375, %v1473, -inf
        %1480 = vmax.xlane.f32.xlu0 %v1479
        %v1481 = vpop.xlane.xlu0 %1480
        %v1482 = vsel %vm1375, %v1474, -inf
        %1483 = vmax.xlane.f32.xlu0 %v1482
        %v1484 = vpop.xlane.xlu0 %1483
        %v1485 = vsel %vm1375, %v1475, -inf
        %1486 = vmax.xlane.f32.xlu0 %v1485
        %v1487 = vpop.xlane.xlu0 %1486
        %vm1488 = vcmp.eq.f32.partialorder %v1472, %v1478
        %vm1489 = vcmp.eq.f32.partialorder %v1473, %v1481
        %vm1490 = vcmp.eq.f32.partialorder %v1474, %v1484
        %vm1491 = vcmp.eq.f32.partialorder %v1475, %v1487
        %v1492 = vsel %vm1488, %v1017, 8
        %v1493 = vsel %vm1489, %v1017, 8
        %v1494 = vsel %vm1490, %v1017, 8
        %v1495 = vsel %vm1491, %v1017, 8
        %v1496 = vsel %vm1375, %v1492, 2147483647
        %v1497 = vand.u32 %v1496, 65535
        %v1498 = vshra.s32 %v1496, 16
        %v1499 = vcvt.s32.f32 %v1497
        %v1500 = vcvt.s32.f32 %v1498
        %1501 = vmin.xlane.f32.xlu0 %v1500
        %v1502 = vpop.xlane.xlu0 %1501
        %vm1503 = vcmp.eq.f32.partialorder %v1500, %v1502
        %v1504 = vsel %vm1503, %v1499, inf
        %1505 = vmin.xlane.f32.xlu0 %v1504
        %v1506 = vpop.xlane.xlu0 %1505
        %v1507 = vcvt.f32.s32 %v1506
        %v1508 = vcvt.f32.s32 %v1502
        %v1509 = vshll.u32 %v1508, 16
        %v1510 = vadd.s32 %v1509, %v1507
        %v1511 = vsel %vm1375, %v1493, 2147483647
        %v1512 = vand.u32 %v1511, 65535
        %v1513 = vshra.s32 %v1511, 16
        %v1514 = vcvt.s32.f32 %v1512
        %v1515 = vcvt.s32.f32 %v1513
        %1516 = vmin.xlane.f32.xlu0 %v1515
        %v1517 = vpop.xlane.xlu0 %1516
        %vm1518 = vcmp.eq.f32.partialorder %v1515, %v1517
        %v1519 = vsel %vm1518, %v1514, inf
        %1520 = vmin.xlane.f32.xlu0 %v1519
        %v1521 = vpop.xlane.xlu0 %1520
        %v1522 = vcvt.f32.s32 %v1521
        %v1523 = vcvt.f32.s32 %v1517
        %v1524 = vshll.u32 %v1523, 16
        %v1525 = vadd.s32 %v1524, %v1522
        %v1526 = vsel %vm1375, %v1494, 2147483647
        %v1527 = vand.u32 %v1526, 65535
        %v1528 = vshra.s32 %v1526, 16
        %v1529 = vcvt.s32.f32 %v1527
        %v1530 = vcvt.s32.f32 %v1528
        %1531 = vmin.xlane.f32.xlu0 %v1530
        %v1532 = vpop.xlane.xlu0 %1531
        %vm1533 = vcmp.eq.f32.partialorder %v1530, %v1532
        %v1534 = vsel %vm1533, %v1529, inf
        %1535 = vmin.xlane.f32.xlu0 %v1534
        %v1536 = vpop.xlane.xlu0 %1535
        %v1537 = vcvt.f32.s32 %v1536
        %v1538 = vcvt.f32.s32 %v1532
        %v1539 = vshll.u32 %v1538, 16
        %v1540 = vadd.s32 %v1539, %v1537
        %v1541 = vsel %vm1375, %v1495, 2147483647
        %v1542 = vand.u32 %v1541, 65535
        %v1543 = vshra.s32 %v1541, 16
        %v1544 = vcvt.s32.f32 %v1542
        %v1545 = vcvt.s32.f32 %v1543
        %1546 = vmin.xlane.f32.xlu0 %v1545
        %v1547 = vpop.xlane.xlu0 %1546
        %vm1548 = vcmp.eq.f32.partialorder %v1545, %v1547
        %v1549 = vsel %vm1548, %v1544, inf
        %1550 = vmin.xlane.f32.xlu0 %v1549
        %v1551 = vpop.xlane.xlu0 %1550
        %v1552 = vcvt.f32.s32 %v1551
        %v1553 = vcvt.f32.s32 %v1547
        %v1554 = vshll.u32 %v1553, 16
        %v1555 = vadd.s32 %v1554, %v1552
        %vm1556 = vcmp.eq.s32.totalorder %v1017, %v1510
        %vm1557 = vcmp.eq.s32.totalorder %v1017, %v1525
        %vm1558 = vcmp.eq.s32.totalorder %v1017, %v1540
        %vm1559 = vcmp.eq.s32.totalorder %v1017, %v1555
        %v1560 = vsel %vm1556, 1, 0
        %v1561 = vsel %vm1557, 1, 0
        %v1562 = vsel %vm1558, 1, 0
        %v1563 = vsel %vm1559, 1, 0
        %v1564 = vcvt.s32.f32 %v1560
        %v1565 = vcvt.s32.f32 %v1561
        %v1566 = vcvt.s32.f32 %v1562
        %v1567 = vcvt.s32.f32 %v1563
        %v1568 = vmax.f32 %v1468, %v1564
        %v1569 = vmax.f32 %v1469, %v1565
        %v1570 = vmax.f32 %v1470, %v1566
        %v1571 = vmax.f32 %v1471, %v1567
        %v1572 = vsel %vm1556, -3e+38, %v1472
        %v1573 = vsel %vm1557, -3e+38, %v1473
        %v1574 = vsel %vm1558, -3e+38, %v1474
        %v1575 = vsel %vm1559, -3e+38, %v1475
        %v1576 = vsel %vm1375, %v1572, -inf
        %1577 = vmax.xlane.f32.xlu0 %v1576
        %v1578 = vpop.xlane.xlu0 %1577
        %v1579 = vsel %vm1375, %v1573, -inf
        %1580 = vmax.xlane.f32.xlu0 %v1579
        %v1581 = vpop.xlane.xlu0 %1580
        %v1582 = vsel %vm1375, %v1574, -inf
        %1583 = vmax.xlane.f32.xlu0 %v1582
        %v1584 = vpop.xlane.xlu0 %1583
        %v1585 = vsel %vm1375, %v1575, -inf
        %1586 = vmax.xlane.f32.xlu0 %v1585
        %v1587 = vpop.xlane.xlu0 %1586
        %vm1588 = vcmp.eq.f32.partialorder %v1572, %v1578
        %vm1589 = vcmp.eq.f32.partialorder %v1573, %v1581
        %vm1590 = vcmp.eq.f32.partialorder %v1574, %v1584
        %vm1591 = vcmp.eq.f32.partialorder %v1575, %v1587
        %v1592 = vsel %vm1588, %v1017, 8
        %v1593 = vsel %vm1589, %v1017, 8
        %v1594 = vsel %vm1590, %v1017, 8
        %v1595 = vsel %vm1591, %v1017, 8
        %v1596 = vsel %vm1375, %v1592, 2147483647
        %v1597 = vand.u32 %v1596, 65535
        %v1598 = vshra.s32 %v1596, 16
        %v1599 = vcvt.s32.f32 %v1597
        %v1600 = vcvt.s32.f32 %v1598
        %1601 = vmin.xlane.f32.xlu0 %v1600
        %v1602 = vpop.xlane.xlu0 %1601
        %vm1603 = vcmp.eq.f32.partialorder %v1600, %v1602
        %v1604 = vsel %vm1603, %v1599, inf
        %1605 = vmin.xlane.f32.xlu0 %v1604
        %v1606 = vpop.xlane.xlu0 %1605
        %v1607 = vcvt.f32.s32 %v1606
        %v1608 = vcvt.f32.s32 %v1602
        %v1609 = vshll.u32 %v1608, 16
        %v1610 = vadd.s32 %v1609, %v1607
        %v1611 = vsel %vm1375, %v1593, 2147483647
        %v1612 = vand.u32 %v1611, 65535
        %v1613 = vshra.s32 %v1611, 16
        %v1614 = vcvt.s32.f32 %v1612
        %v1615 = vcvt.s32.f32 %v1613
        %1616 = vmin.xlane.f32.xlu0 %v1615
        %v1617 = vpop.xlane.xlu0 %1616
        %vm1618 = vcmp.eq.f32.partialorder %v1615, %v1617
        %v1619 = vsel %vm1618, %v1614, inf
        %1620 = vmin.xlane.f32.xlu0 %v1619
        %v1621 = vpop.xlane.xlu0 %1620
        %v1622 = vcvt.f32.s32 %v1621
        %v1623 = vcvt.f32.s32 %v1617
        %v1624 = vshll.u32 %v1623, 16
        %v1625 = vadd.s32 %v1624, %v1622
        %v1626 = vsel %vm1375, %v1594, 2147483647
        %v1627 = vand.u32 %v1626, 65535
        %v1628 = vshra.s32 %v1626, 16
        %v1629 = vcvt.s32.f32 %v1627
        %v1630 = vcvt.s32.f32 %v1628
        %1631 = vmin.xlane.f32.xlu0 %v1630
        %v1632 = vpop.xlane.xlu0 %1631
        %vm1633 = vcmp.eq.f32.partialorder %v1630, %v1632
        %v1634 = vsel %vm1633, %v1629, inf
        %1635 = vmin.xlane.f32.xlu0 %v1634
        %v1636 = vpop.xlane.xlu0 %1635
        %v1637 = vcvt.f32.s32 %v1636
        %v1638 = vcvt.f32.s32 %v1632
        %v1639 = vshll.u32 %v1638, 16
        %v1640 = vadd.s32 %v1639, %v1637
        %v1641 = vsel %vm1375, %v1595, 2147483647
        %v1642 = vand.u32 %v1641, 65535
        %v1643 = vshra.s32 %v1641, 16
        %v1644 = vcvt.s32.f32 %v1642
        %v1645 = vcvt.s32.f32 %v1643
        %1646 = vmin.xlane.f32.xlu0 %v1645
        %v1647 = vpop.xlane.xlu0 %1646
        %vm1648 = vcmp.eq.f32.partialorder %v1645, %v1647
        %v1649 = vsel %vm1648, %v1644, inf
        %1650 = vmin.xlane.f32.xlu0 %v1649
        %v1651 = vpop.xlane.xlu0 %1650
        %v1652 = vcvt.f32.s32 %v1651
        %v1653 = vcvt.f32.s32 %v1647
        %v1654 = vshll.u32 %v1653, 16
        %v1655 = vadd.s32 %v1654, %v1652
        %vm1656 = vcmp.eq.s32.totalorder %v1017, %v1610
        %vm1657 = vcmp.eq.s32.totalorder %v1017, %v1625
        %vm1658 = vcmp.eq.s32.totalorder %v1017, %v1640
        %vm1659 = vcmp.eq.s32.totalorder %v1017, %v1655
        %v1660 = vsel %vm1656, 1, 0
        %v1661 = vsel %vm1657, 1, 0
        %v1662 = vsel %vm1658, 1, 0
        %v1663 = vsel %vm1659, 1, 0
        %v1664 = vcvt.s32.f32 %v1660
        %v1665 = vcvt.s32.f32 %v1661
        %v1666 = vcvt.s32.f32 %v1662
        %v1667 = vcvt.s32.f32 %v1663
        %v1668 = vmax.f32 %v1568, %v1664
        %v1669 = vmax.f32 %v1569, %v1665
        %v1670 = vmax.f32 %v1570, %v1666
        %v1671 = vmax.f32 %v1571, %v1667
        %vm1672 = vcmp.gt.f32.partialorder %v1371, -1e+10
        %vm1673 = vcmp.gt.f32.partialorder %v1372, -1e+10
        %vm1674 = vcmp.gt.f32.partialorder %v1373, -1e+10
        %vm1675 = vcmp.gt.f32.partialorder %v1374, -1e+10
        %v1676 = vsel %vm1672, 1, 0
        %v1677 = vsel %vm1673, 1, 0
        %v1678 = vsel %vm1674, 1, 0
        %v1679 = vsel %vm1675, 1, 0
        %v1680 = vcvt.s32.f32 %v1676
        %v1681 = vcvt.s32.f32 %v1677
        %v1682 = vcvt.s32.f32 %v1678
        %v1683 = vcvt.s32.f32 %v1679
        %v1684 = vmul.f32 %v1668, %v1680
        %v1685 = vmul.f32 %v1669, %v1681
        %v1686 = vmul.f32 %v1670, %v1682
        %v1687 = vmul.f32 %v1671, %v1683
        %v1688 = vpack.c.bf16 %v1684, %v1684
        %v1689 = vpack.c.bf16 %v1685, %v1685
        %v1690 = vpack.c.bf16 %v1686, %v1686
        %v1691 = vpack.c.bf16 %v1687, %v1687
        %v1693 = vsel %vm1375, %v1354, 0
        %v1696 = vsel %vm1375, %v1688, 0
        %1698 = vmatprep.subr.bf16.mxu0 0
        %1699 = vmatpush1.bf16.xpose.msra.mxu0 0
        %1700 = vmatprep.subr.bf16.mxu0 0
        %1701 = vmatpush1.bf16.xpose.msra.mxu0 0
        %1702 = vmatprep.subr.bf16.mxu0 0
        %1703 = vmatpush1.bf16.xpose.msra.mxu0 0
        %1704 = vmatprep.subr.bf16.mxu0 0
        %1705 = vmatpush1.bf16.xpose.msra.mxu0 0
        %1706 = vmatprep.subr.bf16.mxu0 0
        %1707 = vmatpush1.bf16.xpose.msra.mxu0 0
        %1708 = vmatprep.subr.bf16.mxu0 0
        %1709 = vmatpush1.bf16.xpose.msra.mxu0 0
        %1710 = vmatprep.subr.bf16.mxu0 0
        %1711 = vmatpush1.bf16.xpose.msra.mxu0 0
        %1712 = vmatprep.subr.bf16.mxu0 0
        %1713 = vmatpush1.bf16.xpose.msra.mxu0 %v1696
        %1714 = vmatprep.subr.bf16.mxu0 0
        %1715 = vmatpush2.bf16.xpose.msra.mxu0 0
        %1716 = vmatprep.subr.bf16.mxu0 0
        %1717 = vmatpush2.bf16.xpose.msra.mxu0 0
        %1718 = vmatprep.subr.bf16.mxu0 0
        %1719 = vmatpush2.bf16.xpose.msra.mxu0 0
        %1720 = vmatprep.subr.bf16.mxu0 0
        %1721 = vmatpush2.bf16.xpose.msra.mxu0 0
        %1722 = vmatprep.subr.bf16.mxu0 0
        %1723 = vmatpush2.bf16.xpose.msra.mxu0 0
        %1724 = vmatprep.subr.bf16.mxu0 0
        %1725 = vmatpush2.bf16.xpose.msra.mxu0 0
        %1726 = vmatprep.subr.bf16.mxu0 0
        %1727 = vmatpush2.bf16.xpose.msra.mxu0 0
        %1728 = vmatprep.subr.bf16.mxu0 0
        %1729 = vmatpush2.bf16.xpose.msra.mxu0 0
        %1730 = vmatprep.mubr.bf16.mxu0 0
        %1731 = vmatmul.mubr.bf16.gmra.mxu0 %v1693
        %v1732 = vpop.f32.mrf.mxu0
        %v1733 = vadd.f32 0.0, %v1732
        %v1734 = vpop.f32.mrf.mxu0
        %v1735 = vpop.f32.mrf.mxu0
        %v1736 = vpop.f32.mrf.mxu0
        %1737 = vdwg.mxu0
        %v1739 = vsel %vm1375, %v1689, 0
        %1741 = vmatprep.subr.bf16.mxu0 0
        %1742 = vmatpush1.bf16.xpose.msra.mxu0 0
        %1743 = vmatprep.subr.bf16.mxu0 0
        %1744 = vmatpush1.bf16.xpose.msra.mxu0 0
        %1745 = vmatprep.subr.bf16.mxu0 0
        %1746 = vmatpush1.bf16.xpose.msra.mxu0 0
        %1747 = vmatprep.subr.bf16.mxu0 0
        %1748 = vmatpush1.bf16.xpose.msra.mxu0 0
        %1749 = vmatprep.subr.bf16.mxu0 0
        %1750 = vmatpush1.bf16.xpose.msra.mxu0 0
        %1751 = vmatprep.subr.bf16.mxu0 0
        %1752 = vmatpush1.bf16.xpose.msra.mxu0 0
        %1753 = vmatprep.subr.bf16.mxu0 0
        %1754 = vmatpush1.bf16.xpose.msra.mxu0 0
        %1755 = vmatprep.subr.bf16.mxu0 0
        %1756 = vmatpush1.bf16.xpose.msra.mxu0 %v1739
        %1757 = vmatprep.subr.bf16.mxu0 0
        %1758 = vmatpush2.bf16.xpose.msra.mxu0 0
        %1759 = vmatprep.subr.bf16.mxu0 0
        %1760 = vmatpush2.bf16.xpose.msra.mxu0 0
        %1761 = vmatprep.subr.bf16.mxu0 0
        %1762 = vmatpush2.bf16.xpose.msra.mxu0 0
        %1763 = vmatprep.subr.bf16.mxu0 0
        %1764 = vmatpush2.bf16.xpose.msra.mxu0 0
        %1765 = vmatprep.subr.bf16.mxu0 0
        %1766 = vmatpush2.bf16.xpose.msra.mxu0 0
        %1767 = vmatprep.subr.bf16.mxu0 0
        %1768 = vmatpush2.bf16.xpose.msra.mxu0 0
        %1769 = vmatprep.subr.bf16.mxu0 0
        %1770 = vmatpush2.bf16.xpose.msra.mxu0 0
        %1771 = vmatprep.subr.bf16.mxu0 0
        %1772 = vmatpush2.bf16.xpose.msra.mxu0 0
        %1773 = vmatprep.mubr.bf16.mxu0 0
        %1774 = vmatmul.mubr.bf16.gmra.mxu0 %v1693
        %v1775 = vpop.f32.mrf.mxu0
        %v1776 = vadd.f32 0.0, %v1775
        %v1777 = vpop.f32.mrf.mxu0
        %v1778 = vpop.f32.mrf.mxu0
        %v1779 = vpop.f32.mrf.mxu0
        %1780 = vdwg.mxu0
        %v1782 = vsel %vm1375, %v1690, 0
        %1784 = vmatprep.subr.bf16.mxu0 0
        %1785 = vmatpush1.bf16.xpose.msra.mxu0 0
        %1786 = vmatprep.subr.bf16.mxu0 0
        %1787 = vmatpush1.bf16.xpose.msra.mxu0 0
        %1788 = vmatprep.subr.bf16.mxu0 0
        %1789 = vmatpush1.bf16.xpose.msra.mxu0 0
        %1790 = vmatprep.subr.bf16.mxu0 0
        %1791 = vmatpush1.bf16.xpose.msra.mxu0 0
        %1792 = vmatprep.subr.bf16.mxu0 0
        %1793 = vmatpush1.bf16.xpose.msra.mxu0 0
        %1794 = vmatprep.subr.bf16.mxu0 0
        %1795 = vmatpush1.bf16.xpose.msra.mxu0 0
        %1796 = vmatprep.subr.bf16.mxu0 0
        %1797 = vmatpush1.bf16.xpose.msra.mxu0 0
        %1798 = vmatprep.subr.bf16.mxu0 0
        %1799 = vmatpush1.bf16.xpose.msra.mxu0 %v1782
        %1800 = vmatprep.subr.bf16.mxu0 0
        %1801 = vmatpush2.bf16.xpose.msra.mxu0 0
        %1802 = vmatprep.subr.bf16.mxu0 0
        %1803 = vmatpush2.bf16.xpose.msra.mxu0 0
        %1804 = vmatprep.subr.bf16.mxu0 0
        %1805 = vmatpush2.bf16.xpose.msra.mxu0 0
        %1806 = vmatprep.subr.bf16.mxu0 0
        %1807 = vmatpush2.bf16.xpose.msra.mxu0 0
        %1808 = vmatprep.subr.bf16.mxu0 0
        %1809 = vmatpush2.bf16.xpose.msra.mxu0 0
        %1810 = vmatprep.subr.bf16.mxu0 0
        %1811 = vmatpush2.bf16.xpose.msra.mxu0 0
        %1812 = vmatprep.subr.bf16.mxu0 0
        %1813 = vmatpush2.bf16.xpose.msra.mxu0 0
        %1814 = vmatprep.subr.bf16.mxu0 0
        %1815 = vmatpush2.bf16.xpose.msra.mxu0 0
        %1816 = vmatprep.mubr.bf16.mxu0 0
        %1817 = vmatmul.mubr.bf16.gmra.mxu0 %v1693
        %v1818 = vpop.f32.mrf.mxu0
        %v1819 = vadd.f32 0.0, %v1818
        %v1820 = vpop.f32.mrf.mxu0
        %v1821 = vpop.f32.mrf.mxu0
        %v1822 = vpop.f32.mrf.mxu0
        %1823 = vdwg.mxu0
        %v1825 = vsel %vm1375, %v1691, 0
        %1827 = vmatprep.subr.bf16.mxu0 0
        %1828 = vmatpush1.bf16.xpose.msra.mxu0 0
        %1829 = vmatprep.subr.bf16.mxu0 0
        %1830 = vmatpush1.bf16.xpose.msra.mxu0 0
        %1831 = vmatprep.subr.bf16.mxu0 0
        %1832 = vmatpush1.bf16.xpose.msra.mxu0 0
        %1833 = vmatprep.subr.bf16.mxu0 0
        %1834 = vmatpush1.bf16.xpose.msra.mxu0 0
        %1835 = vmatprep.subr.bf16.mxu0 0
        %1836 = vmatpush1.bf16.xpose.msra.mxu0 0
        %1837 = vmatprep.subr.bf16.mxu0 0
        %1838 = vmatpush1.bf16.xpose.msra.mxu0 0
        %1839 = vmatprep.subr.bf16.mxu0 0
        %1840 = vmatpush1.bf16.xpose.msra.mxu0 0
        %1841 = vmatprep.subr.bf16.mxu0 0
        %1842 = vmatpush1.bf16.xpose.msra.mxu0 %v1825
        %1843 = vmatprep.subr.bf16.mxu0 0
        %1844 = vmatpush2.bf16.xpose.msra.mxu0 0
        %1845 = vmatprep.subr.bf16.mxu0 0
        %1846 = vmatpush2.bf16.xpose.msra.mxu0 0
        %1847 = vmatprep.subr.bf16.mxu0 0
        %1848 = vmatpush2.bf16.xpose.msra.mxu0 0
        %1849 = vmatprep.subr.bf16.mxu0 0
        %1850 = vmatpush2.bf16.xpose.msra.mxu0 0
        %1851 = vmatprep.subr.bf16.mxu0 0
        %1852 = vmatpush2.bf16.xpose.msra.mxu0 0
        %1853 = vmatprep.subr.bf16.mxu0 0
        %1854 = vmatpush2.bf16.xpose.msra.mxu0 0
        %1855 = vmatprep.subr.bf16.mxu0 0
        %1856 = vmatpush2.bf16.xpose.msra.mxu0 0
        %1857 = vmatprep.subr.bf16.mxu0 0
        %1858 = vmatpush2.bf16.xpose.msra.mxu0 0
        %1859 = vmatprep.mubr.bf16.mxu0 0
        %1860 = vmatmul.mubr.bf16.gmra.mxu0 %v1693
        %v1861 = vpop.f32.mrf.mxu0
        %v1862 = vadd.f32 0.0, %v1861
        %v1863 = vpop.f32.mrf.mxu0
        %v1864 = vpop.f32.mrf.mxu0
        %v1865 = vpop.f32.mrf.mxu0
        %1866 = vdwg.mxu0
        %v1867 = vsub.f32 %v1371, %v1378
        %v1868 = vsub.f32 %v1372, %v1381
        %v1869 = vsub.f32 %v1373, %v1384
        %v1870 = vsub.f32 %v1374, %v1387
        %v1871 = vmul.f32 %v1867, 1.442695
        %v1872 = vpow.pop %v1871
        %v1873 = vmul.f32 %v1868, 1.442695
        %v1874 = vpow.pop %v1873
        %v1875 = vmul.f32 %v1869, 1.442695
        %v1876 = vpow.pop %v1875
        %v1877 = vmul.f32 %v1870, 1.442695
        %v1878 = vpow.pop %v1877
        %v1879 = vsel %vm1375, %v1872, 0.0
        %1880 = vadd.xlane.f32.xlu0 %v1879
        %v1881 = vpop.xlane.xlu0 %1880
        %v1882 = vsel %vm1375, %v1874, 0.0
        %1883 = vadd.xlane.f32.xlu0 %v1882
        %v1884 = vpop.xlane.xlu0 %1883
        %v1885 = vsel %vm1375, %v1876, 0.0
        %1886 = vadd.xlane.f32.xlu0 %v1885
        %v1887 = vpop.xlane.xlu0 %1886
        %v1888 = vsel %vm1375, %v1878, 0.0
        %1889 = vadd.xlane.f32.xlu0 %v1888
        %v1890 = vpop.xlane.xlu0 %1889
        %v1891 = vrcp.pop %v1881
        %v1892 = vrcp.pop %v1884
        %v1893 = vrcp.pop %v1887
        %v1894 = vrcp.pop %v1890
        %v1895 = vmul.f32 %v1872, %v1891
        %v1896 = vmul.f32 %v1874, %v1892
        %v1897 = vmul.f32 %v1876, %v1893
        %v1898 = vmul.f32 %v1878, %v1894
        %v1899 = vmul.f32 %v1733, %v1895
        %v1900 = vmul.f32 %v1776, %v1896
        %v1901 = vmul.f32 %v1819, %v1897
        %v1902 = vmul.f32 %v1862, %v1898
        %v1903 = vpack.c.bf16 %v1899, %v1899
        %v1904 = vpack.c.bf16 %v1900, %v1900
        %v1905 = vpack.c.bf16 %v1901, %v1901
        %v1906 = vpack.c.bf16 %v1902, %v1902
        %v1908 = vsel %vm1375, %v1903, 0
        %vm1910 = vcmask 1043456
        %v1911 = vsel %vm1910, %v761, 0
        %1913 = vmatprep.subr.bf16.mxu0 0
        %1914 = vmatpush1.bf16.msra.mxu0 0
        %1915 = vmatprep.subr.bf16.mxu0 0
        %1916 = vmatpush1.bf16.msra.mxu0 0
        %1917 = vmatprep.subr.bf16.mxu0 0
        %1918 = vmatpush1.bf16.msra.mxu0 0
        %1919 = vmatprep.subr.bf16.mxu0 0
        %1920 = vmatpush1.bf16.msra.mxu0 0
        %1921 = vmatprep.subr.bf16.mxu0 0
        %1922 = vmatpush1.bf16.msra.mxu0 0
        %1923 = vmatprep.subr.bf16.mxu0 0
        %1924 = vmatpush1.bf16.msra.mxu0 0
        %1925 = vmatprep.subr.bf16.mxu0 0
        %1926 = vmatpush1.bf16.msra.mxu0 0
        %1927 = vmatprep.subr.bf16.mxu0 0
        %1928 = vmatpush1.bf16.msra.mxu0 %v1911
        %1929 = vmatprep.subr.bf16.mxu0 0
        %1930 = vmatpush2.bf16.msra.mxu0 0
        %1931 = vmatprep.subr.bf16.mxu0 0
        %1932 = vmatpush2.bf16.msra.mxu0 0
        %1933 = vmatprep.subr.bf16.mxu0 0
        %1934 = vmatpush2.bf16.msra.mxu0 0
        %1935 = vmatprep.subr.bf16.mxu0 0
        %1936 = vmatpush2.bf16.msra.mxu0 0
        %1937 = vmatprep.subr.bf16.mxu0 0
        %1938 = vmatpush2.bf16.msra.mxu0 0
        %1939 = vmatprep.subr.bf16.mxu0 0
        %1940 = vmatpush2.bf16.msra.mxu0 0
        %1941 = vmatprep.subr.bf16.mxu0 0
        %1942 = vmatpush2.bf16.msra.mxu0 0
        %1943 = vmatprep.subr.bf16.mxu0 0
        %1944 = vmatpush2.bf16.msra.mxu0 0
        %1945 = vmatprep.mubr.bf16.mxu0 0
        %1946 = vmatmul.mubr.bf16.gmra.mxu0 %v1908
        %v1947 = vpop.f32.mrf.mxu0
        %v1948 = vadd.f32 0.0, %v1947
        %v1949 = vpop.f32.mrf.mxu0
        %v1950 = vpop.f32.mrf.mxu0
        %v1951 = vpop.f32.mrf.mxu0
        %1952 = vdwg.mxu0
        %v1954 = vsel %vm1375, %v1904, 0
        %v1956 = vsel %vm1910, %v762, 0
        %1958 = vmatprep.subr.bf16.mxu0 0
        %1959 = vmatpush1.bf16.msra.mxu0 0
        %1960 = vmatprep.subr.bf16.mxu0 0
        %1961 = vmatpush1.bf16.msra.mxu0 0
        %1962 = vmatprep.subr.bf16.mxu0 0
        %1963 = vmatpush1.bf16.msra.mxu0 0
        %1964 = vmatprep.subr.bf16.mxu0 0
        %1965 = vmatpush1.bf16.msra.mxu0 0
        %1966 = vmatprep.subr.bf16.mxu0 0
        %1967 = vmatpush1.bf16.msra.mxu0 0
        %1968 = vmatprep.subr.bf16.mxu0 0
        %1969 = vmatpush1.bf16.msra.mxu0 0
        %1970 = vmatprep.subr.bf16.mxu0 0
        %1971 = vmatpush1.bf16.msra.mxu0 0
        %1972 = vmatprep.subr.bf16.mxu0 0
        %1973 = vmatpush1.bf16.msra.mxu0 %v1956
        %1974 = vmatprep.subr.bf16.mxu0 0
        %1975 = vmatpush2.bf16.msra.mxu0 0
        %1976 = vmatprep.subr.bf16.mxu0 0
        %1977 = vmatpush2.bf16.msra.mxu0 0
        %1978 = vmatprep.subr.bf16.mxu0 0
        %1979 = vmatpush2.bf16.msra.mxu0 0
        %1980 = vmatprep.subr.bf16.mxu0 0
        %1981 = vmatpush2.bf16.msra.mxu0 0
        %1982 = vmatprep.subr.bf16.mxu0 0
        %1983 = vmatpush2.bf16.msra.mxu0 0
        %1984 = vmatprep.subr.bf16.mxu0 0
        %1985 = vmatpush2.bf16.msra.mxu0 0
        %1986 = vmatprep.subr.bf16.mxu0 0
        %1987 = vmatpush2.bf16.msra.mxu0 0
        %1988 = vmatprep.subr.bf16.mxu0 0
        %1989 = vmatpush2.bf16.msra.mxu0 0
        %1990 = vmatprep.mubr.bf16.mxu0 0
        %1991 = vmatmul.mubr.bf16.gmra.mxu0 %v1954
        %v1992 = vpop.f32.mrf.mxu0
        %v1993 = vadd.f32 0.0, %v1992
        %v1994 = vpop.f32.mrf.mxu0
        %v1995 = vpop.f32.mrf.mxu0
        %v1996 = vpop.f32.mrf.mxu0
        %1997 = vdwg.mxu0
        %v1999 = vsel %vm1375, %v1905, 0
        %v2001 = vsel %vm1910, %v763, 0
        %2003 = vmatprep.subr.bf16.mxu0 0
        %2004 = vmatpush1.bf16.msra.mxu0 0
        %2005 = vmatprep.subr.bf16.mxu0 0
        %2006 = vmatpush1.bf16.msra.mxu0 0
        %2007 = vmatprep.subr.bf16.mxu0 0
        %2008 = vmatpush1.bf16.msra.mxu0 0
        %2009 = vmatprep.subr.bf16.mxu0 0
        %2010 = vmatpush1.bf16.msra.mxu0 0
        %2011 = vmatprep.subr.bf16.mxu0 0
        %2012 = vmatpush1.bf16.msra.mxu0 0
        %2013 = vmatprep.subr.bf16.mxu0 0
        %2014 = vmatpush1.bf16.msra.mxu0 0
        %2015 = vmatprep.subr.bf16.mxu0 0
        %2016 = vmatpush1.bf16.msra.mxu0 0
        %2017 = vmatprep.subr.bf16.mxu0 0
        %2018 = vmatpush1.bf16.msra.mxu0 %v2001
        %2019 = vmatprep.subr.bf16.mxu0 0
        %2020 = vmatpush2.bf16.msra.mxu0 0
        %2021 = vmatprep.subr.bf16.mxu0 0
        %2022 = vmatpush2.bf16.msra.mxu0 0
        %2023 = vmatprep.subr.bf16.mxu0 0
        %2024 = vmatpush2.bf16.msra.mxu0 0
        %2025 = vmatprep.subr.bf16.mxu0 0
        %2026 = vmatpush2.bf16.msra.mxu0 0
        %2027 = vmatprep.subr.bf16.mxu0 0
        %2028 = vmatpush2.bf16.msra.mxu0 0
        %2029 = vmatprep.subr.bf16.mxu0 0
        %2030 = vmatpush2.bf16.msra.mxu0 0
        %2031 = vmatprep.subr.bf16.mxu0 0
        %2032 = vmatpush2.bf16.msra.mxu0 0
        %2033 = vmatprep.subr.bf16.mxu0 0
        %2034 = vmatpush2.bf16.msra.mxu0 0
        %2035 = vmatprep.mubr.bf16.mxu0 0
        %2036 = vmatmul.mubr.bf16.gmra.mxu0 %v1999
        %v2037 = vpop.f32.mrf.mxu0
        %v2038 = vadd.f32 0.0, %v2037
        %v2039 = vpop.f32.mrf.mxu0
        %v2040 = vpop.f32.mrf.mxu0
        %v2041 = vpop.f32.mrf.mxu0
        %2042 = vdwg.mxu0
        %v2044 = vsel %vm1375, %v1906, 0
        %v2046 = vsel %vm1910, %v764, 0
        %2048 = vmatprep.subr.bf16.mxu0 0
        %2049 = vmatpush1.bf16.msra.mxu0 0
        %2050 = vmatprep.subr.bf16.mxu0 0
        %2051 = vmatpush1.bf16.msra.mxu0 0
        %2052 = vmatprep.subr.bf16.mxu0 0
        %2053 = vmatpush1.bf16.msra.mxu0 0
        %2054 = vmatprep.subr.bf16.mxu0 0
        %2055 = vmatpush1.bf16.msra.mxu0 0
        %2056 = vmatprep.subr.bf16.mxu0 0
        %2057 = vmatpush1.bf16.msra.mxu0 0
        %2058 = vmatprep.subr.bf16.mxu0 0
        %2059 = vmatpush1.bf16.msra.mxu0 0
        %2060 = vmatprep.subr.bf16.mxu0 0
        %2061 = vmatpush1.bf16.msra.mxu0 0
        %2062 = vmatprep.subr.bf16.mxu0 0
        %2063 = vmatpush1.bf16.msra.mxu0 %v2046
        %2064 = vmatprep.subr.bf16.mxu0 0
        %2065 = vmatpush2.bf16.msra.mxu0 0
        %2066 = vmatprep.subr.bf16.mxu0 0
        %2067 = vmatpush2.bf16.msra.mxu0 0
        %2068 = vmatprep.subr.bf16.mxu0 0
        %2069 = vmatpush2.bf16.msra.mxu0 0
        %2070 = vmatprep.subr.bf16.mxu0 0
        %2071 = vmatpush2.bf16.msra.mxu0 0
        %2072 = vmatprep.subr.bf16.mxu0 0
        %2073 = vmatpush2.bf16.msra.mxu0 0
        %2074 = vmatprep.subr.bf16.mxu0 0
        %2075 = vmatpush2.bf16.msra.mxu0 0
        %2076 = vmatprep.subr.bf16.mxu0 0
        %2077 = vmatpush2.bf16.msra.mxu0 0
        %2078 = vmatprep.subr.bf16.mxu0 0
        %2079 = vmatpush2.bf16.msra.mxu0 0
        %2080 = vmatprep.mubr.bf16.mxu0 0
        %2081 = vmatmul.mubr.bf16.gmra.mxu0 %v2044
        %v2082 = vpop.f32.mrf.mxu0
        %v2083 = vadd.f32 0.0, %v2082
        %v2084 = vpop.f32.mrf.mxu0
        %v2085 = vpop.f32.mrf.mxu0
        %v2086 = vpop.f32.mrf.mxu0
        %2087 = vdwg.mxu0
        %v2088 = vsel %vm1375, %v1899, 0.0
        %2089 = vadd.xlane.f32.xlu0 %v2088
        %v2090 = vpop.xlane.xlu0 %2089
        %v2091 = vsel %vm1375, %v1900, 0.0
        %2092 = vadd.xlane.f32.xlu0 %v2091
        %v2093 = vpop.xlane.xlu0 %2092
        %v2094 = vsel %vm1375, %v1901, 0.0
        %2095 = vadd.xlane.f32.xlu0 %v2094
        %v2096 = vpop.xlane.xlu0 %2095
        %v2097 = vsel %vm1375, %v1902, 0.0
        %2098 = vadd.xlane.f32.xlu0 %v2097
        %v2099 = vpop.xlane.xlu0 %2098
        %v2100 = vmul.f32 %v2090, %v2090
        %v2101 = vmul.f32 %v2093, %v2093
        %v2102 = vmul.f32 %v2096, %v2096
        %v2103 = vmul.f32 %v2099, %v2099
        %v2104 = vrot.slane %v2100, 4
        %v2105 = vadd.f32 %v2100, %v2104
        %v2106 = vrot.slane %v2105, 2
        %v2107 = vadd.f32 %v2105, %v2106
        %v2108 = vrot.slane %v2107, 1
        %v2109 = vadd.f32 %v2107, %v2108
        %v2110 = vrot.slane %v2101, 4
        %v2111 = vadd.f32 %v2101, %v2110
        %v2112 = vrot.slane %v2111, 2
        %v2113 = vadd.f32 %v2111, %v2112
        %v2114 = vrot.slane %v2113, 1
        %v2115 = vadd.f32 %v2113, %v2114
        %v2116 = vrot.slane %v2102, 4
        %v2117 = vadd.f32 %v2102, %v2116
        %v2118 = vrot.slane %v2117, 2
        %v2119 = vadd.f32 %v2117, %v2118
        %v2120 = vrot.slane %v2119, 1
        %v2121 = vadd.f32 %v2119, %v2120
        %v2122 = vrot.slane %v2103, 4
        %v2123 = vadd.f32 %v2103, %v2122
        %v2124 = vrot.slane %v2123, 2
        %v2125 = vadd.f32 %v2123, %v2124
        %v2126 = vrot.slane %v2125, 1
        %v2127 = vadd.f32 %v2125, %v2126
        %v2128 = vrsqrt.pop %v2109
        %v2129 = vmul.f32 %v2109, %v2128
        %vm2130 = vcmp.eq.f32.partialorder %v2109, inf
        %v2131 = vsel %vm2130, %v2109, %v2129
        %vm2132 = vcmp.eq.f32.partialorder %v2109, 0.0
        %v2133 = vand.u32 %v2109, 2147483648
        %v2134 = vsel %vm2132, %v2133, %v2131
        %v2135 = vrsqrt.pop %v2115
        %v2136 = vmul.f32 %v2115, %v2135
        %vm2137 = vcmp.eq.f32.partialorder %v2115, inf
        %v2138 = vsel %vm2137, %v2115, %v2136
        %vm2139 = vcmp.eq.f32.partialorder %v2115, 0.0
        %v2140 = vand.u32 %v2115, 2147483648
        %v2141 = vsel %vm2139, %v2140, %v2138
        %v2142 = vrsqrt.pop %v2121
        %v2143 = vmul.f32 %v2121, %v2142
        %vm2144 = vcmp.eq.f32.partialorder %v2121, inf
        %v2145 = vsel %vm2144, %v2121, %v2143
        %vm2146 = vcmp.eq.f32.partialorder %v2121, 0.0
        %v2147 = vand.u32 %v2121, 2147483648
        %v2148 = vsel %vm2146, %v2147, %v2145
        %v2149 = vrsqrt.pop %v2127
        %v2150 = vmul.f32 %v2127, %v2149
        %vm2151 = vcmp.eq.f32.partialorder %v2127, inf
        %v2152 = vsel %vm2151, %v2127, %v2150
        %vm2153 = vcmp.eq.f32.partialorder %v2127, 0.0
        %v2154 = vand.u32 %v2127, 2147483648
        %v2155 = vsel %vm2153, %v2154, %v2152
        %v2156 = vmax.f32 %v2134, 1e-12
        %v2157 = vmax.f32 %v2141, 1e-12
        %v2158 = vmax.f32 %v2148, 1e-12
        %v2159 = vmax.f32 %v2155, 1e-12
        %v2160 = vrcp.pop %v2156
        %v2161 = vrcp.pop %v2157
        %v2162 = vrcp.pop %v2158
        %v2163 = vrcp.pop %v2159
        %v2164 = vmul.f32 %v2090, %v2160
        %v2165 = vmul.f32 %v2093, %v2161
        %v2166 = vmul.f32 %v2096, %v2162
        %v2167 = vmul.f32 %v2099, %v2163
        %v2168 = vpack.c.bf16 %v1948, %v1948
        %v2169 = vpack.c.bf16 %v1993, %v1993
        %v2170 = vpack.c.bf16 %v2038, %v2038
        %v2171 = vpack.c.bf16 %v2083, %v2083
        %v2173 = vlaneseq
        %v2174 = vshrl.u32 %v2173, 7
        %v2175 = vsub.s32 0, %v2174
        %v2176 = vrot.slane %v769, %v2175
        %v2182 = vunpack.c.l.b16 %v773
        %v2183 = vunpack.c.l.b16 %v774
        %v2184 = vunpack.c.l.b16 %v775
        %v2185 = vunpack.c.l.b16 %v776
        %v2186 = vpack.c.b16 %v2183, %v2182
        %v2187 = vpack.c.b16 %v2185, %v2184
        %v2191 = vsel %vm781, %v2168, 0
        %2193 = vmatprep.subr.bf16.mxu0 0
        %2194 = vmatpush1.bf16.msra.mxu0 0
        %2195 = vmatprep.subr.bf16.mxu0 0
        %2196 = vmatpush1.bf16.msra.mxu0 0
        %2197 = vmatprep.subr.bf16.mxu0 0
        %2198 = vmatpush1.bf16.msra.mxu0 0
        %2199 = vmatprep.subr.bf16.mxu0 0
        %2200 = vmatpush1.bf16.msra.mxu0 0
        %2201 = vmatprep.subr.bf16.mxu0 0
        %2202 = vmatpush1.bf16.msra.mxu0 0
        %2203 = vmatprep.subr.bf16.mxu0 0
        %2204 = vmatpush1.bf16.msra.mxu0 0
        %2205 = vmatprep.subr.bf16.mxu0 0
        %2206 = vmatpush1.bf16.msra.mxu0 %v2187
        %2207 = vmatprep.subr.bf16.mxu0 0
        %2208 = vmatpush1.bf16.msra.mxu0 %v2186
        %2209 = vmatprep.subr.bf16.mxu0 0
        %2210 = vmatpush2.bf16.msra.mxu0 0
        %2211 = vmatprep.subr.bf16.mxu0 0
        %2212 = vmatpush2.bf16.msra.mxu0 0
        %2213 = vmatprep.subr.bf16.mxu0 0
        %2214 = vmatpush2.bf16.msra.mxu0 0
        %2215 = vmatprep.subr.bf16.mxu0 0
        %2216 = vmatpush2.bf16.msra.mxu0 0
        %2217 = vmatprep.subr.bf16.mxu0 0
        %2218 = vmatpush2.bf16.msra.mxu0 0
        %2219 = vmatprep.subr.bf16.mxu0 0
        %2220 = vmatpush2.bf16.msra.mxu0 0
        %2221 = vmatprep.subr.bf16.mxu0 0
        %2222 = vmatpush2.bf16.msra.mxu0 0
        %2223 = vmatprep.subr.bf16.mxu0 0
        %2224 = vmatpush2.bf16.msra.mxu0 0
        %2225 = vmatprep.mubr.bf16.mxu0 0
        %2226 = vmatmul.mubr.bf16.gmra.mxu0 %v2191
        %v2227 = vpop.f32.mrf.mxu0
        %v2228 = vadd.f32 %v2176, %v2227
        %v2229 = vpop.f32.mrf.mxu0
        %v2230 = vpop.f32.mrf.mxu0
        %v2231 = vpop.f32.mrf.mxu0
        %2232 = vdwg.mxu0
        %v2234 = vsel %vm781, %v2169, 0
        %2236 = vmatprep.subr.bf16.mxu0 0
        %2237 = vmatpush1.bf16.msra.mxu0 0
        %2238 = vmatprep.subr.bf16.mxu0 0
        %2239 = vmatpush1.bf16.msra.mxu0 0
        %2240 = vmatprep.subr.bf16.mxu0 0
        %2241 = vmatpush1.bf16.msra.mxu0 0
        %2242 = vmatprep.subr.bf16.mxu0 0
        %2243 = vmatpush1.bf16.msra.mxu0 0
        %2244 = vmatprep.subr.bf16.mxu0 0
        %2245 = vmatpush1.bf16.msra.mxu0 0
        %2246 = vmatprep.subr.bf16.mxu0 0
        %2247 = vmatpush1.bf16.msra.mxu0 0
        %2248 = vmatprep.subr.bf16.mxu0 0
        %2249 = vmatpush1.bf16.msra.mxu0 %v2187
        %2250 = vmatprep.subr.bf16.mxu0 0
        %2251 = vmatpush1.bf16.msra.mxu0 %v2186
        %2252 = vmatprep.subr.bf16.mxu0 0
        %2253 = vmatpush2.bf16.msra.mxu0 0
        %2254 = vmatprep.subr.bf16.mxu0 0
        %2255 = vmatpush2.bf16.msra.mxu0 0
        %2256 = vmatprep.subr.bf16.mxu0 0
        %2257 = vmatpush2.bf16.msra.mxu0 0
        %2258 = vmatprep.subr.bf16.mxu0 0
        %2259 = vmatpush2.bf16.msra.mxu0 0
        %2260 = vmatprep.subr.bf16.mxu0 0
        %2261 = vmatpush2.bf16.msra.mxu0 0
        %2262 = vmatprep.subr.bf16.mxu0 0
        %2263 = vmatpush2.bf16.msra.mxu0 0
        %2264 = vmatprep.subr.bf16.mxu0 0
        %2265 = vmatpush2.bf16.msra.mxu0 0
        %2266 = vmatprep.subr.bf16.mxu0 0
        %2267 = vmatpush2.bf16.msra.mxu0 0
        %2268 = vmatprep.mubr.bf16.mxu0 0
        %2269 = vmatmul.mubr.bf16.gmra.mxu0 %v2234
        %v2270 = vpop.f32.mrf.mxu0
        %v2271 = vadd.f32 %v2176, %v2270
        %v2272 = vpop.f32.mrf.mxu0
        %v2273 = vpop.f32.mrf.mxu0
        %v2274 = vpop.f32.mrf.mxu0
        %2275 = vdwg.mxu0
        %v2277 = vsel %vm781, %v2170, 0
        %2279 = vmatprep.subr.bf16.mxu0 0
        %2280 = vmatpush1.bf16.msra.mxu0 0
        %2281 = vmatprep.subr.bf16.mxu0 0
        %2282 = vmatpush1.bf16.msra.mxu0 0
        %2283 = vmatprep.subr.bf16.mxu0 0
        %2284 = vmatpush1.bf16.msra.mxu0 0
        %2285 = vmatprep.subr.bf16.mxu0 0
        %2286 = vmatpush1.bf16.msra.mxu0 0
        %2287 = vmatprep.subr.bf16.mxu0 0
        %2288 = vmatpush1.bf16.msra.mxu0 0
        %2289 = vmatprep.subr.bf16.mxu0 0
        %2290 = vmatpush1.bf16.msra.mxu0 0
        %2291 = vmatprep.subr.bf16.mxu0 0
        %2292 = vmatpush1.bf16.msra.mxu0 %v2187
        %2293 = vmatprep.subr.bf16.mxu0 0
        %2294 = vmatpush1.bf16.msra.mxu0 %v2186
        %2295 = vmatprep.subr.bf16.mxu0 0
        %2296 = vmatpush2.bf16.msra.mxu0 0
        %2297 = vmatprep.subr.bf16.mxu0 0
        %2298 = vmatpush2.bf16.msra.mxu0 0
        %2299 = vmatprep.subr.bf16.mxu0 0
        %2300 = vmatpush2.bf16.msra.mxu0 0
        %2301 = vmatprep.subr.bf16.mxu0 0
        %2302 = vmatpush2.bf16.msra.mxu0 0
        %2303 = vmatprep.subr.bf16.mxu0 0
        %2304 = vmatpush2.bf16.msra.mxu0 0
        %2305 = vmatprep.subr.bf16.mxu0 0
        %2306 = vmatpush2.bf16.msra.mxu0 0
        %2307 = vmatprep.subr.bf16.mxu0 0
        %2308 = vmatpush2.bf16.msra.mxu0 0
        %2309 = vmatprep.subr.bf16.mxu0 0
        %2310 = vmatpush2.bf16.msra.mxu0 0
        %2311 = vmatprep.mubr.bf16.mxu0 0
        %2312 = vmatmul.mubr.bf16.gmra.mxu0 %v2277
        %v2313 = vpop.f32.mrf.mxu0
        %v2314 = vadd.f32 %v2176, %v2313
        %v2315 = vpop.f32.mrf.mxu0
        %v2316 = vpop.f32.mrf.mxu0
        %v2317 = vpop.f32.mrf.mxu0
        %2318 = vdwg.mxu0
        %v2320 = vsel %vm781, %v2171, 0
        %2322 = vmatprep.subr.bf16.mxu0 0
        %2323 = vmatpush1.bf16.msra.mxu0 0
        %2324 = vmatprep.subr.bf16.mxu0 0
        %2325 = vmatpush1.bf16.msra.mxu0 0
        %2326 = vmatprep.subr.bf16.mxu0 0
        %2327 = vmatpush1.bf16.msra.mxu0 0
        %2328 = vmatprep.subr.bf16.mxu0 0
        %2329 = vmatpush1.bf16.msra.mxu0 0
        %2330 = vmatprep.subr.bf16.mxu0 0
        %2331 = vmatpush1.bf16.msra.mxu0 0
        %2332 = vmatprep.subr.bf16.mxu0 0
        %2333 = vmatpush1.bf16.msra.mxu0 0
        %2334 = vmatprep.subr.bf16.mxu0 0
        %2335 = vmatpush1.bf16.msra.mxu0 %v2187
        %2336 = vmatprep.subr.bf16.mxu0 0
        %2337 = vmatpush1.bf16.msra.mxu0 %v2186
        %2338 = vmatprep.subr.bf16.mxu0 0
        %2339 = vmatpush2.bf16.msra.mxu0 0
        %2340 = vmatprep.subr.bf16.mxu0 0
        %2341 = vmatpush2.bf16.msra.mxu0 0
        %2342 = vmatprep.subr.bf16.mxu0 0
        %2343 = vmatpush2.bf16.msra.mxu0 0
        %2344 = vmatprep.subr.bf16.mxu0 0
        %2345 = vmatpush2.bf16.msra.mxu0 0
        %2346 = vmatprep.subr.bf16.mxu0 0
        %2347 = vmatpush2.bf16.msra.mxu0 0
        %2348 = vmatprep.subr.bf16.mxu0 0
        %2349 = vmatpush2.bf16.msra.mxu0 0
        %2350 = vmatprep.subr.bf16.mxu0 0
        %2351 = vmatpush2.bf16.msra.mxu0 0
        %2352 = vmatprep.subr.bf16.mxu0 0
        %2353 = vmatpush2.bf16.msra.mxu0 0
        %2354 = vmatprep.mubr.bf16.mxu0 0
        %2355 = vmatmul.mubr.bf16.gmra.mxu0 %v2320
        %v2356 = vpop.f32.mrf.mxu0
        %v2357 = vadd.f32 %v2176, %v2356
        %v2358 = vpop.f32.mrf.mxu0
        %v2359 = vpop.f32.mrf.mxu0
        %v2360 = vpop.f32.mrf.mxu0
        %2361 = vdwg.mxu0
        %v2362 = vmax.f32 %v2228, 0.0
        %v2363 = vmax.f32 %v2271, 0.0
        %v2364 = vmax.f32 %v2314, 0.0
        %v2365 = vmax.f32 %v2357, 0.0
        %v2366 = vpack.c.bf16 %v2362, %v2362
        %v2367 = vpack.c.bf16 %v2363, %v2363
        %v2368 = vpack.c.bf16 %v2364, %v2364
        %v2369 = vpack.c.bf16 %v2365, %v2365
        %v2371 = vlaneseq
        %v2372 = vshrl.u32 %v2371, 7
        %v2373 = vsub.s32 0, %v2372
        %v2374 = vrot.slane %v770, %v2373
        %v2380 = vunpack.c.l.b16 %v777
        %v2381 = vunpack.c.l.b16 %v778
        %v2382 = vunpack.c.l.b16 %v779
        %v2383 = vunpack.c.l.b16 %v780
        %v2384 = vpack.c.b16 %v2381, %v2380
        %v2385 = vpack.c.b16 %v2383, %v2382
        %v2389 = vsel %vm781, %v2366, 0
        %2391 = vmatprep.subr.bf16.mxu0 0
        %2392 = vmatpush1.bf16.msra.mxu0 0
        %2393 = vmatprep.subr.bf16.mxu0 0
        %2394 = vmatpush1.bf16.msra.mxu0 0
        %2395 = vmatprep.subr.bf16.mxu0 0
        %2396 = vmatpush1.bf16.msra.mxu0 0
        %2397 = vmatprep.subr.bf16.mxu0 0
        %2398 = vmatpush1.bf16.msra.mxu0 0
        %2399 = vmatprep.subr.bf16.mxu0 0
        %2400 = vmatpush1.bf16.msra.mxu0 0
        %2401 = vmatprep.subr.bf16.mxu0 0
        %2402 = vmatpush1.bf16.msra.mxu0 0
        %2403 = vmatprep.subr.bf16.mxu0 0
        %2404 = vmatpush1.bf16.msra.mxu0 %v2385
        %2405 = vmatprep.subr.bf16.mxu0 0
        %2406 = vmatpush1.bf16.msra.mxu0 %v2384
        %2407 = vmatprep.subr.bf16.mxu0 0
        %2408 = vmatpush2.bf16.msra.mxu0 0
        %2409 = vmatprep.subr.bf16.mxu0 0
        %2410 = vmatpush2.bf16.msra.mxu0 0
        %2411 = vmatprep.subr.bf16.mxu0 0
        %2412 = vmatpush2.bf16.msra.mxu0 0
        %2413 = vmatprep.subr.bf16.mxu0 0
        %2414 = vmatpush2.bf16.msra.mxu0 0
        %2415 = vmatprep.subr.bf16.mxu0 0
        %2416 = vmatpush2.bf16.msra.mxu0 0
        %2417 = vmatprep.subr.bf16.mxu0 0
        %2418 = vmatpush2.bf16.msra.mxu0 0
        %2419 = vmatprep.subr.bf16.mxu0 0
        %2420 = vmatpush2.bf16.msra.mxu0 0
        %2421 = vmatprep.subr.bf16.mxu0 0
        %2422 = vmatpush2.bf16.msra.mxu0 0
        %2423 = vmatprep.mubr.bf16.mxu0 0
        %2424 = vmatmul.mubr.bf16.gmra.mxu0 %v2389
        %v2425 = vpop.f32.mrf.mxu0
        %v2426 = vadd.f32 %v2374, %v2425
        %v2427 = vpop.f32.mrf.mxu0
        %v2428 = vpop.f32.mrf.mxu0
        %v2429 = vpop.f32.mrf.mxu0
        %2430 = vdwg.mxu0
        %v2432 = vsel %vm781, %v2367, 0
        %2434 = vmatprep.subr.bf16.mxu0 0
        %2435 = vmatpush1.bf16.msra.mxu0 0
        %2436 = vmatprep.subr.bf16.mxu0 0
        %2437 = vmatpush1.bf16.msra.mxu0 0
        %2438 = vmatprep.subr.bf16.mxu0 0
        %2439 = vmatpush1.bf16.msra.mxu0 0
        %2440 = vmatprep.subr.bf16.mxu0 0
        %2441 = vmatpush1.bf16.msra.mxu0 0
        %2442 = vmatprep.subr.bf16.mxu0 0
        %2443 = vmatpush1.bf16.msra.mxu0 0
        %2444 = vmatprep.subr.bf16.mxu0 0
        %2445 = vmatpush1.bf16.msra.mxu0 0
        %2446 = vmatprep.subr.bf16.mxu0 0
        %2447 = vmatpush1.bf16.msra.mxu0 %v2385
        %2448 = vmatprep.subr.bf16.mxu0 0
        %2449 = vmatpush1.bf16.msra.mxu0 %v2384
        %2450 = vmatprep.subr.bf16.mxu0 0
        %2451 = vmatpush2.bf16.msra.mxu0 0
        %2452 = vmatprep.subr.bf16.mxu0 0
        %2453 = vmatpush2.bf16.msra.mxu0 0
        %2454 = vmatprep.subr.bf16.mxu0 0
        %2455 = vmatpush2.bf16.msra.mxu0 0
        %2456 = vmatprep.subr.bf16.mxu0 0
        %2457 = vmatpush2.bf16.msra.mxu0 0
        %2458 = vmatprep.subr.bf16.mxu0 0
        %2459 = vmatpush2.bf16.msra.mxu0 0
        %2460 = vmatprep.subr.bf16.mxu0 0
        %2461 = vmatpush2.bf16.msra.mxu0 0
        %2462 = vmatprep.subr.bf16.mxu0 0
        %2463 = vmatpush2.bf16.msra.mxu0 0
        %2464 = vmatprep.subr.bf16.mxu0 0
        %2465 = vmatpush2.bf16.msra.mxu0 0
        %2466 = vmatprep.mubr.bf16.mxu0 0
        %2467 = vmatmul.mubr.bf16.gmra.mxu0 %v2432
        %v2468 = vpop.f32.mrf.mxu0
        %v2469 = vadd.f32 %v2374, %v2468
        %v2470 = vpop.f32.mrf.mxu0
        %v2471 = vpop.f32.mrf.mxu0
        %v2472 = vpop.f32.mrf.mxu0
        %2473 = vdwg.mxu0
        %v2475 = vsel %vm781, %v2368, 0
        %2477 = vmatprep.subr.bf16.mxu0 0
        %2478 = vmatpush1.bf16.msra.mxu0 0
        %2479 = vmatprep.subr.bf16.mxu0 0
        %2480 = vmatpush1.bf16.msra.mxu0 0
        %2481 = vmatprep.subr.bf16.mxu0 0
        %2482 = vmatpush1.bf16.msra.mxu0 0
        %2483 = vmatprep.subr.bf16.mxu0 0
        %2484 = vmatpush1.bf16.msra.mxu0 0
        %2485 = vmatprep.subr.bf16.mxu0 0
        %2486 = vmatpush1.bf16.msra.mxu0 0
        %2487 = vmatprep.subr.bf16.mxu0 0
        %2488 = vmatpush1.bf16.msra.mxu0 0
        %2489 = vmatprep.subr.bf16.mxu0 0
        %2490 = vmatpush1.bf16.msra.mxu0 %v2385
        %2491 = vmatprep.subr.bf16.mxu0 0
        %2492 = vmatpush1.bf16.msra.mxu0 %v2384
        %2493 = vmatprep.subr.bf16.mxu0 0
        %2494 = vmatpush2.bf16.msra.mxu0 0
        %2495 = vmatprep.subr.bf16.mxu0 0
        %2496 = vmatpush2.bf16.msra.mxu0 0
        %2497 = vmatprep.subr.bf16.mxu0 0
        %2498 = vmatpush2.bf16.msra.mxu0 0
        %2499 = vmatprep.subr.bf16.mxu0 0
        %2500 = vmatpush2.bf16.msra.mxu0 0
        %2501 = vmatprep.subr.bf16.mxu0 0
        %2502 = vmatpush2.bf16.msra.mxu0 0
        %2503 = vmatprep.subr.bf16.mxu0 0
        %2504 = vmatpush2.bf16.msra.mxu0 0
        %2505 = vmatprep.subr.bf16.mxu0 0
        %2506 = vmatpush2.bf16.msra.mxu0 0
        %2507 = vmatprep.subr.bf16.mxu0 0
        %2508 = vmatpush2.bf16.msra.mxu0 0
        %2509 = vmatprep.mubr.bf16.mxu0 0
        %2510 = vmatmul.mubr.bf16.gmra.mxu0 %v2475
        %v2511 = vpop.f32.mrf.mxu0
        %v2512 = vadd.f32 %v2374, %v2511
        %v2513 = vpop.f32.mrf.mxu0
        %v2514 = vpop.f32.mrf.mxu0
        %v2515 = vpop.f32.mrf.mxu0
        %2516 = vdwg.mxu0
        %v2518 = vsel %vm781, %v2369, 0
        %2520 = vmatprep.subr.bf16.mxu0 0
        %2521 = vmatpush1.bf16.msra.mxu0 0
        %2522 = vmatprep.subr.bf16.mxu0 0
        %2523 = vmatpush1.bf16.msra.mxu0 0
        %2524 = vmatprep.subr.bf16.mxu0 0
        %2525 = vmatpush1.bf16.msra.mxu0 0
        %2526 = vmatprep.subr.bf16.mxu0 0
        %2527 = vmatpush1.bf16.msra.mxu0 0
        %2528 = vmatprep.subr.bf16.mxu0 0
        %2529 = vmatpush1.bf16.msra.mxu0 0
        %2530 = vmatprep.subr.bf16.mxu0 0
        %2531 = vmatpush1.bf16.msra.mxu0 0
        %2532 = vmatprep.subr.bf16.mxu0 0
        %2533 = vmatpush1.bf16.msra.mxu0 %v2385
        %2534 = vmatprep.subr.bf16.mxu0 0
        %2535 = vmatpush1.bf16.msra.mxu0 %v2384
        %2536 = vmatprep.subr.bf16.mxu0 0
        %2537 = vmatpush2.bf16.msra.mxu0 0
        %2538 = vmatprep.subr.bf16.mxu0 0
        %2539 = vmatpush2.bf16.msra.mxu0 0
        %2540 = vmatprep.subr.bf16.mxu0 0
        %2541 = vmatpush2.bf16.msra.mxu0 0
        %2542 = vmatprep.subr.bf16.mxu0 0
        %2543 = vmatpush2.bf16.msra.mxu0 0
        %2544 = vmatprep.subr.bf16.mxu0 0
        %2545 = vmatpush2.bf16.msra.mxu0 0
        %2546 = vmatprep.subr.bf16.mxu0 0
        %2547 = vmatpush2.bf16.msra.mxu0 0
        %2548 = vmatprep.subr.bf16.mxu0 0
        %2549 = vmatpush2.bf16.msra.mxu0 0
        %2550 = vmatprep.subr.bf16.mxu0 0
        %2551 = vmatpush2.bf16.msra.mxu0 0
        %2552 = vmatprep.mubr.bf16.mxu0 0
        %2553 = vmatmul.mubr.bf16.gmra.mxu0 %v2518
        %v2554 = vpop.f32.mrf.mxu0
        %v2555 = vadd.f32 %v2374, %v2554
        %v2556 = vpop.f32.mrf.mxu0
        %v2557 = vpop.f32.mrf.mxu0
        %v2558 = vpop.f32.mrf.mxu0
        %2559 = vdwg.mxu0
        %v2560 = vadd.f32 %v2426, %v1948
        %v2561 = vadd.f32 %v2469, %v1993
        %v2562 = vadd.f32 %v2512, %v2038
        %v2563 = vadd.f32 %v2555, %v2083
        %v2564 = vsel %vm781, %v2560, 0.0
        %2565 = vadd.xlane.f32.xlu0 %v2564
        %v2566 = vpop.xlane.xlu0 %2565
        %v2567 = vsel %vm781, %v2561, 0.0
        %2568 = vadd.xlane.f32.xlu0 %v2567
        %v2569 = vpop.xlane.xlu0 %2568
        %v2570 = vsel %vm781, %v2562, 0.0
        %2571 = vadd.xlane.f32.xlu0 %v2570
        %v2572 = vpop.xlane.xlu0 %2571
        %v2573 = vsel %vm781, %v2563, 0.0
        %2574 = vadd.xlane.f32.xlu0 %v2573
        %v2575 = vpop.xlane.xlu0 %2574
        %v2576 = vrcp.pop 32.0
        %v2577 = vmul.f32 %v2566, %v2576
        %v2578 = vmul.f32 %v2569, %v2576
        %v2579 = vmul.f32 %v2572, %v2576
        %v2580 = vmul.f32 %v2575, %v2576
        %v2581 = vsub.f32 %v2560, %v2577
        %v2582 = vsub.f32 %v2561, %v2578
        %v2583 = vsub.f32 %v2562, %v2579
        %v2584 = vsub.f32 %v2563, %v2580
        %v2585 = vmul.f32 %v2581, %v2581
        %v2586 = vmul.f32 %v2582, %v2582
        %v2587 = vmul.f32 %v2583, %v2583
        %v2588 = vmul.f32 %v2584, %v2584
        %v2589 = vsel %vm781, %v2585, 0.0
        %2590 = vadd.xlane.f32.xlu0 %v2589
        %v2591 = vpop.xlane.xlu0 %2590
        %v2592 = vsel %vm781, %v2586, 0.0
        %2593 = vadd.xlane.f32.xlu0 %v2592
        %v2594 = vpop.xlane.xlu0 %2593
        %v2595 = vsel %vm781, %v2587, 0.0
        %2596 = vadd.xlane.f32.xlu0 %v2595
        %v2597 = vpop.xlane.xlu0 %2596
        %v2598 = vsel %vm781, %v2588, 0.0
        %2599 = vadd.xlane.f32.xlu0 %v2598
        %v2600 = vpop.xlane.xlu0 %2599
        %v2601 = vmul.f32 %v2591, %v2576
        %v2602 = vmul.f32 %v2594, %v2576
        %v2603 = vmul.f32 %v2597, %v2576
        %v2604 = vmul.f32 %v2600, %v2576
        %v2605 = vadd.f32 %v2601, 1e-05
        %v2606 = vadd.f32 %v2602, 1e-05
        %v2607 = vadd.f32 %v2603, 1e-05
        %v2608 = vadd.f32 %v2604, 1e-05
        %v2609 = vrsqrt.pop %v2605
        %v2610 = vrsqrt.pop %v2606
        %v2611 = vrsqrt.pop %v2607
        %v2612 = vrsqrt.pop %v2608
        %v2613 = vmul.f32 %v2581, %v2609
        %v2614 = vmul.f32 %v2582, %v2610
        %v2615 = vmul.f32 %v2583, %v2611
        %v2616 = vmul.f32 %v2584, %v2612
        %v2618 = vlaneseq
        %v2619 = vshrl.u32 %v2618, 7
        %v2620 = vsub.s32 0, %v2619
        %v2621 = vrot.slane %v771, %v2620
        %v2623 = vmul.f32 %v2613, %v2621
        %v2624 = vmul.f32 %v2614, %v2621
        %v2625 = vmul.f32 %v2615, %v2621
        %v2626 = vmul.f32 %v2616, %v2621
        %v2628 = vlaneseq
        %v2629 = vshrl.u32 %v2628, 7
        %v2630 = vsub.s32 0, %v2629
        %v2631 = vrot.slane %v772, %v2630
        %v2633 = vadd.f32 %v2623, %v2631
        %v2634 = vadd.f32 %v2624, %v2631
        %v2635 = vadd.f32 %v2625, %v2631
        %v2636 = vadd.f32 %v2626, %v2631
        %v2637 = vmul.f32 %v2633, %v2164
        %v2638 = vmul.f32 %v2634, %v2165
        %v2639 = vmul.f32 %v2635, %v2166
        %v2640 = vmul.f32 %v2636, %v2167
        %v2641 = vsel %vm781, %v2637, 0.0
        %v2642 = vrot.slane %v2641, 4
        %v2643 = vadd.f32 %v2641, %v2642
        %v2644 = vrot.slane %v2643, 2
        %v2645 = vadd.f32 %v2643, %v2644
        %v2646 = vrot.slane %v2645, 1
        %v2647 = vadd.f32 %v2645, %v2646
        %v2648 = vsel %vm781, %v2638, 0.0
        %v2649 = vrot.slane %v2648, 4
        %v2650 = vadd.f32 %v2648, %v2649
        %v2651 = vrot.slane %v2650, 2
        %v2652 = vadd.f32 %v2650, %v2651
        %v2653 = vrot.slane %v2652, 1
        %v2654 = vadd.f32 %v2652, %v2653
        %v2655 = vsel %vm781, %v2639, 0.0
        %v2656 = vrot.slane %v2655, 4
        %v2657 = vadd.f32 %v2655, %v2656
        %v2658 = vrot.slane %v2657, 2
        %v2659 = vadd.f32 %v2657, %v2658
        %v2660 = vrot.slane %v2659, 1
        %v2661 = vadd.f32 %v2659, %v2660
        %v2662 = vsel %vm781, %v2640, 0.0
        %v2663 = vrot.slane %v2662, 4
        %v2664 = vadd.f32 %v2662, %v2663
        %v2665 = vrot.slane %v2664, 2
        %v2666 = vadd.f32 %v2664, %v2665
        %v2667 = vrot.slane %v2666, 1
        %v2668 = vadd.f32 %v2666, %v2667
        %v2669 = vadd.f32 %v2647, 0.0
        %v2670 = vadd.f32 %v2654, 0.0
        %v2671 = vadd.f32 %v2661, 0.0
        %v2672 = vadd.f32 %v2668, 0.0
        %s2673 = scalar_lea.vmem %s620, 16 [#allocation7]
        %v2674 = vld [vmem:[%s2673] sm:$0xf]
        %v2675 = vld [vmem:[%s2673 + $0x4] sm:$0xf]
        %v2676 = vld [vmem:[%s2673 + $0x8] sm:$0xf]
        %v2677 = vld [vmem:[%s2673 + $0xc] sm:$0xf]
        %v2678 = vunpack.c.l.bf16 %v2674
        %v2679 = vunpack.c.l.bf16 %v2675
        %v2680 = vunpack.c.l.bf16 %v2676
        %v2681 = vunpack.c.l.bf16 %v2677
        %v2682 = vmul.f32 %v2678, %v1273
        %v2683 = vmul.f32 %v2679, %v1274
        %v2684 = vmul.f32 %v2680, %v1275
        %v2685 = vmul.f32 %v2681, %v1276
        %v2686 = vadd.f32 %v1045, %v2682
        %v2687 = vadd.f32 %v1046, %v2683
        %v2688 = vadd.f32 %v1047, %v2684
        %v2689 = vadd.f32 %v1048, %v2685
        %v2690 = vsel %vm1325, -1e+10, %v2686
        %v2691 = vsel %vm1326, -1e+10, %v2687
        %v2692 = vsel %vm1327, -1e+10, %v2688
        %v2693 = vsel %vm1328, -1e+10, %v2689
        %v2694 = vsel %vm1375, %v2690, -inf
        %2695 = vmax.xlane.f32.xlu0 %v2694
        %v2696 = vpop.xlane.xlu0 %2695
        %v2697 = vsel %vm1375, %v2691, -inf
        %2698 = vmax.xlane.f32.xlu0 %v2697
        %v2699 = vpop.xlane.xlu0 %2698
        %v2700 = vsel %vm1375, %v2692, -inf
        %2701 = vmax.xlane.f32.xlu0 %v2700
        %v2702 = vpop.xlane.xlu0 %2701
        %v2703 = vsel %vm1375, %v2693, -inf
        %2704 = vmax.xlane.f32.xlu0 %v2703
        %v2705 = vpop.xlane.xlu0 %2704
        %vm2706 = vcmp.eq.f32.partialorder %v2690, %v2696
        %vm2707 = vcmp.eq.f32.partialorder %v2691, %v2699
        %vm2708 = vcmp.eq.f32.partialorder %v2692, %v2702
        %vm2709 = vcmp.eq.f32.partialorder %v2693, %v2705
        %v2710 = vsel %vm2706, %v1017, 8
        %v2711 = vsel %vm2707, %v1017, 8
        %v2712 = vsel %vm2708, %v1017, 8
        %v2713 = vsel %vm2709, %v1017, 8
        %v2714 = vsel %vm1375, %v2710, 2147483647
        %v2715 = vand.u32 %v2714, 65535
        %v2716 = vshra.s32 %v2714, 16
        %v2717 = vcvt.s32.f32 %v2715
        %v2718 = vcvt.s32.f32 %v2716
        %2719 = vmin.xlane.f32.xlu0 %v2718
        %v2720 = vpop.xlane.xlu0 %2719
        %vm2721 = vcmp.eq.f32.partialorder %v2718, %v2720
        %v2722 = vsel %vm2721, %v2717, inf
        %2723 = vmin.xlane.f32.xlu0 %v2722
        %v2724 = vpop.xlane.xlu0 %2723
        %v2725 = vcvt.f32.s32 %v2724
        %v2726 = vcvt.f32.s32 %v2720
        %v2727 = vshll.u32 %v2726, 16
        %v2728 = vadd.s32 %v2727, %v2725
        %v2729 = vsel %vm1375, %v2711, 2147483647
        %v2730 = vand.u32 %v2729, 65535
        %v2731 = vshra.s32 %v2729, 16
        %v2732 = vcvt.s32.f32 %v2730
        %v2733 = vcvt.s32.f32 %v2731
        %2734 = vmin.xlane.f32.xlu0 %v2733
        %v2735 = vpop.xlane.xlu0 %2734
        %vm2736 = vcmp.eq.f32.partialorder %v2733, %v2735
        %v2737 = vsel %vm2736, %v2732, inf
        %2738 = vmin.xlane.f32.xlu0 %v2737
        %v2739 = vpop.xlane.xlu0 %2738
        %v2740 = vcvt.f32.s32 %v2739
        %v2741 = vcvt.f32.s32 %v2735
        %v2742 = vshll.u32 %v2741, 16
        %v2743 = vadd.s32 %v2742, %v2740
        %v2744 = vsel %vm1375, %v2712, 2147483647
        %v2745 = vand.u32 %v2744, 65535
        %v2746 = vshra.s32 %v2744, 16
        %v2747 = vcvt.s32.f32 %v2745
        %v2748 = vcvt.s32.f32 %v2746
        %2749 = vmin.xlane.f32.xlu0 %v2748
        %v2750 = vpop.xlane.xlu0 %2749
        %vm2751 = vcmp.eq.f32.partialorder %v2748, %v2750
        %v2752 = vsel %vm2751, %v2747, inf
        %2753 = vmin.xlane.f32.xlu0 %v2752
        %v2754 = vpop.xlane.xlu0 %2753
        %v2755 = vcvt.f32.s32 %v2754
        %v2756 = vcvt.f32.s32 %v2750
        %v2757 = vshll.u32 %v2756, 16
        %v2758 = vadd.s32 %v2757, %v2755
        %v2759 = vsel %vm1375, %v2713, 2147483647
        %v2760 = vand.u32 %v2759, 65535
        %v2761 = vshra.s32 %v2759, 16
        %v2762 = vcvt.s32.f32 %v2760
        %v2763 = vcvt.s32.f32 %v2761
        %2764 = vmin.xlane.f32.xlu0 %v2763
        %v2765 = vpop.xlane.xlu0 %2764
        %vm2766 = vcmp.eq.f32.partialorder %v2763, %v2765
        %v2767 = vsel %vm2766, %v2762, inf
        %2768 = vmin.xlane.f32.xlu0 %v2767
        %v2769 = vpop.xlane.xlu0 %2768
        %v2770 = vcvt.f32.s32 %v2769
        %v2771 = vcvt.f32.s32 %v2765
        %v2772 = vshll.u32 %v2771, 16
        %v2773 = vadd.s32 %v2772, %v2770
        %vm2774 = vcmp.eq.s32.totalorder %v1017, %v2728
        %vm2775 = vcmp.eq.s32.totalorder %v1017, %v2743
        %vm2776 = vcmp.eq.s32.totalorder %v1017, %v2758
        %vm2777 = vcmp.eq.s32.totalorder %v1017, %v2773
        %v2778 = vsel %vm2774, 1, 0
        %v2779 = vsel %vm2775, 1, 0
        %v2780 = vsel %vm2776, 1, 0
        %v2781 = vsel %vm2777, 1, 0
        %v2782 = vcvt.s32.f32 %v2778
        %v2783 = vcvt.s32.f32 %v2779
        %v2784 = vcvt.s32.f32 %v2780
        %v2785 = vcvt.s32.f32 %v2781
        %v2786 = vmax.f32 %v2782, 0.0
        %v2787 = vmax.f32 %v2783, 0.0
        %v2788 = vmax.f32 %v2784, 0.0
        %v2789 = vmax.f32 %v2785, 0.0
        %v2790 = vsel %vm2774, -3e+38, %v2690
        %v2791 = vsel %vm2775, -3e+38, %v2691
        %v2792 = vsel %vm2776, -3e+38, %v2692
        %v2793 = vsel %vm2777, -3e+38, %v2693
        %v2794 = vsel %vm1375, %v2790, -inf
        %2795 = vmax.xlane.f32.xlu0 %v2794
        %v2796 = vpop.xlane.xlu0 %2795
        %v2797 = vsel %vm1375, %v2791, -inf
        %2798 = vmax.xlane.f32.xlu0 %v2797
        %v2799 = vpop.xlane.xlu0 %2798
        %v2800 = vsel %vm1375, %v2792, -inf
        %2801 = vmax.xlane.f32.xlu0 %v2800
        %v2802 = vpop.xlane.xlu0 %2801
        %v2803 = vsel %vm1375, %v2793, -inf
        %2804 = vmax.xlane.f32.xlu0 %v2803
        %v2805 = vpop.xlane.xlu0 %2804
        %vm2806 = vcmp.eq.f32.partialorder %v2790, %v2796
        %vm2807 = vcmp.eq.f32.partialorder %v2791, %v2799
        %vm2808 = vcmp.eq.f32.partialorder %v2792, %v2802
        %vm2809 = vcmp.eq.f32.partialorder %v2793, %v2805
        %v2810 = vsel %vm2806, %v1017, 8
        %v2811 = vsel %vm2807, %v1017, 8
        %v2812 = vsel %vm2808, %v1017, 8
        %v2813 = vsel %vm2809, %v1017, 8
        %v2814 = vsel %vm1375, %v2810, 2147483647
        %v2815 = vand.u32 %v2814, 65535
        %v2816 = vshra.s32 %v2814, 16
        %v2817 = vcvt.s32.f32 %v2815
        %v2818 = vcvt.s32.f32 %v2816
        %2819 = vmin.xlane.f32.xlu0 %v2818
        %v2820 = vpop.xlane.xlu0 %2819
        %vm2821 = vcmp.eq.f32.partialorder %v2818, %v2820
        %v2822 = vsel %vm2821, %v2817, inf
        %2823 = vmin.xlane.f32.xlu0 %v2822
        %v2824 = vpop.xlane.xlu0 %2823
        %v2825 = vcvt.f32.s32 %v2824
        %v2826 = vcvt.f32.s32 %v2820
        %v2827 = vshll.u32 %v2826, 16
        %v2828 = vadd.s32 %v2827, %v2825
        %v2829 = vsel %vm1375, %v2811, 2147483647
        %v2830 = vand.u32 %v2829, 65535
        %v2831 = vshra.s32 %v2829, 16
        %v2832 = vcvt.s32.f32 %v2830
        %v2833 = vcvt.s32.f32 %v2831
        %2834 = vmin.xlane.f32.xlu0 %v2833
        %v2835 = vpop.xlane.xlu0 %2834
        %vm2836 = vcmp.eq.f32.partialorder %v2833, %v2835
        %v2837 = vsel %vm2836, %v2832, inf
        %2838 = vmin.xlane.f32.xlu0 %v2837
        %v2839 = vpop.xlane.xlu0 %2838
        %v2840 = vcvt.f32.s32 %v2839
        %v2841 = vcvt.f32.s32 %v2835
        %v2842 = vshll.u32 %v2841, 16
        %v2843 = vadd.s32 %v2842, %v2840
        %v2844 = vsel %vm1375, %v2812, 2147483647
        %v2845 = vand.u32 %v2844, 65535
        %v2846 = vshra.s32 %v2844, 16
        %v2847 = vcvt.s32.f32 %v2845
        %v2848 = vcvt.s32.f32 %v2846
        %2849 = vmin.xlane.f32.xlu0 %v2848
        %v2850 = vpop.xlane.xlu0 %2849
        %vm2851 = vcmp.eq.f32.partialorder %v2848, %v2850
        %v2852 = vsel %vm2851, %v2847, inf
        %2853 = vmin.xlane.f32.xlu0 %v2852
        %v2854 = vpop.xlane.xlu0 %2853
        %v2855 = vcvt.f32.s32 %v2854
        %v2856 = vcvt.f32.s32 %v2850
        %v2857 = vshll.u32 %v2856, 16
        %v2858 = vadd.s32 %v2857, %v2855
        %v2859 = vsel %vm1375, %v2813, 2147483647
        %v2860 = vand.u32 %v2859, 65535
        %v2861 = vshra.s32 %v2859, 16
        %v2862 = vcvt.s32.f32 %v2860
        %v2863 = vcvt.s32.f32 %v2861
        %2864 = vmin.xlane.f32.xlu0 %v2863
        %v2865 = vpop.xlane.xlu0 %2864
        %vm2866 = vcmp.eq.f32.partialorder %v2863, %v2865
        %v2867 = vsel %vm2866, %v2862, inf
        %2868 = vmin.xlane.f32.xlu0 %v2867
        %v2869 = vpop.xlane.xlu0 %2868
        %v2870 = vcvt.f32.s32 %v2869
        %v2871 = vcvt.f32.s32 %v2865
        %v2872 = vshll.u32 %v2871, 16
        %v2873 = vadd.s32 %v2872, %v2870
        %vm2874 = vcmp.eq.s32.totalorder %v1017, %v2828
        %vm2875 = vcmp.eq.s32.totalorder %v1017, %v2843
        %vm2876 = vcmp.eq.s32.totalorder %v1017, %v2858
        %vm2877 = vcmp.eq.s32.totalorder %v1017, %v2873
        %v2878 = vsel %vm2874, 1, 0
        %v2879 = vsel %vm2875, 1, 0
        %v2880 = vsel %vm2876, 1, 0
        %v2881 = vsel %vm2877, 1, 0
        %v2882 = vcvt.s32.f32 %v2878
        %v2883 = vcvt.s32.f32 %v2879
        %v2884 = vcvt.s32.f32 %v2880
        %v2885 = vcvt.s32.f32 %v2881
        %v2886 = vmax.f32 %v2786, %v2882
        %v2887 = vmax.f32 %v2787, %v2883
        %v2888 = vmax.f32 %v2788, %v2884
        %v2889 = vmax.f32 %v2789, %v2885
        %v2890 = vsel %vm2874, -3e+38, %v2790
        %v2891 = vsel %vm2875, -3e+38, %v2791
        %v2892 = vsel %vm2876, -3e+38, %v2792
        %v2893 = vsel %vm2877, -3e+38, %v2793
        %v2894 = vsel %vm1375, %v2890, -inf
        %2895 = vmax.xlane.f32.xlu0 %v2894
        %v2896 = vpop.xlane.xlu0 %2895
        %v2897 = vsel %vm1375, %v2891, -inf
        %2898 = vmax.xlane.f32.xlu0 %v2897
        %v2899 = vpop.xlane.xlu0 %2898
        %v2900 = vsel %vm1375, %v2892, -inf
        %2901 = vmax.xlane.f32.xlu0 %v2900
        %v2902 = vpop.xlane.xlu0 %2901
        %v2903 = vsel %vm1375, %v2893, -inf
        %2904 = vmax.xlane.f32.xlu0 %v2903
        %v2905 = vpop.xlane.xlu0 %2904
        %vm2906 = vcmp.eq.f32.partialorder %v2890, %v2896
        %vm2907 = vcmp.eq.f32.partialorder %v2891, %v2899
        %vm2908 = vcmp.eq.f32.partialorder %v2892, %v2902
        %vm2909 = vcmp.eq.f32.partialorder %v2893, %v2905
        %v2910 = vsel %vm2906, %v1017, 8
        %v2911 = vsel %vm2907, %v1017, 8
        %v2912 = vsel %vm2908, %v1017, 8
        %v2913 = vsel %vm2909, %v1017, 8
        %v2914 = vsel %vm1375, %v2910, 2147483647
        %v2915 = vand.u32 %v2914, 65535
        %v2916 = vshra.s32 %v2914, 16
        %v2917 = vcvt.s32.f32 %v2915
        %v2918 = vcvt.s32.f32 %v2916
        %2919 = vmin.xlane.f32.xlu0 %v2918
        %v2920 = vpop.xlane.xlu0 %2919
        %vm2921 = vcmp.eq.f32.partialorder %v2918, %v2920
        %v2922 = vsel %vm2921, %v2917, inf
        %2923 = vmin.xlane.f32.xlu0 %v2922
        %v2924 = vpop.xlane.xlu0 %2923
        %v2925 = vcvt.f32.s32 %v2924
        %v2926 = vcvt.f32.s32 %v2920
        %v2927 = vshll.u32 %v2926, 16
        %v2928 = vadd.s32 %v2927, %v2925
        %v2929 = vsel %vm1375, %v2911, 2147483647
        %v2930 = vand.u32 %v2929, 65535
        %v2931 = vshra.s32 %v2929, 16
        %v2932 = vcvt.s32.f32 %v2930
        %v2933 = vcvt.s32.f32 %v2931
        %2934 = vmin.xlane.f32.xlu0 %v2933
        %v2935 = vpop.xlane.xlu0 %2934
        %vm2936 = vcmp.eq.f32.partialorder %v2933, %v2935
        %v2937 = vsel %vm2936, %v2932, inf
        %2938 = vmin.xlane.f32.xlu0 %v2937
        %v2939 = vpop.xlane.xlu0 %2938
        %v2940 = vcvt.f32.s32 %v2939
        %v2941 = vcvt.f32.s32 %v2935
        %v2942 = vshll.u32 %v2941, 16
        %v2943 = vadd.s32 %v2942, %v2940
        %v2944 = vsel %vm1375, %v2912, 2147483647
        %v2945 = vand.u32 %v2944, 65535
        %v2946 = vshra.s32 %v2944, 16
        %v2947 = vcvt.s32.f32 %v2945
        %v2948 = vcvt.s32.f32 %v2946
        %2949 = vmin.xlane.f32.xlu0 %v2948
        %v2950 = vpop.xlane.xlu0 %2949
        %vm2951 = vcmp.eq.f32.partialorder %v2948, %v2950
        %v2952 = vsel %vm2951, %v2947, inf
        %2953 = vmin.xlane.f32.xlu0 %v2952
        %v2954 = vpop.xlane.xlu0 %2953
        %v2955 = vcvt.f32.s32 %v2954
        %v2956 = vcvt.f32.s32 %v2950
        %v2957 = vshll.u32 %v2956, 16
        %v2958 = vadd.s32 %v2957, %v2955
        %v2959 = vsel %vm1375, %v2913, 2147483647
        %v2960 = vand.u32 %v2959, 65535
        %v2961 = vshra.s32 %v2959, 16
        %v2962 = vcvt.s32.f32 %v2960
        %v2963 = vcvt.s32.f32 %v2961
        %2964 = vmin.xlane.f32.xlu0 %v2963
        %v2965 = vpop.xlane.xlu0 %2964
        %vm2966 = vcmp.eq.f32.partialorder %v2963, %v2965
        %v2967 = vsel %vm2966, %v2962, inf
        %2968 = vmin.xlane.f32.xlu0 %v2967
        %v2969 = vpop.xlane.xlu0 %2968
        %v2970 = vcvt.f32.s32 %v2969
        %v2971 = vcvt.f32.s32 %v2965
        %v2972 = vshll.u32 %v2971, 16
        %v2973 = vadd.s32 %v2972, %v2970
        %vm2974 = vcmp.eq.s32.totalorder %v1017, %v2928
        %vm2975 = vcmp.eq.s32.totalorder %v1017, %v2943
        %vm2976 = vcmp.eq.s32.totalorder %v1017, %v2958
        %vm2977 = vcmp.eq.s32.totalorder %v1017, %v2973
        %v2978 = vsel %vm2974, 1, 0
        %v2979 = vsel %vm2975, 1, 0
        %v2980 = vsel %vm2976, 1, 0
        %v2981 = vsel %vm2977, 1, 0
        %v2982 = vcvt.s32.f32 %v2978
        %v2983 = vcvt.s32.f32 %v2979
        %v2984 = vcvt.s32.f32 %v2980
        %v2985 = vcvt.s32.f32 %v2981
        %v2986 = vmax.f32 %v2886, %v2982
        %v2987 = vmax.f32 %v2887, %v2983
        %v2988 = vmax.f32 %v2888, %v2984
        %v2989 = vmax.f32 %v2889, %v2985
        %vm2990 = vcmp.gt.f32.partialorder %v2690, -1e+10
        %vm2991 = vcmp.gt.f32.partialorder %v2691, -1e+10
        %vm2992 = vcmp.gt.f32.partialorder %v2692, -1e+10
        %vm2993 = vcmp.gt.f32.partialorder %v2693, -1e+10
        %v2994 = vsel %vm2990, 1, 0
        %v2995 = vsel %vm2991, 1, 0
        %v2996 = vsel %vm2992, 1, 0
        %v2997 = vsel %vm2993, 1, 0
        %v2998 = vcvt.s32.f32 %v2994
        %v2999 = vcvt.s32.f32 %v2995
        %v3000 = vcvt.s32.f32 %v2996
        %v3001 = vcvt.s32.f32 %v2997
        %v3002 = vmul.f32 %v2986, %v2998
        %v3003 = vmul.f32 %v2987, %v2999
        %v3004 = vmul.f32 %v2988, %v3000
        %v3005 = vmul.f32 %v2989, %v3001
        %v3006 = vpack.c.bf16 %v3002, %v3002
        %v3007 = vpack.c.bf16 %v3003, %v3003
        %v3008 = vpack.c.bf16 %v3004, %v3004
        %v3009 = vpack.c.bf16 %v3005, %v3005
        %v3011 = vsel %vm1375, %v3006, 0
        %3013 = vmatprep.subr.bf16.mxu0 0
        %3014 = vmatpush1.bf16.xpose.msra.mxu0 0
        %3015 = vmatprep.subr.bf16.mxu0 0
        %3016 = vmatpush1.bf16.xpose.msra.mxu0 0
        %3017 = vmatprep.subr.bf16.mxu0 0
        %3018 = vmatpush1.bf16.xpose.msra.mxu0 0
        %3019 = vmatprep.subr.bf16.mxu0 0
        %3020 = vmatpush1.bf16.xpose.msra.mxu0 0
        %3021 = vmatprep.subr.bf16.mxu0 0
        %3022 = vmatpush1.bf16.xpose.msra.mxu0 0
        %3023 = vmatprep.subr.bf16.mxu0 0
        %3024 = vmatpush1.bf16.xpose.msra.mxu0 0
        %3025 = vmatprep.subr.bf16.mxu0 0
        %3026 = vmatpush1.bf16.xpose.msra.mxu0 0
        %3027 = vmatprep.subr.bf16.mxu0 0
        %3028 = vmatpush1.bf16.xpose.msra.mxu0 %v3011
        %3029 = vmatprep.subr.bf16.mxu0 0
        %3030 = vmatpush2.bf16.xpose.msra.mxu0 0
        %3031 = vmatprep.subr.bf16.mxu0 0
        %3032 = vmatpush2.bf16.xpose.msra.mxu0 0
        %3033 = vmatprep.subr.bf16.mxu0 0
        %3034 = vmatpush2.bf16.xpose.msra.mxu0 0
        %3035 = vmatprep.subr.bf16.mxu0 0
        %3036 = vmatpush2.bf16.xpose.msra.mxu0 0
        %3037 = vmatprep.subr.bf16.mxu0 0
        %3038 = vmatpush2.bf16.xpose.msra.mxu0 0
        %3039 = vmatprep.subr.bf16.mxu0 0
        %3040 = vmatpush2.bf16.xpose.msra.mxu0 0
        %3041 = vmatprep.subr.bf16.mxu0 0
        %3042 = vmatpush2.bf16.xpose.msra.mxu0 0
        %3043 = vmatprep.subr.bf16.mxu0 0
        %3044 = vmatpush2.bf16.xpose.msra.mxu0 0
        %3045 = vmatprep.mubr.bf16.mxu0 0
        %3046 = vmatmul.mubr.bf16.gmra.mxu0 %v1693
        %v3047 = vpop.f32.mrf.mxu0
        %v3048 = vadd.f32 0.0, %v3047
        %v3049 = vpop.f32.mrf.mxu0
        %v3050 = vpop.f32.mrf.mxu0
        %v3051 = vpop.f32.mrf.mxu0
        %3052 = vdwg.mxu0
        %v3054 = vsel %vm1375, %v3007, 0
        %3056 = vmatprep.subr.bf16.mxu0 0
        %3057 = vmatpush1.bf16.xpose.msra.mxu0 0
        %3058 = vmatprep.subr.bf16.mxu0 0
        %3059 = vmatpush1.bf16.xpose.msra.mxu0 0
        %3060 = vmatprep.subr.bf16.mxu0 0
        %3061 = vmatpush1.bf16.xpose.msra.mxu0 0
        %3062 = vmatprep.subr.bf16.mxu0 0
        %3063 = vmatpush1.bf16.xpose.msra.mxu0 0
        %3064 = vmatprep.subr.bf16.mxu0 0
        %3065 = vmatpush1.bf16.xpose.msra.mxu0 0
        %3066 = vmatprep.subr.bf16.mxu0 0
        %3067 = vmatpush1.bf16.xpose.msra.mxu0 0
        %3068 = vmatprep.subr.bf16.mxu0 0
        %3069 = vmatpush1.bf16.xpose.msra.mxu0 0
        %3070 = vmatprep.subr.bf16.mxu0 0
        %3071 = vmatpush1.bf16.xpose.msra.mxu0 %v3054
        %3072 = vmatprep.subr.bf16.mxu0 0
        %3073 = vmatpush2.bf16.xpose.msra.mxu0 0
        %3074 = vmatprep.subr.bf16.mxu0 0
        %3075 = vmatpush2.bf16.xpose.msra.mxu0 0
        %3076 = vmatprep.subr.bf16.mxu0 0
        %3077 = vmatpush2.bf16.xpose.msra.mxu0 0
        %3078 = vmatprep.subr.bf16.mxu0 0
        %3079 = vmatpush2.bf16.xpose.msra.mxu0 0
        %3080 = vmatprep.subr.bf16.mxu0 0
        %3081 = vmatpush2.bf16.xpose.msra.mxu0 0
        %3082 = vmatprep.subr.bf16.mxu0 0
        %3083 = vmatpush2.bf16.xpose.msra.mxu0 0
        %3084 = vmatprep.subr.bf16.mxu0 0
        %3085 = vmatpush2.bf16.xpose.msra.mxu0 0
        %3086 = vmatprep.subr.bf16.mxu0 0
        %3087 = vmatpush2.bf16.xpose.msra.mxu0 0
        %3088 = vmatprep.mubr.bf16.mxu0 0
        %3089 = vmatmul.mubr.bf16.gmra.mxu0 %v1693
        %v3090 = vpop.f32.mrf.mxu0
        %v3091 = vadd.f32 0.0, %v3090
        %v3092 = vpop.f32.mrf.mxu0
        %v3093 = vpop.f32.mrf.mxu0
        %v3094 = vpop.f32.mrf.mxu0
        %3095 = vdwg.mxu0
        %v3097 = vsel %vm1375, %v3008, 0
        %3099 = vmatprep.subr.bf16.mxu0 0
        %3100 = vmatpush1.bf16.xpose.msra.mxu0 0
        %3101 = vmatprep.subr.bf16.mxu0 0
        %3102 = vmatpush1.bf16.xpose.msra.mxu0 0
        %3103 = vmatprep.subr.bf16.mxu0 0
        %3104 = vmatpush1.bf16.xpose.msra.mxu0 0
        %3105 = vmatprep.subr.bf16.mxu0 0
        %3106 = vmatpush1.bf16.xpose.msra.mxu0 0
        %3107 = vmatprep.subr.bf16.mxu0 0
        %3108 = vmatpush1.bf16.xpose.msra.mxu0 0
        %3109 = vmatprep.subr.bf16.mxu0 0
        %3110 = vmatpush1.bf16.xpose.msra.mxu0 0
        %3111 = vmatprep.subr.bf16.mxu0 0
        %3112 = vmatpush1.bf16.xpose.msra.mxu0 0
        %3113 = vmatprep.subr.bf16.mxu0 0
        %3114 = vmatpush1.bf16.xpose.msra.mxu0 %v3097
        %3115 = vmatprep.subr.bf16.mxu0 0
        %3116 = vmatpush2.bf16.xpose.msra.mxu0 0
        %3117 = vmatprep.subr.bf16.mxu0 0
        %3118 = vmatpush2.bf16.xpose.msra.mxu0 0
        %3119 = vmatprep.subr.bf16.mxu0 0
        %3120 = vmatpush2.bf16.xpose.msra.mxu0 0
        %3121 = vmatprep.subr.bf16.mxu0 0
        %3122 = vmatpush2.bf16.xpose.msra.mxu0 0
        %3123 = vmatprep.subr.bf16.mxu0 0
        %3124 = vmatpush2.bf16.xpose.msra.mxu0 0
        %3125 = vmatprep.subr.bf16.mxu0 0
        %3126 = vmatpush2.bf16.xpose.msra.mxu0 0
        %3127 = vmatprep.subr.bf16.mxu0 0
        %3128 = vmatpush2.bf16.xpose.msra.mxu0 0
        %3129 = vmatprep.subr.bf16.mxu0 0
        %3130 = vmatpush2.bf16.xpose.msra.mxu0 0
        %3131 = vmatprep.mubr.bf16.mxu0 0
        %3132 = vmatmul.mubr.bf16.gmra.mxu0 %v1693
        %v3133 = vpop.f32.mrf.mxu0
        %v3134 = vadd.f32 0.0, %v3133
        %v3135 = vpop.f32.mrf.mxu0
        %v3136 = vpop.f32.mrf.mxu0
        %v3137 = vpop.f32.mrf.mxu0
        %3138 = vdwg.mxu0
        %v3140 = vsel %vm1375, %v3009, 0
        %3142 = vmatprep.subr.bf16.mxu0 0
        %3143 = vmatpush1.bf16.xpose.msra.mxu0 0
        %3144 = vmatprep.subr.bf16.mxu0 0
        %3145 = vmatpush1.bf16.xpose.msra.mxu0 0
        %3146 = vmatprep.subr.bf16.mxu0 0
        %3147 = vmatpush1.bf16.xpose.msra.mxu0 0
        %3148 = vmatprep.subr.bf16.mxu0 0
        %3149 = vmatpush1.bf16.xpose.msra.mxu0 0
        %3150 = vmatprep.subr.bf16.mxu0 0
        %3151 = vmatpush1.bf16.xpose.msra.mxu0 0
        %3152 = vmatprep.subr.bf16.mxu0 0
        %3153 = vmatpush1.bf16.xpose.msra.mxu0 0
        %3154 = vmatprep.subr.bf16.mxu0 0
        %3155 = vmatpush1.bf16.xpose.msra.mxu0 0
        %3156 = vmatprep.subr.bf16.mxu0 0
        %3157 = vmatpush1.bf16.xpose.msra.mxu0 %v3140
        %3158 = vmatprep.subr.bf16.mxu0 0
        %3159 = vmatpush2.bf16.xpose.msra.mxu0 0
        %3160 = vmatprep.subr.bf16.mxu0 0
        %3161 = vmatpush2.bf16.xpose.msra.mxu0 0
        %3162 = vmatprep.subr.bf16.mxu0 0
        %3163 = vmatpush2.bf16.xpose.msra.mxu0 0
        %3164 = vmatprep.subr.bf16.mxu0 0
        %3165 = vmatpush2.bf16.xpose.msra.mxu0 0
        %3166 = vmatprep.subr.bf16.mxu0 0
        %3167 = vmatpush2.bf16.xpose.msra.mxu0 0
        %3168 = vmatprep.subr.bf16.mxu0 0
        %3169 = vmatpush2.bf16.xpose.msra.mxu0 0
        %3170 = vmatprep.subr.bf16.mxu0 0
        %3171 = vmatpush2.bf16.xpose.msra.mxu0 0
        %3172 = vmatprep.subr.bf16.mxu0 0
        %3173 = vmatpush2.bf16.xpose.msra.mxu0 0
        %3174 = vmatprep.mubr.bf16.mxu0 0
        %3175 = vmatmul.mubr.bf16.gmra.mxu0 %v1693
        %v3176 = vpop.f32.mrf.mxu0
        %v3177 = vadd.f32 0.0, %v3176
        %v3178 = vpop.f32.mrf.mxu0
        %v3179 = vpop.f32.mrf.mxu0
        %v3180 = vpop.f32.mrf.mxu0
        %3181 = vdwg.mxu0
        %v3182 = vsub.f32 %v2690, %v2696
        %v3183 = vsub.f32 %v2691, %v2699
        %v3184 = vsub.f32 %v2692, %v2702
        %v3185 = vsub.f32 %v2693, %v2705
        %v3186 = vmul.f32 %v3182, 1.442695
        %v3187 = vpow.pop %v3186
        %v3188 = vmul.f32 %v3183, 1.442695
        %v3189 = vpow.pop %v3188
        %v3190 = vmul.f32 %v3184, 1.442695
        %v3191 = vpow.pop %v3190
        %v3192 = vmul.f32 %v3185, 1.442695
        %v3193 = vpow.pop %v3192
        %v3194 = vsel %vm1375, %v3187, 0.0
        %3195 = vadd.xlane.f32.xlu0 %v3194
        %v3196 = vpop.xlane.xlu0 %3195
        %v3197 = vsel %vm1375, %v3189, 0.0
        %3198 = vadd.xlane.f32.xlu0 %v3197
        %v3199 = vpop.xlane.xlu0 %3198
        %v3200 = vsel %vm1375, %v3191, 0.0
        %3201 = vadd.xlane.f32.xlu0 %v3200
        %v3202 = vpop.xlane.xlu0 %3201
        %v3203 = vsel %vm1375, %v3193, 0.0
        %3204 = vadd.xlane.f32.xlu0 %v3203
        %v3205 = vpop.xlane.xlu0 %3204
        %v3206 = vrcp.pop %v3196
        %v3207 = vrcp.pop %v3199
        %v3208 = vrcp.pop %v3202
        %v3209 = vrcp.pop %v3205
        %v3210 = vmul.f32 %v3187, %v3206
        %v3211 = vmul.f32 %v3189, %v3207
        %v3212 = vmul.f32 %v3191, %v3208
        %v3213 = vmul.f32 %v3193, %v3209
        %v3214 = vmul.f32 %v3048, %v3210
        %v3215 = vmul.f32 %v3091, %v3211
        %v3216 = vmul.f32 %v3134, %v3212
        %v3217 = vmul.f32 %v3177, %v3213
        %v3218 = vpack.c.bf16 %v3214, %v3214
        %v3219 = vpack.c.bf16 %v3215, %v3215
        %v3220 = vpack.c.bf16 %v3216, %v3216
        %v3221 = vpack.c.bf16 %v3217, %v3217
        %v3223 = vsel %vm1375, %v3218, 0
        %3225 = vmatprep.subr.bf16.mxu0 0
        %3226 = vmatpush1.bf16.msra.mxu0 0
        %3227 = vmatprep.subr.bf16.mxu0 0
        %3228 = vmatpush1.bf16.msra.mxu0 0
        %3229 = vmatprep.subr.bf16.mxu0 0
        %3230 = vmatpush1.bf16.msra.mxu0 0
        %3231 = vmatprep.subr.bf16.mxu0 0
        %3232 = vmatpush1.bf16.msra.mxu0 0
        %3233 = vmatprep.subr.bf16.mxu0 0
        %3234 = vmatpush1.bf16.msra.mxu0 0
        %3235 = vmatprep.subr.bf16.mxu0 0
        %3236 = vmatpush1.bf16.msra.mxu0 0
        %3237 = vmatprep.subr.bf16.mxu0 0
        %3238 = vmatpush1.bf16.msra.mxu0 0
        %3239 = vmatprep.subr.bf16.mxu0 0
        %3240 = vmatpush1.bf16.msra.mxu0 %v1911
        %3241 = vmatprep.subr.bf16.mxu0 0
        %3242 = vmatpush2.bf16.msra.mxu0 0
        %3243 = vmatprep.subr.bf16.mxu0 0
        %3244 = vmatpush2.bf16.msra.mxu0 0
        %3245 = vmatprep.subr.bf16.mxu0 0
        %3246 = vmatpush2.bf16.msra.mxu0 0
        %3247 = vmatprep.subr.bf16.mxu0 0
        %3248 = vmatpush2.bf16.msra.mxu0 0
        %3249 = vmatprep.subr.bf16.mxu0 0
        %3250 = vmatpush2.bf16.msra.mxu0 0
        %3251 = vmatprep.subr.bf16.mxu0 0
        %3252 = vmatpush2.bf16.msra.mxu0 0
        %3253 = vmatprep.subr.bf16.mxu0 0
        %3254 = vmatpush2.bf16.msra.mxu0 0
        %3255 = vmatprep.subr.bf16.mxu0 0
        %3256 = vmatpush2.bf16.msra.mxu0 0
        %3257 = vmatprep.mubr.bf16.mxu0 0
        %3258 = vmatmul.mubr.bf16.gmra.mxu0 %v3223
        %v3259 = vpop.f32.mrf.mxu0
        %v3260 = vadd.f32 0.0, %v3259
        %v3261 = vpop.f32.mrf.mxu0
        %v3262 = vpop.f32.mrf.mxu0
        %v3263 = vpop.f32.mrf.mxu0
        %3264 = vdwg.mxu0
        %v3266 = vsel %vm1375, %v3219, 0
        %3268 = vmatprep.subr.bf16.mxu0 0
        %3269 = vmatpush1.bf16.msra.mxu0 0
        %3270 = vmatprep.subr.bf16.mxu0 0
        %3271 = vmatpush1.bf16.msra.mxu0 0
        %3272 = vmatprep.subr.bf16.mxu0 0
        %3273 = vmatpush1.bf16.msra.mxu0 0
        %3274 = vmatprep.subr.bf16.mxu0 0
        %3275 = vmatpush1.bf16.msra.mxu0 0
        %3276 = vmatprep.subr.bf16.mxu0 0
        %3277 = vmatpush1.bf16.msra.mxu0 0
        %3278 = vmatprep.subr.bf16.mxu0 0
        %3279 = vmatpush1.bf16.msra.mxu0 0
        %3280 = vmatprep.subr.bf16.mxu0 0
        %3281 = vmatpush1.bf16.msra.mxu0 0
        %3282 = vmatprep.subr.bf16.mxu0 0
        %3283 = vmatpush1.bf16.msra.mxu0 %v1956
        %3284 = vmatprep.subr.bf16.mxu0 0
        %3285 = vmatpush2.bf16.msra.mxu0 0
        %3286 = vmatprep.subr.bf16.mxu0 0
        %3287 = vmatpush2.bf16.msra.mxu0 0
        %3288 = vmatprep.subr.bf16.mxu0 0
        %3289 = vmatpush2.bf16.msra.mxu0 0
        %3290 = vmatprep.subr.bf16.mxu0 0
        %3291 = vmatpush2.bf16.msra.mxu0 0
        %3292 = vmatprep.subr.bf16.mxu0 0
        %3293 = vmatpush2.bf16.msra.mxu0 0
        %3294 = vmatprep.subr.bf16.mxu0 0
        %3295 = vmatpush2.bf16.msra.mxu0 0
        %3296 = vmatprep.subr.bf16.mxu0 0
        %3297 = vmatpush2.bf16.msra.mxu0 0
        %3298 = vmatprep.subr.bf16.mxu0 0
        %3299 = vmatpush2.bf16.msra.mxu0 0
        %3300 = vmatprep.mubr.bf16.mxu0 0
        %3301 = vmatmul.mubr.bf16.gmra.mxu0 %v3266
        %v3302 = vpop.f32.mrf.mxu0
        %v3303 = vadd.f32 0.0, %v3302
        %v3304 = vpop.f32.mrf.mxu0
        %v3305 = vpop.f32.mrf.mxu0
        %v3306 = vpop.f32.mrf.mxu0
        %3307 = vdwg.mxu0
        %v3309 = vsel %vm1375, %v3220, 0
        %3311 = vmatprep.subr.bf16.mxu0 0
        %3312 = vmatpush1.bf16.msra.mxu0 0
        %3313 = vmatprep.subr.bf16.mxu0 0
        %3314 = vmatpush1.bf16.msra.mxu0 0
        %3315 = vmatprep.subr.bf16.mxu0 0
        %3316 = vmatpush1.bf16.msra.mxu0 0
        %3317 = vmatprep.subr.bf16.mxu0 0
        %3318 = vmatpush1.bf16.msra.mxu0 0
        %3319 = vmatprep.subr.bf16.mxu0 0
        %3320 = vmatpush1.bf16.msra.mxu0 0
        %3321 = vmatprep.subr.bf16.mxu0 0
        %3322 = vmatpush1.bf16.msra.mxu0 0
        %3323 = vmatprep.subr.bf16.mxu0 0
        %3324 = vmatpush1.bf16.msra.mxu0 0
        %3325 = vmatprep.subr.bf16.mxu0 0
        %3326 = vmatpush1.bf16.msra.mxu0 %v2001
        %3327 = vmatprep.subr.bf16.mxu0 0
        %3328 = vmatpush2.bf16.msra.mxu0 0
        %3329 = vmatprep.subr.bf16.mxu0 0
        %3330 = vmatpush2.bf16.msra.mxu0 0
        %3331 = vmatprep.subr.bf16.mxu0 0
        %3332 = vmatpush2.bf16.msra.mxu0 0
        %3333 = vmatprep.subr.bf16.mxu0 0
        %3334 = vmatpush2.bf16.msra.mxu0 0
        %3335 = vmatprep.subr.bf16.mxu0 0
        %3336 = vmatpush2.bf16.msra.mxu0 0
        %3337 = vmatprep.subr.bf16.mxu0 0
        %3338 = vmatpush2.bf16.msra.mxu0 0
        %3339 = vmatprep.subr.bf16.mxu0 0
        %3340 = vmatpush2.bf16.msra.mxu0 0
        %3341 = vmatprep.subr.bf16.mxu0 0
        %3342 = vmatpush2.bf16.msra.mxu0 0
        %3343 = vmatprep.mubr.bf16.mxu0 0
        %3344 = vmatmul.mubr.bf16.gmra.mxu0 %v3309
        %v3345 = vpop.f32.mrf.mxu0
        %v3346 = vadd.f32 0.0, %v3345
        %v3347 = vpop.f32.mrf.mxu0
        %v3348 = vpop.f32.mrf.mxu0
        %v3349 = vpop.f32.mrf.mxu0
        %3350 = vdwg.mxu0
        %v3352 = vsel %vm1375, %v3221, 0
        %3354 = vmatprep.subr.bf16.mxu0 0
        %3355 = vmatpush1.bf16.msra.mxu0 0
        %3356 = vmatprep.subr.bf16.mxu0 0
        %3357 = vmatpush1.bf16.msra.mxu0 0
        %3358 = vmatprep.subr.bf16.mxu0 0
        %3359 = vmatpush1.bf16.msra.mxu0 0
        %3360 = vmatprep.subr.bf16.mxu0 0
        %3361 = vmatpush1.bf16.msra.mxu0 0
        %3362 = vmatprep.subr.bf16.mxu0 0
        %3363 = vmatpush1.bf16.msra.mxu0 0
        %3364 = vmatprep.subr.bf16.mxu0 0
        %3365 = vmatpush1.bf16.msra.mxu0 0
        %3366 = vmatprep.subr.bf16.mxu0 0
        %3367 = vmatpush1.bf16.msra.mxu0 0
        %3368 = vmatprep.subr.bf16.mxu0 0
        %3369 = vmatpush1.bf16.msra.mxu0 %v2046
        %3370 = vmatprep.subr.bf16.mxu0 0
        %3371 = vmatpush2.bf16.msra.mxu0 0
        %3372 = vmatprep.subr.bf16.mxu0 0
        %3373 = vmatpush2.bf16.msra.mxu0 0
        %3374 = vmatprep.subr.bf16.mxu0 0
        %3375 = vmatpush2.bf16.msra.mxu0 0
        %3376 = vmatprep.subr.bf16.mxu0 0
        %3377 = vmatpush2.bf16.msra.mxu0 0
        %3378 = vmatprep.subr.bf16.mxu0 0
        %3379 = vmatpush2.bf16.msra.mxu0 0
        %3380 = vmatprep.subr.bf16.mxu0 0
        %3381 = vmatpush2.bf16.msra.mxu0 0
        %3382 = vmatprep.subr.bf16.mxu0 0
        %3383 = vmatpush2.bf16.msra.mxu0 0
        %3384 = vmatprep.subr.bf16.mxu0 0
        %3385 = vmatpush2.bf16.msra.mxu0 0
        %3386 = vmatprep.mubr.bf16.mxu0 0
        %3387 = vmatmul.mubr.bf16.gmra.mxu0 %v3352
        %v3388 = vpop.f32.mrf.mxu0
        %v3389 = vadd.f32 0.0, %v3388
        %v3390 = vpop.f32.mrf.mxu0
        %v3391 = vpop.f32.mrf.mxu0
        %v3392 = vpop.f32.mrf.mxu0
        %3393 = vdwg.mxu0
        %v3394 = vsel %vm1375, %v3214, 0.0
        %3395 = vadd.xlane.f32.xlu0 %v3394
        %v3396 = vpop.xlane.xlu0 %3395
        %v3397 = vsel %vm1375, %v3215, 0.0
        %3398 = vadd.xlane.f32.xlu0 %v3397
        %v3399 = vpop.xlane.xlu0 %3398
        %v3400 = vsel %vm1375, %v3216, 0.0
        %3401 = vadd.xlane.f32.xlu0 %v3400
        %v3402 = vpop.xlane.xlu0 %3401
        %v3403 = vsel %vm1375, %v3217, 0.0
        %3404 = vadd.xlane.f32.xlu0 %v3403
        %v3405 = vpop.xlane.xlu0 %3404
        %v3406 = vmul.f32 %v3396, %v3396
        %v3407 = vmul.f32 %v3399, %v3399
        %v3408 = vmul.f32 %v3402, %v3402
        %v3409 = vmul.f32 %v3405, %v3405
        %v3410 = vrot.slane %v3406, 4
        %v3411 = vadd.f32 %v3406, %v3410
        %v3412 = vrot.slane %v3411, 2
        %v3413 = vadd.f32 %v3411, %v3412
        %v3414 = vrot.slane %v3413, 1
        %v3415 = vadd.f32 %v3413, %v3414
        %v3416 = vrot.slane %v3407, 4
        %v3417 = vadd.f32 %v3407, %v3416
        %v3418 = vrot.slane %v3417, 2
        %v3419 = vadd.f32 %v3417, %v3418
        %v3420 = vrot.slane %v3419, 1
        %v3421 = vadd.f32 %v3419, %v3420
        %v3422 = vrot.slane %v3408, 4
        %v3423 = vadd.f32 %v3408, %v3422
        %v3424 = vrot.slane %v3423, 2
        %v3425 = vadd.f32 %v3423, %v3424
        %v3426 = vrot.slane %v3425, 1
        %v3427 = vadd.f32 %v3425, %v3426
        %v3428 = vrot.slane %v3409, 4
        %v3429 = vadd.f32 %v3409, %v3428
        %v3430 = vrot.slane %v3429, 2
        %v3431 = vadd.f32 %v3429, %v3430
        %v3432 = vrot.slane %v3431, 1
        %v3433 = vadd.f32 %v3431, %v3432
        %v3434 = vrsqrt.pop %v3415
        %v3435 = vmul.f32 %v3415, %v3434
        %vm3436 = vcmp.eq.f32.partialorder %v3415, inf
        %v3437 = vsel %vm3436, %v3415, %v3435
        %vm3438 = vcmp.eq.f32.partialorder %v3415, 0.0
        %v3439 = vand.u32 %v3415, 2147483648
        %v3440 = vsel %vm3438, %v3439, %v3437
        %v3441 = vrsqrt.pop %v3421
        %v3442 = vmul.f32 %v3421, %v3441
        %vm3443 = vcmp.eq.f32.partialorder %v3421, inf
        %v3444 = vsel %vm3443, %v3421, %v3442
        %vm3445 = vcmp.eq.f32.partialorder %v3421, 0.0
        %v3446 = vand.u32 %v3421, 2147483648
        %v3447 = vsel %vm3445, %v3446, %v3444
        %v3448 = vrsqrt.pop %v3427
        %v3449 = vmul.f32 %v3427, %v3448
        %vm3450 = vcmp.eq.f32.partialorder %v3427, inf
        %v3451 = vsel %vm3450, %v3427, %v3449
        %vm3452 = vcmp.eq.f32.partialorder %v3427, 0.0
        %v3453 = vand.u32 %v3427, 2147483648
        %v3454 = vsel %vm3452, %v3453, %v3451
        %v3455 = vrsqrt.pop %v3433
        %v3456 = vmul.f32 %v3433, %v3455
        %vm3457 = vcmp.eq.f32.partialorder %v3433, inf
        %v3458 = vsel %vm3457, %v3433, %v3456
        %vm3459 = vcmp.eq.f32.partialorder %v3433, 0.0
        %v3460 = vand.u32 %v3433, 2147483648
        %v3461 = vsel %vm3459, %v3460, %v3458
        %v3462 = vmax.f32 %v3440, 1e-12
        %v3463 = vmax.f32 %v3447, 1e-12
        %v3464 = vmax.f32 %v3454, 1e-12
        %v3465 = vmax.f32 %v3461, 1e-12
        %v3466 = vrcp.pop %v3462
        %v3467 = vrcp.pop %v3463
        %v3468 = vrcp.pop %v3464
        %v3469 = vrcp.pop %v3465
        %v3470 = vmul.f32 %v3396, %v3466
        %v3471 = vmul.f32 %v3399, %v3467
        %v3472 = vmul.f32 %v3402, %v3468
        %v3473 = vmul.f32 %v3405, %v3469
        %v3474 = vlaneseq
        %v3475 = vshrl.u32 %v3474, 7
        %v3476 = vsub.s32 0, %v3475
        %v3477 = vrot.slane %v1350, %v3476
        %v3478 = vlaneseq
        %v3479 = vshrl.u32 %v3478, 7
        %v3480 = vsub.s32 0, %v3479
        %v3481 = vrot.slane %v1351, %v3480
        %v3482 = vlaneseq
        %v3483 = vshrl.u32 %v3482, 7
        %v3484 = vsub.s32 0, %v3483
        %v3485 = vrot.slane %v1352, %v3484
        %v3486 = vlaneseq
        %v3487 = vshrl.u32 %v3486, 7
        %v3488 = vsub.s32 0, %v3487
        %v3489 = vrot.slane %v1353, %v3488
        %v3490 = vmul.f32 %v3260, %v3477
        %v3491 = vmul.f32 %v3303, %v3481
        %v3492 = vmul.f32 %v3346, %v3485
        %v3493 = vmul.f32 %v3389, %v3489
        %v3494 = vpack.c.bf16 %v3490, %v3490
        %v3495 = vpack.c.bf16 %v3491, %v3491
        %v3496 = vpack.c.bf16 %v3492, %v3492
        %v3497 = vpack.c.bf16 %v3493, %v3493
        %v3499 = vsel %vm781, %v3494, 0
        %3501 = vmatprep.subr.bf16.mxu0 0
        %3502 = vmatpush1.bf16.msra.mxu0 0
        %3503 = vmatprep.subr.bf16.mxu0 0
        %3504 = vmatpush1.bf16.msra.mxu0 0
        %3505 = vmatprep.subr.bf16.mxu0 0
        %3506 = vmatpush1.bf16.msra.mxu0 0
        %3507 = vmatprep.subr.bf16.mxu0 0
        %3508 = vmatpush1.bf16.msra.mxu0 0
        %3509 = vmatprep.subr.bf16.mxu0 0
        %3510 = vmatpush1.bf16.msra.mxu0 0
        %3511 = vmatprep.subr.bf16.mxu0 0
        %3512 = vmatpush1.bf16.msra.mxu0 0
        %3513 = vmatprep.subr.bf16.mxu0 0
        %3514 = vmatpush1.bf16.msra.mxu0 %v2187
        %3515 = vmatprep.subr.bf16.mxu0 0
        %3516 = vmatpush1.bf16.msra.mxu0 %v2186
        %3517 = vmatprep.subr.bf16.mxu0 0
        %3518 = vmatpush2.bf16.msra.mxu0 0
        %3519 = vmatprep.subr.bf16.mxu0 0
        %3520 = vmatpush2.bf16.msra.mxu0 0
        %3521 = vmatprep.subr.bf16.mxu0 0
        %3522 = vmatpush2.bf16.msra.mxu0 0
        %3523 = vmatprep.subr.bf16.mxu0 0
        %3524 = vmatpush2.bf16.msra.mxu0 0
        %3525 = vmatprep.subr.bf16.mxu0 0
        %3526 = vmatpush2.bf16.msra.mxu0 0
        %3527 = vmatprep.subr.bf16.mxu0 0
        %3528 = vmatpush2.bf16.msra.mxu0 0
        %3529 = vmatprep.subr.bf16.mxu0 0
        %3530 = vmatpush2.bf16.msra.mxu0 0
        %3531 = vmatprep.subr.bf16.mxu0 0
        %3532 = vmatpush2.bf16.msra.mxu0 0
        %3533 = vmatprep.mubr.bf16.mxu0 0
        %3534 = vmatmul.mubr.bf16.gmra.mxu0 %v3499
        %v3535 = vpop.f32.mrf.mxu0
        %v3536 = vadd.f32 %v2176, %v3535
        %v3537 = vpop.f32.mrf.mxu0
        %v3538 = vpop.f32.mrf.mxu0
        %v3539 = vpop.f32.mrf.mxu0
        %3540 = vdwg.mxu0
        %v3542 = vsel %vm781, %v3495, 0
        %3544 = vmatprep.subr.bf16.mxu0 0
        %3545 = vmatpush1.bf16.msra.mxu0 0
        %3546 = vmatprep.subr.bf16.mxu0 0
        %3547 = vmatpush1.bf16.msra.mxu0 0
        %3548 = vmatprep.subr.bf16.mxu0 0
        %3549 = vmatpush1.bf16.msra.mxu0 0
        %3550 = vmatprep.subr.bf16.mxu0 0
        %3551 = vmatpush1.bf16.msra.mxu0 0
        %3552 = vmatprep.subr.bf16.mxu0 0
        %3553 = vmatpush1.bf16.msra.mxu0 0
        %3554 = vmatprep.subr.bf16.mxu0 0
        %3555 = vmatpush1.bf16.msra.mxu0 0
        %3556 = vmatprep.subr.bf16.mxu0 0
        %3557 = vmatpush1.bf16.msra.mxu0 %v2187
        %3558 = vmatprep.subr.bf16.mxu0 0
        %3559 = vmatpush1.bf16.msra.mxu0 %v2186
        %3560 = vmatprep.subr.bf16.mxu0 0
        %3561 = vmatpush2.bf16.msra.mxu0 0
        %3562 = vmatprep.subr.bf16.mxu0 0
        %3563 = vmatpush2.bf16.msra.mxu0 0
        %3564 = vmatprep.subr.bf16.mxu0 0
        %3565 = vmatpush2.bf16.msra.mxu0 0
        %3566 = vmatprep.subr.bf16.mxu0 0
        %3567 = vmatpush2.bf16.msra.mxu0 0
        %3568 = vmatprep.subr.bf16.mxu0 0
        %3569 = vmatpush2.bf16.msra.mxu0 0
        %3570 = vmatprep.subr.bf16.mxu0 0
        %3571 = vmatpush2.bf16.msra.mxu0 0
        %3572 = vmatprep.subr.bf16.mxu0 0
        %3573 = vmatpush2.bf16.msra.mxu0 0
        %3574 = vmatprep.subr.bf16.mxu0 0
        %3575 = vmatpush2.bf16.msra.mxu0 0
        %3576 = vmatprep.mubr.bf16.mxu0 0
        %3577 = vmatmul.mubr.bf16.gmra.mxu0 %v3542
        %v3578 = vpop.f32.mrf.mxu0
        %v3579 = vadd.f32 %v2176, %v3578
        %v3580 = vpop.f32.mrf.mxu0
        %v3581 = vpop.f32.mrf.mxu0
        %v3582 = vpop.f32.mrf.mxu0
        %3583 = vdwg.mxu0
        %v3585 = vsel %vm781, %v3496, 0
        %3587 = vmatprep.subr.bf16.mxu0 0
        %3588 = vmatpush1.bf16.msra.mxu0 0
        %3589 = vmatprep.subr.bf16.mxu0 0
        %3590 = vmatpush1.bf16.msra.mxu0 0
        %3591 = vmatprep.subr.bf16.mxu0 0
        %3592 = vmatpush1.bf16.msra.mxu0 0
        %3593 = vmatprep.subr.bf16.mxu0 0
        %3594 = vmatpush1.bf16.msra.mxu0 0
        %3595 = vmatprep.subr.bf16.mxu0 0
        %3596 = vmatpush1.bf16.msra.mxu0 0
        %3597 = vmatprep.subr.bf16.mxu0 0
        %3598 = vmatpush1.bf16.msra.mxu0 0
        %3599 = vmatprep.subr.bf16.mxu0 0
        %3600 = vmatpush1.bf16.msra.mxu0 %v2187
        %3601 = vmatprep.subr.bf16.mxu0 0
        %3602 = vmatpush1.bf16.msra.mxu0 %v2186
        %3603 = vmatprep.subr.bf16.mxu0 0
        %3604 = vmatpush2.bf16.msra.mxu0 0
        %3605 = vmatprep.subr.bf16.mxu0 0
        %3606 = vmatpush2.bf16.msra.mxu0 0
        %3607 = vmatprep.subr.bf16.mxu0 0
        %3608 = vmatpush2.bf16.msra.mxu0 0
        %3609 = vmatprep.subr.bf16.mxu0 0
        %3610 = vmatpush2.bf16.msra.mxu0 0
        %3611 = vmatprep.subr.bf16.mxu0 0
        %3612 = vmatpush2.bf16.msra.mxu0 0
        %3613 = vmatprep.subr.bf16.mxu0 0
        %3614 = vmatpush2.bf16.msra.mxu0 0
        %3615 = vmatprep.subr.bf16.mxu0 0
        %3616 = vmatpush2.bf16.msra.mxu0 0
        %3617 = vmatprep.subr.bf16.mxu0 0
        %3618 = vmatpush2.bf16.msra.mxu0 0
        %3619 = vmatprep.mubr.bf16.mxu0 0
        %3620 = vmatmul.mubr.bf16.gmra.mxu0 %v3585
        %v3621 = vpop.f32.mrf.mxu0
        %v3622 = vadd.f32 %v2176, %v3621
        %v3623 = vpop.f32.mrf.mxu0
        %v3624 = vpop.f32.mrf.mxu0
        %v3625 = vpop.f32.mrf.mxu0
        %3626 = vdwg.mxu0
        %v3628 = vsel %vm781, %v3497, 0
        %3630 = vmatprep.subr.bf16.mxu0 0
        %3631 = vmatpush1.bf16.msra.mxu0 0
        %3632 = vmatprep.subr.bf16.mxu0 0
        %3633 = vmatpush1.bf16.msra.mxu0 0
        %3634 = vmatprep.subr.bf16.mxu0 0
        %3635 = vmatpush1.bf16.msra.mxu0 0
        %3636 = vmatprep.subr.bf16.mxu0 0
        %3637 = vmatpush1.bf16.msra.mxu0 0
        %3638 = vmatprep.subr.bf16.mxu0 0
        %3639 = vmatpush1.bf16.msra.mxu0 0
        %3640 = vmatprep.subr.bf16.mxu0 0
        %3641 = vmatpush1.bf16.msra.mxu0 0
        %3642 = vmatprep.subr.bf16.mxu0 0
        %3643 = vmatpush1.bf16.msra.mxu0 %v2187
        %3644 = vmatprep.subr.bf16.mxu0 0
        %3645 = vmatpush1.bf16.msra.mxu0 %v2186
        %3646 = vmatprep.subr.bf16.mxu0 0
        %3647 = vmatpush2.bf16.msra.mxu0 0
        %3648 = vmatprep.subr.bf16.mxu0 0
        %3649 = vmatpush2.bf16.msra.mxu0 0
        %3650 = vmatprep.subr.bf16.mxu0 0
        %3651 = vmatpush2.bf16.msra.mxu0 0
        %3652 = vmatprep.subr.bf16.mxu0 0
        %3653 = vmatpush2.bf16.msra.mxu0 0
        %3654 = vmatprep.subr.bf16.mxu0 0
        %3655 = vmatpush2.bf16.msra.mxu0 0
        %3656 = vmatprep.subr.bf16.mxu0 0
        %3657 = vmatpush2.bf16.msra.mxu0 0
        %3658 = vmatprep.subr.bf16.mxu0 0
        %3659 = vmatpush2.bf16.msra.mxu0 0
        %3660 = vmatprep.subr.bf16.mxu0 0
        %3661 = vmatpush2.bf16.msra.mxu0 0
        %3662 = vmatprep.mubr.bf16.mxu0 0
        %3663 = vmatmul.mubr.bf16.gmra.mxu0 %v3628
        %v3664 = vpop.f32.mrf.mxu0
        %v3665 = vadd.f32 %v2176, %v3664
        %v3666 = vpop.f32.mrf.mxu0
        %v3667 = vpop.f32.mrf.mxu0
        %v3668 = vpop.f32.mrf.mxu0
        %3669 = vdwg.mxu0
        %v3670 = vmax.f32 %v3536, 0.0
        %v3671 = vmax.f32 %v3579, 0.0
        %v3672 = vmax.f32 %v3622, 0.0
        %v3673 = vmax.f32 %v3665, 0.0
        %v3674 = vpack.c.bf16 %v3670, %v3670
        %v3675 = vpack.c.bf16 %v3671, %v3671
        %v3676 = vpack.c.bf16 %v3672, %v3672
        %v3677 = vpack.c.bf16 %v3673, %v3673
        %v3679 = vsel %vm781, %v3674, 0
        %3681 = vmatprep.subr.bf16.mxu0 0
        %3682 = vmatpush1.bf16.msra.mxu0 0
        %3683 = vmatprep.subr.bf16.mxu0 0
        %3684 = vmatpush1.bf16.msra.mxu0 0
        %3685 = vmatprep.subr.bf16.mxu0 0
        %3686 = vmatpush1.bf16.msra.mxu0 0
        %3687 = vmatprep.subr.bf16.mxu0 0
        %3688 = vmatpush1.bf16.msra.mxu0 0
        %3689 = vmatprep.subr.bf16.mxu0 0
        %3690 = vmatpush1.bf16.msra.mxu0 0
        %3691 = vmatprep.subr.bf16.mxu0 0
        %3692 = vmatpush1.bf16.msra.mxu0 0
        %3693 = vmatprep.subr.bf16.mxu0 0
        %3694 = vmatpush1.bf16.msra.mxu0 %v2385
        %3695 = vmatprep.subr.bf16.mxu0 0
        %3696 = vmatpush1.bf16.msra.mxu0 %v2384
        %3697 = vmatprep.subr.bf16.mxu0 0
        %3698 = vmatpush2.bf16.msra.mxu0 0
        %3699 = vmatprep.subr.bf16.mxu0 0
        %3700 = vmatpush2.bf16.msra.mxu0 0
        %3701 = vmatprep.subr.bf16.mxu0 0
        %3702 = vmatpush2.bf16.msra.mxu0 0
        %3703 = vmatprep.subr.bf16.mxu0 0
        %3704 = vmatpush2.bf16.msra.mxu0 0
        %3705 = vmatprep.subr.bf16.mxu0 0
        %3706 = vmatpush2.bf16.msra.mxu0 0
        %3707 = vmatprep.subr.bf16.mxu0 0
        %3708 = vmatpush2.bf16.msra.mxu0 0
        %3709 = vmatprep.subr.bf16.mxu0 0
        %3710 = vmatpush2.bf16.msra.mxu0 0
        %3711 = vmatprep.subr.bf16.mxu0 0
        %3712 = vmatpush2.bf16.msra.mxu0 0
        %3713 = vmatprep.mubr.bf16.mxu0 0
        %3714 = vmatmul.mubr.bf16.gmra.mxu0 %v3679
        %v3715 = vpop.f32.mrf.mxu0
        %v3716 = vadd.f32 %v2374, %v3715
        %v3717 = vpop.f32.mrf.mxu0
        %v3718 = vpop.f32.mrf.mxu0
        %v3719 = vpop.f32.mrf.mxu0
        %3720 = vdwg.mxu0
        %v3722 = vsel %vm781, %v3675, 0
        %3724 = vmatprep.subr.bf16.mxu0 0
        %3725 = vmatpush1.bf16.msra.mxu0 0
        %3726 = vmatprep.subr.bf16.mxu0 0
        %3727 = vmatpush1.bf16.msra.mxu0 0
        %3728 = vmatprep.subr.bf16.mxu0 0
        %3729 = vmatpush1.bf16.msra.mxu0 0
        %3730 = vmatprep.subr.bf16.mxu0 0
        %3731 = vmatpush1.bf16.msra.mxu0 0
        %3732 = vmatprep.subr.bf16.mxu0 0
        %3733 = vmatpush1.bf16.msra.mxu0 0
        %3734 = vmatprep.subr.bf16.mxu0 0
        %3735 = vmatpush1.bf16.msra.mxu0 0
        %3736 = vmatprep.subr.bf16.mxu0 0
        %3737 = vmatpush1.bf16.msra.mxu0 %v2385
        %3738 = vmatprep.subr.bf16.mxu0 0
        %3739 = vmatpush1.bf16.msra.mxu0 %v2384
        %3740 = vmatprep.subr.bf16.mxu0 0
        %3741 = vmatpush2.bf16.msra.mxu0 0
        %3742 = vmatprep.subr.bf16.mxu0 0
        %3743 = vmatpush2.bf16.msra.mxu0 0
        %3744 = vmatprep.subr.bf16.mxu0 0
        %3745 = vmatpush2.bf16.msra.mxu0 0
        %3746 = vmatprep.subr.bf16.mxu0 0
        %3747 = vmatpush2.bf16.msra.mxu0 0
        %3748 = vmatprep.subr.bf16.mxu0 0
        %3749 = vmatpush2.bf16.msra.mxu0 0
        %3750 = vmatprep.subr.bf16.mxu0 0
        %3751 = vmatpush2.bf16.msra.mxu0 0
        %3752 = vmatprep.subr.bf16.mxu0 0
        %3753 = vmatpush2.bf16.msra.mxu0 0
        %3754 = vmatprep.subr.bf16.mxu0 0
        %3755 = vmatpush2.bf16.msra.mxu0 0
        %3756 = vmatprep.mubr.bf16.mxu0 0
        %3757 = vmatmul.mubr.bf16.gmra.mxu0 %v3722
        %v3758 = vpop.f32.mrf.mxu0
        %v3759 = vadd.f32 %v2374, %v3758
        %v3760 = vpop.f32.mrf.mxu0
        %v3761 = vpop.f32.mrf.mxu0
        %v3762 = vpop.f32.mrf.mxu0
        %3763 = vdwg.mxu0
        %v3765 = vsel %vm781, %v3676, 0
        %3767 = vmatprep.subr.bf16.mxu0 0
        %3768 = vmatpush1.bf16.msra.mxu0 0
        %3769 = vmatprep.subr.bf16.mxu0 0
        %3770 = vmatpush1.bf16.msra.mxu0 0
        %3771 = vmatprep.subr.bf16.mxu0 0
        %3772 = vmatpush1.bf16.msra.mxu0 0
        %3773 = vmatprep.subr.bf16.mxu0 0
        %3774 = vmatpush1.bf16.msra.mxu0 0
        %3775 = vmatprep.subr.bf16.mxu0 0
        %3776 = vmatpush1.bf16.msra.mxu0 0
        %3777 = vmatprep.subr.bf16.mxu0 0
        %3778 = vmatpush1.bf16.msra.mxu0 0
        %3779 = vmatprep.subr.bf16.mxu0 0
        %3780 = vmatpush1.bf16.msra.mxu0 %v2385
        %3781 = vmatprep.subr.bf16.mxu0 0
        %3782 = vmatpush1.bf16.msra.mxu0 %v2384
        %3783 = vmatprep.subr.bf16.mxu0 0
        %3784 = vmatpush2.bf16.msra.mxu0 0
        %3785 = vmatprep.subr.bf16.mxu0 0
        %3786 = vmatpush2.bf16.msra.mxu0 0
        %3787 = vmatprep.subr.bf16.mxu0 0
        %3788 = vmatpush2.bf16.msra.mxu0 0
        %3789 = vmatprep.subr.bf16.mxu0 0
        %3790 = vmatpush2.bf16.msra.mxu0 0
        %3791 = vmatprep.subr.bf16.mxu0 0
        %3792 = vmatpush2.bf16.msra.mxu0 0
        %3793 = vmatprep.subr.bf16.mxu0 0
        %3794 = vmatpush2.bf16.msra.mxu0 0
        %3795 = vmatprep.subr.bf16.mxu0 0
        %3796 = vmatpush2.bf16.msra.mxu0 0
        %3797 = vmatprep.subr.bf16.mxu0 0
        %3798 = vmatpush2.bf16.msra.mxu0 0
        %3799 = vmatprep.mubr.bf16.mxu0 0
        %3800 = vmatmul.mubr.bf16.gmra.mxu0 %v3765
        %v3801 = vpop.f32.mrf.mxu0
        %v3802 = vadd.f32 %v2374, %v3801
        %v3803 = vpop.f32.mrf.mxu0
        %v3804 = vpop.f32.mrf.mxu0
        %v3805 = vpop.f32.mrf.mxu0
        %3806 = vdwg.mxu0
        %v3808 = vsel %vm781, %v3677, 0
        %3810 = vmatprep.subr.bf16.mxu0 0
        %3811 = vmatpush1.bf16.msra.mxu0 0
        %3812 = vmatprep.subr.bf16.mxu0 0
        %3813 = vmatpush1.bf16.msra.mxu0 0
        %3814 = vmatprep.subr.bf16.mxu0 0
        %3815 = vmatpush1.bf16.msra.mxu0 0
        %3816 = vmatprep.subr.bf16.mxu0 0
        %3817 = vmatpush1.bf16.msra.mxu0 0
        %3818 = vmatprep.subr.bf16.mxu0 0
        %3819 = vmatpush1.bf16.msra.mxu0 0
        %3820 = vmatprep.subr.bf16.mxu0 0
        %3821 = vmatpush1.bf16.msra.mxu0 0
        %3822 = vmatprep.subr.bf16.mxu0 0
        %3823 = vmatpush1.bf16.msra.mxu0 %v2385
        %3824 = vmatprep.subr.bf16.mxu0 0
        %3825 = vmatpush1.bf16.msra.mxu0 %v2384
        %3826 = vmatprep.subr.bf16.mxu0 0
        %3827 = vmatpush2.bf16.msra.mxu0 0
        %3828 = vmatprep.subr.bf16.mxu0 0
        %3829 = vmatpush2.bf16.msra.mxu0 0
        %3830 = vmatprep.subr.bf16.mxu0 0
        %3831 = vmatpush2.bf16.msra.mxu0 0
        %3832 = vmatprep.subr.bf16.mxu0 0
        %3833 = vmatpush2.bf16.msra.mxu0 0
        %3834 = vmatprep.subr.bf16.mxu0 0
        %3835 = vmatpush2.bf16.msra.mxu0 0
        %3836 = vmatprep.subr.bf16.mxu0 0
        %3837 = vmatpush2.bf16.msra.mxu0 0
        %3838 = vmatprep.subr.bf16.mxu0 0
        %3839 = vmatpush2.bf16.msra.mxu0 0
        %3840 = vmatprep.subr.bf16.mxu0 0
        %3841 = vmatpush2.bf16.msra.mxu0 0
        %3842 = vmatprep.mubr.bf16.mxu0 0
        %3843 = vmatmul.mubr.bf16.gmra.mxu0 %v3808
        %v3844 = vpop.f32.mrf.mxu0
        %v3845 = vadd.f32 %v2374, %v3844
        %v3846 = vpop.f32.mrf.mxu0
        %v3847 = vpop.f32.mrf.mxu0
        %v3848 = vpop.f32.mrf.mxu0
        %3849 = vdwg.mxu0
        %v3850 = vadd.f32 %v3716, %v3490
        %v3851 = vadd.f32 %v3759, %v3491
        %v3852 = vadd.f32 %v3802, %v3492
        %v3853 = vadd.f32 %v3845, %v3493
        %v3854 = vsel %vm781, %v3850, 0.0
        %3855 = vadd.xlane.f32.xlu0 %v3854
        %v3856 = vpop.xlane.xlu0 %3855
        %v3857 = vsel %vm781, %v3851, 0.0
        %3858 = vadd.xlane.f32.xlu0 %v3857
        %v3859 = vpop.xlane.xlu0 %3858
        %v3860 = vsel %vm781, %v3852, 0.0
        %3861 = vadd.xlane.f32.xlu0 %v3860
        %v3862 = vpop.xlane.xlu0 %3861
        %v3863 = vsel %vm781, %v3853, 0.0
        %3864 = vadd.xlane.f32.xlu0 %v3863
        %v3865 = vpop.xlane.xlu0 %3864
        %v3866 = vmul.f32 %v3856, %v2576
        %v3867 = vmul.f32 %v3859, %v2576
        %v3868 = vmul.f32 %v3862, %v2576
        %v3869 = vmul.f32 %v3865, %v2576
        %v3870 = vsub.f32 %v3850, %v3866
        %v3871 = vsub.f32 %v3851, %v3867
        %v3872 = vsub.f32 %v3852, %v3868
        %v3873 = vsub.f32 %v3853, %v3869
        %v3874 = vmul.f32 %v3870, %v3870
        %v3875 = vmul.f32 %v3871, %v3871
        %v3876 = vmul.f32 %v3872, %v3872
        %v3877 = vmul.f32 %v3873, %v3873
        %v3878 = vsel %vm781, %v3874, 0.0
        %3879 = vadd.xlane.f32.xlu0 %v3878
        %v3880 = vpop.xlane.xlu0 %3879
        %v3881 = vsel %vm781, %v3875, 0.0
        %3882 = vadd.xlane.f32.xlu0 %v3881
        %v3883 = vpop.xlane.xlu0 %3882
        %v3884 = vsel %vm781, %v3876, 0.0
        %3885 = vadd.xlane.f32.xlu0 %v3884
        %v3886 = vpop.xlane.xlu0 %3885
        %v3887 = vsel %vm781, %v3877, 0.0
        %3888 = vadd.xlane.f32.xlu0 %v3887
        %v3889 = vpop.xlane.xlu0 %3888
        %v3890 = vmul.f32 %v3880, %v2576
        %v3891 = vmul.f32 %v3883, %v2576
        %v3892 = vmul.f32 %v3886, %v2576
        %v3893 = vmul.f32 %v3889, %v2576
        %v3894 = vadd.f32 %v3890, 1e-05
        %v3895 = vadd.f32 %v3891, 1e-05
        %v3896 = vadd.f32 %v3892, 1e-05
        %v3897 = vadd.f32 %v3893, 1e-05
        %v3898 = vrsqrt.pop %v3894
        %v3899 = vrsqrt.pop %v3895
        %v3900 = vrsqrt.pop %v3896
        %v3901 = vrsqrt.pop %v3897
        %v3902 = vmul.f32 %v3870, %v3898
        %v3903 = vmul.f32 %v3871, %v3899
        %v3904 = vmul.f32 %v3872, %v3900
        %v3905 = vmul.f32 %v3873, %v3901
        %v3906 = vmul.f32 %v3902, %v2621
        %v3907 = vmul.f32 %v3903, %v2621
        %v3908 = vmul.f32 %v3904, %v2621
        %v3909 = vmul.f32 %v3905, %v2621
        %v3910 = vadd.f32 %v3906, %v2631
        %v3911 = vadd.f32 %v3907, %v2631
        %v3912 = vadd.f32 %v3908, %v2631
        %v3913 = vadd.f32 %v3909, %v2631
        %v3914 = vmul.f32 %v3910, %v3470
        %v3915 = vmul.f32 %v3911, %v3471
        %v3916 = vmul.f32 %v3912, %v3472
        %v3917 = vmul.f32 %v3913, %v3473
        %v3918 = vsel %vm781, %v3914, 0.0
        %v3919 = vrot.slane %v3918, 4
        %v3920 = vadd.f32 %v3918, %v3919
        %v3921 = vrot.slane %v3920, 2
        %v3922 = vadd.f32 %v3920, %v3921
        %v3923 = vrot.slane %v3922, 1
        %v3924 = vadd.f32 %v3922, %v3923
        %v3925 = vsel %vm781, %v3915, 0.0
        %v3926 = vrot.slane %v3925, 4
        %v3927 = vadd.f32 %v3925, %v3926
        %v3928 = vrot.slane %v3927, 2
        %v3929 = vadd.f32 %v3927, %v3928
        %v3930 = vrot.slane %v3929, 1
        %v3931 = vadd.f32 %v3929, %v3930
        %v3932 = vsel %vm781, %v3916, 0.0
        %v3933 = vrot.slane %v3932, 4
        %v3934 = vadd.f32 %v3932, %v3933
        %v3935 = vrot.slane %v3934, 2
        %v3936 = vadd.f32 %v3934, %v3935
        %v3937 = vrot.slane %v3936, 1
        %v3938 = vadd.f32 %v3936, %v3937
        %v3939 = vsel %vm781, %v3917, 0.0
        %v3940 = vrot.slane %v3939, 4
        %v3941 = vadd.f32 %v3939, %v3940
        %v3942 = vrot.slane %v3941, 2
        %v3943 = vadd.f32 %v3941, %v3942
        %v3944 = vrot.slane %v3943, 1
        %v3945 = vadd.f32 %v3943, %v3944
        %v3946 = vadd.f32 %v2669, %v3924
        %v3947 = vadd.f32 %v2670, %v3931
        %v3948 = vadd.f32 %v2671, %v3938
        %v3949 = vadd.f32 %v2672, %v3945
        %vm3950 = vcmask 253952
        %3951 = vst.msk [vmem:[%s697] sm:$0x1] %vm3950, %v3946
        %3952 = vst.msk [vmem:[%s697 + $0x1] sm:$0x1] %vm3950, %v3947
        %3953 = vst.msk [vmem:[%s697 + $0x2] sm:$0x1] %vm3950, %v3948
        %3954 = vst.msk [vmem:[%s697 + $0x3] sm:$0x1] %vm3950, %v3949
        %s3955 = sand.u32 %s376, 1
        %s3956 = scalar_lea.sflag [#allocation4], %s3955
        %s3957 = sand.u32 %s376, 1
        %s3958 = smul.addr %s3957, 4
        %s3959 = scalar_lea.vmem [#allocation8], %s3958
        // Predicated region
        $region126: #{tpu_custom_call.1} parent=112 // pred_check
          %p3960 = pneg %p386
        $region127: #{tpu_custom_call.1} parent=112 // pred_check_branch
          %3962 = sbr.rel (%p3960) target = $region129
        $region128: #{tpu_custom_call.1} parent=112 // pred_region
          %s3963 = smul.u32 4, %s34
          %s3965 = ssub.s32 64, 64
          %3966 = vsyncadd %s3956, %s3965
          %s3967 = smul.addr %s3963, 16
          %s3968 = scalar_lea.hbm %s14, %s3967
          %s3969 = sshll.u32 %s3959, 4
          %s3970 = int_to_ptr.vmem [resolvable:$true] %s3969
          %3975 = dma.vmem_to_hbm [thread:$0]  %s3970, 64, %s3968, %s3956, 16, 16, 1
        $region129: #{tpu_custom_call.1} parent=112 // pred_fallthru
          _
      $region113: #{tpu_custom_call.1} parent=5 // pred_fallthru
        _
      %p3976 = scmp.le.s32.totalorder 2, %s29
      // Predicated region
      $region130: #{tpu_custom_call.1} parent=5 // pred_check
        %p3977 = pneg %p3976
      $region131: #{tpu_custom_call.1} parent=5 // pred_check_branch
        %3979 = sbr.rel (%p3977) target = $region133
      $region132: #{tpu_custom_call.1} parent=5 // pred_region
        %s3980 = ssub.s32 %s29, 2
        // Predicated region
        $region134: #{tpu_custom_call.1} parent=132 // pred_check
          %p3981 = pneg %p392
        $region135: #{tpu_custom_call.1} parent=132 // pred_check_branch
          %3983 = sbr.rel (%p3981) target = $region137
        $region136: #{tpu_custom_call.1} parent=132 // pred_region
          %s3984 = sand.u32 %s377, 1
          %s3985 = scalar_lea.sflag [#allocation4], %s3984
          %s3986 = sand.u32 %s377, 1
          %s3987 = smul.addr %s3986, 4
          %s3988 = scalar_lea.vmem [#allocation8], %s3987
          %3989 = dma.done %s3985, 64
        $region137: #{tpu_custom_call.1} parent=132 // pred_fallthru
          _
      $region133: #{tpu_custom_call.1} parent=5 // pred_fallthru
        _
    $region6: #{tpu_custom_call.1} parent=1 // loop_footer
      %s33 = sadd.s32 1, %s29
    $region7: #{tpu_custom_call.1} parent=1 // loop_footer_branch
      %28 = sbr.rel target = $region3
    $region8: #{tpu_custom_call.1} parent=1 // loop_exit
      _
    %3990 = vsyncpa [#allocation3], 1
    %s3991 = scalar_lea.sflag [#allocation3], 1
    %3992 = vsyncpa %s3991, 1
    %3993 = vsyncpa [#allocation6], 1
    %s3994 = scalar_lea.sflag [#allocation6], 1
    %3995 = vsyncpa %s3994, 1
    %3996 = vsyncpa [#allocation4], 1
    %s3997 = scalar_lea.sflag [#allocation4], 1
    %3998 = vsyncpa %s3997, 1

</llo_original>
